<compile_context>
chip_gen: v6e
topology: v6e:2x2x1
jax: 0.10.0
libtpu: 0.0.40
codegen_flags: <defaults>
</compile_context>

<pallas_src>
import functools

import numpy as np
import jax
import jax.numpy as jnp
from jax.experimental import pallas as pl
from jax.experimental.pallas import tpu as pltpu


# -----------------------------------------------------------------------------
# Anchor utilities (pure numpy glue, same semantics as the PyTorch file)
# -----------------------------------------------------------------------------
def anchor_generator(base_size=16, ratios=(0.5, 1.0, 2.0), scales=(8, 16, 32)):
    py = base_size / 2.0
    px = base_size / 2.0
    ab = np.zeros((len(ratios) * len(scales), 4), dtype=np.float32)
    for i, r in enumerate(ratios):
        for j, s in enumerate(scales):
            h = base_size * s * np.sqrt(r)
            w = base_size * s * np.sqrt(1.0 / r)
            idx = i * len(scales) + j
            ab[idx, 0] = py - h / 2.0
            ab[idx, 1] = px - w / 2.0
            ab[idx, 2] = py + h / 2.0
            ab[idx, 3] = px + w / 2.0
    return ab


def _enumerate_shifted_anchor(anchor_base, feat_stride, height, width):
    shift_x = np.arange(0, width * feat_stride, feat_stride)
    shift_y = np.arange(0, height * feat_stride, feat_stride)
    shift_x, shift_y = np.meshgrid(shift_x, shift_y)
    shift_x = np.ravel(shift_x)
    shift_y = np.ravel(shift_y)
    shift = np.stack((shift_x, shift_y, shift_x, shift_y), axis=1)
    A = anchor_base.shape[0]
    K = shift.shape[0]
    anchor = anchor_base.reshape((1, A, 4))
    shift = shift.reshape((1, K, 4)).transpose((1, 0, 2))
    ret = (anchor + shift).reshape((K * A, 4)).astype(np.float32)
    return ret


# -----------------------------------------------------------------------------
# Pallas kernel: 3x3 conv (im2col-by-dx) -> fused score|loc 1x1 -> pair softmax
# -----------------------------------------------------------------------------
def _rpn_kernel(tH, W, C, A, P,
                x_ref, wd_ref, b1_ref, wh_ref, bh_ref,
                out_ref, slab_ref, acc_ref):
    rows_in = (tH + 2) * W
    rows_out = tH * W

    # im2col along dx into a VMEM slab: 3 copies (dx=0 aligned) instead of 9
    # shifted slice+reshape materializations feeding the MXU directly.
    for dx in range(3):
        slab_ref[:, dx * C:(dx + 1) * C] = (
            x_ref[0, :, dx:dx + W, :].reshape(rows_in, C))

    # 3x3 conv as 3 MXU matmuls with K = 3C; the dy shift is a cheap
    # leading-dim (static, W-multiple) slice of the slab scratch.
    for dy in range(3):
        lhs = slab_ref[dy * W:dy * W + rows_out, :]
        part = jnp.dot(lhs, wd_ref[dy], preferred_element_type=jnp.float32)
        if dy == 0:
            acc_ref[...] = part
        else:
            acc_ref[...] += part

    # NOTE: the module applies NO ReLU after conv1.
    feat = (acc_ref[...] + b1_ref[...]).astype(jnp.bfloat16)

    # Fused score|loc 1x1 conv; output lane-padded to P (multiple of 128).
    hd = jnp.dot(feat, wh_ref[...],
                 preferred_element_type=jnp.float32) + bh_ref[...]

    # Pairwise 2-way softmax over the first 2A lanes: softmax over a pair is
    # sigmoid(logit - partner), where partner sits at lane ^ 1.
    # roll(P-1) == roll(-1): even lanes take the next lane, odd lanes the
    # previous one; wrap-around lanes are never selected.
    lane = jax.lax.broadcasted_iota(jnp.int32, (rows_out, P), 1)
    partner = jnp.where(lane % 2 == 0,
                        pltpu.roll(hd, P - 1, axis=1),
                        pltpu.roll(hd, 1, axis=1))
    sig = pl.reciprocal(1.0 + jnp.exp(partner - hd), approx=True)
    out_ref[0] = jnp.where(lane < 2 * A, sig, hd)


def _pick_tile_h(H, W):
    """Largest divisor of H whose row tile (tile_h*W) is a multiple of 8 and
    not excessively large; falls back to the full H."""
    for cand in range(H, 0, -1):
        if H % cand == 0 and (cand * W) % 8 == 0 and cand * W <= 2048:
            return cand
    return H


def rpn_forward(feature_map, params, img_size, scale=1.0,
                feat_stride=16, n_anchor=9, tile_h=None):
    """feature_map: (N, C, H, W) float32, NCHW exactly like the PyTorch module."""
    del img_size, scale  # only consumed by ProposalCreator (see TODO below)
    N, C, H, W = feature_map.shape
    A = n_anchor
    M = params["w1"].shape[-1]

    if tile_h is None:
        tile_h = _pick_tile_h(H, W)
    assert H % tile_h == 0
    nH = H // tile_h
    assert (tile_h * W) % 8 == 0 or nH == 1
    rows_out = tile_h * W

    # NCHW -> NHWC, pad H/W by 1 (conv padding=1), then gather halo'd row
    # tiles [t*tH, t*tH + tH + 2) so plain blocked BlockSpecs feed the
    # row-tiled grid.  bf16 halves HBM/VMEM traffic and runs the MXU at
    # native bf16 rate (f32 accumulation preserved in-kernel).
    x = jnp.transpose(feature_map, (0, 2, 3, 1))
    xp = jnp.pad(x, ((0, 0), (1, 1), (1, 1), (0, 0)))
    row_idx = np.arange(nH)[:, None] * tile_h + np.arange(tile_h + 2)[None, :]
    xh = xp[:, row_idx].reshape(N * nH, tile_h + 2, W + 2, C)
    xh = xh.astype(jnp.bfloat16)

    # 3x3 conv weights as (3, 3C, M): dy-major, dx folded into K (im2col order).
    wd = params["w1"].reshape(3, 3 * C, M).astype(jnp.bfloat16)
    b1 = params["b1"].astype(jnp.float32)

    # Fused score|loc head, zero-padded to lane-dense width P (multiple of 128).
    P = ((6 * A + 127) // 128) * 128
    wh = jnp.pad(jnp.concatenate([params["ws"], params["wl"]], axis=1),
                 ((0, 0), (0, P - 6 * A))).astype(jnp.bfloat16)
    bh = jnp.pad(jnp.concatenate([params["bs"], params["bl"]], axis=1),
                 ((0, 0), (0, P - 6 * A))).astype(jnp.float32)

    kernel = functools.partial(_rpn_kernel, tile_h, W, C, A, P)

    cost = pl.CostEstimate(
        flops=2 * N * H * W * M * (9 * C + P),
        transcendentals=N * H * W * P,
        bytes_accessed=(int(xh.size) * 2 + int(wd.size) * 2 + int(wh.size) * 2
                        + int(b1.size) * 4 + int(bh.size) * 4
                        + N * H * W * P * 4),
    )

    def build_call(single_buffer_weights):
        def const_spec(shape):
            nd = len(shape)
            imap = lambda n, t: (0,) * nd
            if single_buffer_weights:
                # Invariant operands: double-buffering only wastes VMEM.
                return pl.BlockSpec(shape, imap, pipeline_mode=pl.Buffered(1))
            return pl.BlockSpec(shape, imap)

        return pl.pallas_call(
            kernel,
            out_shape=jax.ShapeDtypeStruct((N, H * W, P), jnp.float32),
            grid_spec=pltpu.PrefetchScalarGridSpec(
                num_scalar_prefetch=0,
                grid=(N, nH),
                in_specs=[
                    pl.BlockSpec((1, tile_h + 2, W + 2, C),
                                 lambda n, t: (n * nH + t, 0, 0, 0)),
                    const_spec((3, 3 * C, M)),     # conv1 weights (invariant)
                    const_spec((1, M)),            # conv1 bias
                    const_spec((M, P)),            # fused score|loc weights
                    const_spec((1, P)),            # fused score|loc bias
                ],
                out_specs=pl.BlockSpec((1, rows_out, P),
                                       lambda n, t: (n, t, 0)),
                scratch_shapes=[
                    pltpu.VMEM(((tile_h + 2) * W, 3 * C), jnp.bfloat16),
                    pltpu.VMEM((rows_out, M), jnp.float32),
                ],
            ),
            compiler_params=pltpu.CompilerParams(
                dimension_semantics=("parallel", "parallel"),
                vmem_limit_bytes=48 * 1024 * 1024),
            cost_estimate=cost,
        )

    try:
        out = build_call(single_buffer_weights=True)(xh, wd, b1, wh, bh)
        out = jax.block_until_ready(out)
    except Exception:
        # pl.Buffered(1) not supported in this JAX build: fall back to the
        # default (double-buffered) pipelining for the invariant operands.
        out = build_call(single_buffer_weights=False)(xh, wd, b1, wh, bh)

    # Equivalent to permute(0, 2, 3, 1).contiguous().view(N, -1, {2,4});
    # the softmax over each anchor's 2 classes was applied in-kernel.
    score = out[:, :, :2 * A].reshape(N, H * W * A, 2)
    loc = out[:, :, 2 * A:6 * A].reshape(N, H * W * A, 4)

    anchor = _enumerate_shifted_anchor(
        np.array(anchor_generator()), feat_stride, H, W)

    # TODO(synk): ProposalCreator (bbox decode + clip + score sort + NMS) is
    # data-dependent host-side post-processing with no clean Pallas
    # equivalent; rois / roi_indices are not produced here.
    return score, loc, anchor


# -----------------------------------------------------------------------------
# Parameter setup (normal_init: weight ~ N(0, 0.001), bias = 0) and reference
# -----------------------------------------------------------------------------
def init_params(key, in_channel, mid_channel, n_anchor, std=1e-3):
    k1, k2, k3 = jax.random.split(key, 3)
    return dict(
        w1=jax.random.normal(k1, (3, 3, in_channel, mid_channel), jnp.float32) * std,
        b1=jnp.zeros((1, mid_channel), jnp.float32),
        ws=jax.random.normal(k2, (mid_channel, 2 * n_anchor), jnp.float32) * std,
        bs=jnp.zeros((1, 2 * n_anchor), jnp.float32),
        wl=jax.random.normal(k3, (mid_channel, 4 * n_anchor), jnp.float32) * std,
        bl=jnp.zeros((1, 4 * n_anchor), jnp.float32),
    )


def rpn_reference(feature_map, params, n_anchor=9):
    """Pure-JAX f32 reference of the same math, for a correctness check."""
    N, C, H, W = feature_map.shape
    M = params["w1"].shape[-1]
    x = jnp.transpose(feature_map, (0, 2, 3, 1))
    xp = jnp.pad(x, ((0, 0), (1, 1), (1, 1), (0, 0)))
    feat = jnp.zeros((N, H, W, M), jnp.float32)
    for dy in range(3):
        for dx in range(3):
            feat = feat + jnp.einsum("nhwc,cm->nhwm",
                                     xp[:, dy:dy + H, dx:dx + W, :],
                                     params["w1"][dy, dx])
    feat = feat + params["b1"][0]
    sc = jnp.einsum("nhwm,mk->nhwk", feat, params["ws"]) + params["bs"][0]
    lc = jnp.einsum("nhwm,mk->nhwk", feat, params["wl"]) + params["bl"][0]
    sc = jax.nn.softmax(sc.reshape(N, H * W * n_anchor, 2), axis=-1)
    lc = lc.reshape(N, H * W * n_anchor, 4)
    return sc, lc


if __name__ == "__main__":
    # Small (but lane-aligned) shapes consistent with the module: (N, C, H, W).
    N, C, H, W = 2, 128, 8, 8
    MID, N_ANCHOR, FEAT_STRIDE = 128, 9, 16

    key = jax.random.PRNGKey(0)
    k_x, k_p = jax.random.split(key)
    feature_map = jax.random.normal(k_x, (N, C, H, W), jnp.float32)
    params = init_params(k_p, C, MID, N_ANCHOR)
    img_size = (H * FEAT_STRIDE, W * FEAT_STRIDE)

    score, loc, anchor = rpn_forward(
        feature_map, params, img_size, scale=1.0,
        feat_stride=FEAT_STRIDE, n_anchor=N_ANCHOR, tile_h=4)
    score = jax.block_until_ready(score)
    loc = jax.block_until_ready(loc)

    # Sanity checks against the pure-JAX f32 reference (kernel runs bf16 with
    # f32 accumulation + approx reciprocal, hence the looser tolerances).
    score_ref, loc_ref = rpn_reference(feature_map, params, N_ANCHOR)
    assert score.shape == (N, H * W * N_ANCHOR, 2)
    assert loc.shape == (N, H * W * N_ANCHOR, 4)
    assert anchor.shape == (H * W * N_ANCHOR, 4)
    np.testing.assert_allclose(np.asarray(score), np.asarray(score_ref),
                               rtol=2e-2, atol=5e-3)
    np.testing.assert_allclose(np.asarray(loc), np.asarray(loc_ref),
                               rtol=5e-2, atol=1e-4)

    print("KERNEL_OK")
</pallas_src>

<mosaic_0001>
module attributes {stable_mosaic.version = 11 : i64} {
  func.func @_rpn_kernel(%arg0: i32, %arg1: i32, %arg2: memref<1x6x10x128xbf16, #tpu.memory_space<vmem>>, %arg3: memref<3x384x128xbf16, #tpu.memory_space<vmem>>, %arg4: memref<1x128xf32, #tpu.memory_space<vmem>>, %arg5: memref<128x128xbf16, #tpu.memory_space<vmem>>, %arg6: memref<1x128xf32, #tpu.memory_space<vmem>>, %arg7: memref<1x32x128xf32, #tpu.memory_space<vmem>>, %arg8: memref<48x384xbf16, #tpu.memory_space<vmem>>, %arg9: memref<32x128xf32, #tpu.memory_space<vmem>>) attributes {dimension_semantics = [#tpu.dimension_semantics<parallel>, #tpu.dimension_semantics<parallel>], iteration_bounds = array<i64: 2, 2>, scalar_prefetch = 0 : i64, scratch_operands = 2 : i64, tpu.core_type = #tpu.core_type<tc>, window_params = [{transform_indices = @transform_0, window_bounds = array<i64: 1, 6, 10, 128>}, {pipeline_mode = #tpu.pipeline_mode<synchronous>, transform_indices = @transform_1, window_bounds = array<i64: 3, 384, 128>}, {pipeline_mode = #tpu.pipeline_mode<synchronous>, transform_indices = @transform_2, window_bounds = array<i64: 1, 128>}, {pipeline_mode = #tpu.pipeline_mode<synchronous>, transform_indices = @transform_3, window_bounds = array<i64: 128, 128>}, {pipeline_mode = #tpu.pipeline_mode<synchronous>, transform_indices = @transform_4, window_bounds = array<i64: 1, 128>}, {transform_indices = @transform_5, window_bounds = array<i64: 1, 32, 128>}]} {
    %c0 = arith.constant 0 : index
    %c0_0 = arith.constant 0 : index
    %c0_1 = arith.constant 0 : index
    %c0_2 = arith.constant 0 : index
    %0 = vector.load %arg2[%c0, %c0_0, %c0_1, %c0_2] : memref<1x6x10x128xbf16, #tpu.memory_space<vmem>>, vector<1x6x8x128xbf16>
    %1 = vector.shape_cast %0 : vector<1x6x8x128xbf16> to vector<6x8x128xbf16>
    %2 = vector.shape_cast %1 : vector<6x8x128xbf16> to vector<48x128xbf16>
    %c0_3 = arith.constant 0 : index
    %c0_4 = arith.constant 0 : index
    %3 = vector.load %arg8[%c0_3, %c0_4] : memref<48x384xbf16, #tpu.memory_space<vmem>>, vector<48x128xbf16>
    tpu.vector_store %arg8[%c0_3, %c0_4], %2 {strides = array<i32>} : memref<48x384xbf16, #tpu.memory_space<vmem>>, vector<48x128xbf16>,
    %c0_5 = arith.constant 0 : index
    %c0_6 = arith.constant 0 : index
    %c1 = arith.constant 1 : index
    %c0_7 = arith.constant 0 : index
    %4 = vector.load %arg2[%c0_5, %c0_6, %c1, %c0_7] : memref<1x6x10x128xbf16, #tpu.memory_space<vmem>>, vector<1x6x8x128xbf16>
    %5 = vector.shape_cast %4 : vector<1x6x8x128xbf16> to vector<6x8x128xbf16>
    %6 = vector.shape_cast %5 : vector<6x8x128xbf16> to vector<48x128xbf16>
    %c0_8 = arith.constant 0 : index
    %c128 = arith.constant 128 : index
    %7 = vector.load %arg8[%c0_8, %c128] : memref<48x384xbf16, #tpu.memory_space<vmem>>, vector<48x128xbf16>
    tpu.vector_store %arg8[%c0_8, %c128], %6 {strides = array<i32>} : memref<48x384xbf16, #tpu.memory_space<vmem>>, vector<48x128xbf16>,
    %c0_9 = arith.constant 0 : index
    %c0_10 = arith.constant 0 : index
    %c2 = arith.constant 2 : index
    %c0_11 = arith.constant 0 : index
    %8 = vector.load %arg2[%c0_9, %c0_10, %c2, %c0_11] : memref<1x6x10x128xbf16, #tpu.memory_space<vmem>>, vector<1x6x8x128xbf16>
    %9 = vector.shape_cast %8 : vector<1x6x8x128xbf16> to vector<6x8x128xbf16>
    %10 = vector.shape_cast %9 : vector<6x8x128xbf16> to vector<48x128xbf16>
    %c0_12 = arith.constant 0 : index
    %c256 = arith.constant 256 : index
    %11 = vector.load %arg8[%c0_12, %c256] : memref<48x384xbf16, #tpu.memory_space<vmem>>, vector<48x128xbf16>
    tpu.vector_store %arg8[%c0_12, %c256], %10 {strides = array<i32>} : memref<48x384xbf16, #tpu.memory_space<vmem>>, vector<48x128xbf16>,
    %c0_13 = arith.constant 0 : index
    %c0_14 = arith.constant 0 : index
    %12 = vector.load %arg8[%c0_13, %c0_14] : memref<48x384xbf16, #tpu.memory_space<vmem>>, vector<32x384xbf16>
    %c0_15 = arith.constant 0 : index
    %c0_16 = arith.constant 0 : index
    %c0_17 = arith.constant 0 : index
    %13 = vector.load %arg3[%c0_15, %c0_16, %c0_17] : memref<3x384x128xbf16, #tpu.memory_space<vmem>>, vector<1x384x128xbf16>
    %14 = vector.shape_cast %13 : vector<1x384x128xbf16> to vector<384x128xbf16>
    %cst = arith.constant dense<0.000000e+00> : vector<32x128xf32>
    %15 = tpu.matmul %12, %14, %cst {dimension_numbers = #tpu.dot_dimension_numbers<[1], [0], [0], [1], [0, 0, 1, 1], [], []>} : vector<32x384xbf16>, vector<384x128xbf16>, vector<32x128xf32> -> vector<32x128xf32>
    %c0_18 = arith.constant 0 : index
    %c0_19 = arith.constant 0 : index
    %16 = vector.load %arg9[%c0_18, %c0_19] : memref<32x128xf32, #tpu.memory_space<vmem>>, vector<32x128xf32>
    tpu.vector_store %arg9[%c0_18, %c0_19], %15 {strides = array<i32>} : memref<32x128xf32, #tpu.memory_space<vmem>>, vector<32x128xf32>,
    %c8 = arith.constant 8 : index
    %c0_20 = arith.constant 0 : index
    %17 = vector.load %arg8[%c8, %c0_20] : memref<48x384xbf16, #tpu.memory_space<vmem>>, vector<32x384xbf16>
    %c1_21 = arith.constant 1 : index
    %c0_22 = arith.constant 0 : index
    %c0_23 = arith.constant 0 : index
    %18 = vector.load %arg3[%c1_21, %c0_22, %c0_23] : memref<3x384x128xbf16, #tpu.memory_space<vmem>>, vector<1x384x128xbf16>
    %19 = vector.shape_cast %18 : vector<1x384x128xbf16> to vector<384x128xbf16>
    %cst_24 = arith.constant dense<0.000000e+00> : vector<32x128xf32>
    %20 = tpu.matmul %17, %19, %cst_24 {dimension_numbers = #tpu.dot_dimension_numbers<[1], [0], [0], [1], [0, 0, 1, 1], [], []>} : vector<32x384xbf16>, vector<384x128xbf16>, vector<32x128xf32> -> vector<32x128xf32>
    %c0_25 = arith.constant 0 : index
    %c0_26 = arith.constant 0 : index
    %21 = vector.load %arg9[%c0_25, %c0_26] : memref<32x128xf32, #tpu.memory_space<vmem>>, vector<32x128xf32>
    %22 = arith.addf %21, %20 : vector<32x128xf32>
    %c0_27 = arith.constant 0 : index
    %c0_28 = arith.constant 0 : index
    %23 = vector.load %arg9[%c0_27, %c0_28] : memref<32x128xf32, #tpu.memory_space<vmem>>, vector<32x128xf32>
    tpu.vector_store %arg9[%c0_27, %c0_28], %22 {strides = array<i32>} : memref<32x128xf32, #tpu.memory_space<vmem>>, vector<32x128xf32>,
    %c16 = arith.constant 16 : index
    %c0_29 = arith.constant 0 : index
    %24 = vector.load %arg8[%c16, %c0_29] : memref<48x384xbf16, #tpu.memory_space<vmem>>, vector<32x384xbf16>
    %c2_30 = arith.constant 2 : index
    %c0_31 = arith.constant 0 : index
    %c0_32 = arith.constant 0 : index
    %25 = vector.load %arg3[%c2_30, %c0_31, %c0_32] : memref<3x384x128xbf16, #tpu.memory_space<vmem>>, vector<1x384x128xbf16>
    %26 = vector.shape_cast %25 : vector<1x384x128xbf16> to vector<384x128xbf16>
    %cst_33 = arith.constant dense<0.000000e+00> : vector<32x128xf32>
    %27 = tpu.matmul %24, %26, %cst_33 {dimension_numbers = #tpu.dot_dimension_numbers<[1], [0], [0], [1], [0, 0, 1, 1], [], []>} : vector<32x384xbf16>, vector<384x128xbf16>, vector<32x128xf32> -> vector<32x128xf32>
    %c0_34 = arith.constant 0 : index
    %c0_35 = arith.constant 0 : index
    %28 = vector.load %arg9[%c0_34, %c0_35] : memref<32x128xf32, #tpu.memory_space<vmem>>, vector<32x128xf32>
    %29 = arith.addf %28, %27 : vector<32x128xf32>
    %c0_36 = arith.constant 0 : index
    %c0_37 = arith.constant 0 : index
    %30 = vector.load %arg9[%c0_36, %c0_37] : memref<32x128xf32, #tpu.memory_space<vmem>>, vector<32x128xf32>
    tpu.vector_store %arg9[%c0_36, %c0_37], %29 {strides = array<i32>} : memref<32x128xf32, #tpu.memory_space<vmem>>, vector<32x128xf32>,
    %c0_38 = arith.constant 0 : index
    %c0_39 = arith.constant 0 : index
    %31 = vector.load %arg9[%c0_38, %c0_39] : memref<32x128xf32, #tpu.memory_space<vmem>>, vector<32x128xf32>
    %c0_40 = arith.constant 0 : index
    %c0_41 = arith.constant 0 : index
    %32 = vector.load %arg4[%c0_40, %c0_41] : memref<1x128xf32, #tpu.memory_space<vmem>>, vector<1x128xf32>
    %33 = vector.broadcast %32 : vector<1x128xf32> to vector<32x128xf32>
    %34 = arith.addf %31, %33 : vector<32x128xf32>
    %35 = arith.truncf %34 : vector<32x128xf32> to vector<32x128xbf16>
    %c0_42 = arith.constant 0 : index
    %c0_43 = arith.constant 0 : index
    %36 = vector.load %arg5[%c0_42, %c0_43] : memref<128x128xbf16, #tpu.memory_space<vmem>>, vector<128x128xbf16>
    %cst_44 = arith.constant dense<0.000000e+00> : vector<32x128xf32>
    %37 = tpu.matmul %35, %36, %cst_44 {dimension_numbers = #tpu.dot_dimension_numbers<[1], [0], [0], [1], [0, 0, 1, 1], [], []>} : vector<32x128xbf16>, vector<128x128xbf16>, vector<32x128xf32> -> vector<32x128xf32>
    %c0_45 = arith.constant 0 : index
    %c0_46 = arith.constant 0 : index
    %38 = vector.load %arg6[%c0_45, %c0_46] : memref<1x128xf32, #tpu.memory_space<vmem>>, vector<1x128xf32>
    %39 = vector.broadcast %38 : vector<1x128xf32> to vector<32x128xf32>
    %40 = arith.addf %37, %39 : vector<32x128xf32>
    %41 = tpu.iota {dimensions = array<i32: 1>} : vector<32x128xi32>
    %c2_i32 = arith.constant 2 : i32
    %c0_i32 = arith.constant 0 : i32
    %42 = arith.cmpi eq, %c2_i32, %c0_i32 : i32
    %c1_i32 = arith.constant 1 : i32
    %43 = arith.select %42, %c1_i32, %c2_i32 : i32
    %44 = vector.broadcast %43 : i32 to vector<32x128xi32>
    %45 = arith.remsi %41, %44 : vector<32x128xi32>
    %c0_i32_47 = arith.constant 0 : i32
    %46 = vector.broadcast %c0_i32_47 : i32 to vector<32x128xi32>
    %47 = arith.cmpi ne, %45, %46 : vector<32x128xi32>
    %c0_i32_48 = arith.constant 0 : i32
    %48 = vector.broadcast %c0_i32_48 : i32 to vector<32x128xi32>
    %49 = arith.cmpi slt, %45, %48 : vector<32x128xi32>
    %c0_i32_49 = arith.constant 0 : i32
    %50 = arith.cmpi slt, %43, %c0_i32_49 : i32
    %51 = vector.broadcast %50 : i1 to vector<32x128xi1>
    %52 = vector.broadcast %51 : vector<32x128xi1> to vector<32x128xi1>
    %53 = arith.xori %49, %52 : vector<32x128xi1>
    %54 = arith.andi %53, %47 : vector<32x128xi1>
    %55 = vector.broadcast %43 : i32 to vector<32x128xi32>
    %56 = arith.addi %45, %55 : vector<32x128xi32>
    %57 = arith.select %54, %56, %45 : vector<32x128xi1>, vector<32x128xi32>
    %c0_i32_50 = arith.constant 0 : i32
    %58 = vector.broadcast %c0_i32_50 : i32 to vector<32x128xi32>
    %59 = arith.cmpi eq, %57, %58 : vector<32x128xi32>
    %c127_i32 = arith.constant 127 : i32
    %60 = tpu.dynamic_rotate %40 by %c127_i32 dim 1 : vector<32x128xf32>, i32 -> vector<32x128xf32>
    %c1_i32_51 = arith.constant 1 : i32
    %61 = tpu.dynamic_rotate %40 by %c1_i32_51 dim 1 : vector<32x128xf32>, i32 -> vector<32x128xf32>
    %62 = arith.select %59, %60, %61 : vector<32x128xi1>, vector<32x128xf32>
    %63 = arith.subf %62, %40 : vector<32x128xf32>
    %64 = math.exp %63 : vector<32x128xf32>
    %cst_52 = arith.constant 1.000000e+00 : f32
    %65 = vector.broadcast %cst_52 : f32 to vector<32x128xf32>
    %66 = arith.addf %65, %64 : vector<32x128xf32>
    %67 = tpu.reciprocal %66 {approx = true} : vector<32x128xf32> -> vector<32x128xf32>
    %c18_i32 = arith.constant 18 : i32
    %68 = vector.broadcast %c18_i32 : i32 to vector<32x128xi32>
    %69 = arith.cmpi slt, %41, %68 : vector<32x128xi32>
    %70 = arith.select %69, %67, %40 : vector<32x128xi1>, vector<32x128xf32>
    %c0_53 = arith.constant 0 : index
    %c0_54 = arith.constant 0 : index
    %c0_55 = arith.constant 0 : index
    %71 = vector.load %arg7[%c0_53, %c0_54, %c0_55] : memref<1x32x128xf32, #tpu.memory_space<vmem>>, vector<1x32x128xf32>
    %72 = vector.shape_cast %71 : vector<1x32x128xf32> to vector<32x128xf32>
    %73 = vector.shape_cast %70 : vector<32x128xf32> to vector<1x32x128xf32>
    tpu.vector_store %arg7[%c0_53, %c0_54, %c0_55], %73 {strides = array<i32>} : memref<1x32x128xf32, #tpu.memory_space<vmem>>, vector<1x32x128xf32>,
    return
  }
  func.func @transform_0(%arg0: i32, %arg1: i32) -> (i32, i32, i32, i32) {
    %c2_i32 = arith.constant 2 : i32
    %0 = arith.muli %arg0, %c2_i32 : i32
    %1 = arith.addi %0, %arg1 : i32
    %c0_i32 = arith.constant 0 : i32
    %c0_i32_0 = arith.constant 0 : i32
    %c0_i32_1 = arith.constant 0 : i32
    %c0_i32_2 = arith.constant 0 : i32
    return %1, %c0_i32, %c0_i32_0, %c0_i32_1 : i32, i32, i32, i32
  }
  func.func @transform_1(%arg0: i32, %arg1: i32) -> (i32, i32, i32) {
    %c0_i32 = arith.constant 0 : i32
    %c0_i32_0 = arith.constant 0 : i32
    %c0_i32_1 = arith.constant 0 : i32
    %c0_i32_2 = arith.constant 0 : i32
    return %c0_i32, %c0_i32_0, %c0_i32_1 : i32, i32, i32
  }
  func.func @transform_2(%arg0: i32, %arg1: i32) -> (i32, i32) {
    %c0_i32 = arith.constant 0 : i32
    %c0_i32_0 = arith.constant 0 : i32
    %c0_i32_1 = arith.constant 0 : i32
    return %c0_i32, %c0_i32_0 : i32, i32
  }
  func.func @transform_3(%arg0: i32, %arg1: i32) -> (i32, i32) {
    %c0_i32 = arith.constant 0 : i32
    %c0_i32_0 = arith.constant 0 : i32
    %c0_i32_1 = arith.constant 0 : i32
    return %c0_i32, %c0_i32_0 : i32, i32
  }
  func.func @transform_4(%arg0: i32, %arg1: i32) -> (i32, i32) {
    %c0_i32 = arith.constant 0 : i32
    %c0_i32_0 = arith.constant 0 : i32
    %c0_i32_1 = arith.constant 0 : i32
    return %c0_i32, %c0_i32_0 : i32, i32
  }
  func.func @transform_5(%arg0: i32, %arg1: i32) -> (i32, i32, i32) {
    %c0_i32 = arith.constant 0 : i32
    %c0_i32_0 = arith.constant 0 : i32
    return %arg0, %arg1, %c0_i32 : i32, i32, i32
  }
}

module attributes {stable_mosaic.version = 11 : i64} {
  func.func @_rpn_kernel(%arg0: i32, %arg1: i32, %arg2: memref<1x6x10x128xbf16, #tpu.memory_space<vmem>>, %arg3: memref<3x384x128xbf16, #tpu.memory_space<vmem>>, %arg4: memref<1x128xf32, #tpu.memory_space<vmem>>, %arg5: memref<128x128xbf16, #tpu.memory_space<vmem>>, %arg6: memref<1x128xf32, #tpu.memory_space<vmem>>, %arg7: memref<1x32x128xf32, #tpu.memory_space<vmem>>, %arg8: memref<48x384xbf16, #tpu.memory_space<vmem>>, %arg9: memref<32x128xf32, #tpu.memory_space<vmem>>) attributes {dimension_semantics = [#tpu.dimension_semantics<parallel>, #tpu.dimension_semantics<parallel>], iteration_bounds = array<i64: 2, 2>, scalar_prefetch = 0 : i64, scratch_operands = 2 : i64, tpu.core_type = #tpu.core_type<tc>, window_params = [{transform_indices = @transform_0, window_bounds = array<i64: 1, 6, 10, 128>}, {pipeline_mode = #tpu.pipeline_mode<synchronous>, transform_indices = @transform_1, window_bounds = array<i64: 3, 384, 128>}, {pipeline_mode = #tpu.pipeline_mode<synchronous>, transform_indices = @transform_2, window_bounds = array<i64: 1, 128>}, {pipeline_mode = #tpu.pipeline_mode<synchronous>, transform_indices = @transform_3, window_bounds = array<i64: 128, 128>}, {pipeline_mode = #tpu.pipeline_mode<synchronous>, transform_indices = @transform_4, window_bounds = array<i64: 1, 128>}, {transform_indices = @transform_5, window_bounds = array<i64: 1, 32, 128>}]} {
    %c0 = arith.constant 0 : index
    %c0_0 = arith.constant 0 : index
    %c0_1 = arith.constant 0 : index
    %c0_2 = arith.constant 0 : index
    %0 = vector.load %arg2[%c0, %c0_0, %c0_1, %c0_2] : memref<1x6x10x128xbf16, #tpu.memory_space<vmem>>, vector<1x6x8x128xbf16>
    %1 = vector.shape_cast %0 : vector<1x6x8x128xbf16> to vector<6x8x128xbf16>
    %2 = vector.shape_cast %1 : vector<6x8x128xbf16> to vector<48x128xbf16>
    %c0_3 = arith.constant 0 : index
    %c0_4 = arith.constant 0 : index
    %3 = vector.load %arg8[%c0_3, %c0_4] : memref<48x384xbf16, #tpu.memory_space<vmem>>, vector<48x128xbf16>
    tpu.vector_store %arg8[%c0_3, %c0_4], %2 {strides = array<i32>} : memref<48x384xbf16, #tpu.memory_space<vmem>>, vector<48x128xbf16>,
    %c0_5 = arith.constant 0 : index
    %c0_6 = arith.constant 0 : index
    %c1 = arith.constant 1 : index
    %c0_7 = arith.constant 0 : index
    %4 = vector.load %arg2[%c0_5, %c0_6, %c1, %c0_7] : memref<1x6x10x128xbf16, #tpu.memory_space<vmem>>, vector<1x6x8x128xbf16>
    %5 = vector.shape_cast %4 : vector<1x6x8x128xbf16> to vector<6x8x128xbf16>
    %6 = vector.shape_cast %5 : vector<6x8x128xbf16> to vector<48x128xbf16>
    %c0_8 = arith.constant 0 : index
    %c128 = arith.constant 128 : index
    %7 = vector.load %arg8[%c0_8, %c128] : memref<48x384xbf16, #tpu.memory_space<vmem>>, vector<48x128xbf16>
    tpu.vector_store %arg8[%c0_8, %c128], %6 {strides = array<i32>} : memref<48x384xbf16, #tpu.memory_space<vmem>>, vector<48x128xbf16>,
    %c0_9 = arith.constant 0 : index
    %c0_10 = arith.constant 0 : index
    %c2 = arith.constant 2 : index
    %c0_11 = arith.constant 0 : index
    %8 = vector.load %arg2[%c0_9, %c0_10, %c2, %c0_11] : memref<1x6x10x128xbf16, #tpu.memory_space<vmem>>, vector<1x6x8x128xbf16>
    %9 = vector.shape_cast %8 : vector<1x6x8x128xbf16> to vector<6x8x128xbf16>
    %10 = vector.shape_cast %9 : vector<6x8x128xbf16> to vector<48x128xbf16>
    %c0_12 = arith.constant 0 : index
    %c256 = arith.constant 256 : index
    %11 = vector.load %arg8[%c0_12, %c256] : memref<48x384xbf16, #tpu.memory_space<vmem>>, vector<48x128xbf16>
    tpu.vector_store %arg8[%c0_12, %c256], %10 {strides = array<i32>} : memref<48x384xbf16, #tpu.memory_space<vmem>>, vector<48x128xbf16>,
    %c0_13 = arith.constant 0 : index
    %c0_14 = arith.constant 0 : index
    %12 = vector.load %arg8[%c0_13, %c0_14] : memref<48x384xbf16, #tpu.memory_space<vmem>>, vector<32x384xbf16>
    %c0_15 = arith.constant 0 : index
    %c0_16 = arith.constant 0 : index
    %c0_17 = arith.constant 0 : index
    %13 = vector.load %arg3[%c0_15, %c0_16, %c0_17] : memref<3x384x128xbf16, #tpu.memory_space<vmem>>, vector<1x384x128xbf16>
    %14 = vector.shape_cast %13 : vector<1x384x128xbf16> to vector<384x128xbf16>
    %cst = arith.constant dense<0.000000e+00> : vector<32x128xf32>
    %15 = tpu.matmul %12, %14, %cst {dimension_numbers = #tpu.dot_dimension_numbers<[1], [0], [0], [1], [0, 0, 1, 1], [], []>} : vector<32x384xbf16>, vector<384x128xbf16>, vector<32x128xf32> -> vector<32x128xf32>
    %c0_18 = arith.constant 0 : index
    %c0_19 = arith.constant 0 : index
    %16 = vector.load %arg9[%c0_18, %c0_19] : memref<32x128xf32, #tpu.memory_space<vmem>>, vector<32x128xf32>
    tpu.vector_store %arg9[%c0_18, %c0_19], %15 {strides = array<i32>} : memref<32x128xf32, #tpu.memory_space<vmem>>, vector<32x128xf32>,
    %c8 = arith.constant 8 : index
    %c0_20 = arith.constant 0 : index
    %17 = vector.load %arg8[%c8, %c0_20] : memref<48x384xbf16, #tpu.memory_space<vmem>>, vector<32x384xbf16>
    %c1_21 = arith.constant 1 : index
    %c0_22 = arith.constant 0 : index
    %c0_23 = arith.constant 0 : index
    %18 = vector.load %arg3[%c1_21, %c0_22, %c0_23] : memref<3x384x128xbf16, #tpu.memory_space<vmem>>, vector<1x384x128xbf16>
    %19 = vector.shape_cast %18 : vector<1x384x128xbf16> to vector<384x128xbf16>
    %cst_24 = arith.constant dense<0.000000e+00> : vector<32x128xf32>
    %20 = tpu.matmul %17, %19, %cst_24 {dimension_numbers = #tpu.dot_dimension_numbers<[1], [0], [0], [1], [0, 0, 1, 1], [], []>} : vector<32x384xbf16>, vector<384x128xbf16>, vector<32x128xf32> -> vector<32x128xf32>
    %c0_25 = arith.constant 0 : index
    %c0_26 = arith.constant 0 : index
    %21 = vector.load %arg9[%c0_25, %c0_26] : memref<32x128xf32, #tpu.memory_space<vmem>>, vector<32x128xf32>
    %22 = arith.addf %21, %20 : vector<32x128xf32>
    %c0_27 = arith.constant 0 : index
    %c0_28 = arith.constant 0 : index
    %23 = vector.load %arg9[%c0_27, %c0_28] : memref<32x128xf32, #tpu.memory_space<vmem>>, vector<32x128xf32>
    tpu.vector_store %arg9[%c0_27, %c0_28], %22 {strides = array<i32>} : memref<32x128xf32, #tpu.memory_space<vmem>>, vector<32x128xf32>,
    %c16 = arith.constant 16 : index
    %c0_29 = arith.constant 0 : index
    %24 = vector.load %arg8[%c16, %c0_29] : memref<48x384xbf16, #tpu.memory_space<vmem>>, vector<32x384xbf16>
    %c2_30 = arith.constant 2 : index
    %c0_31 = arith.constant 0 : index
    %c0_32 = arith.constant 0 : index
    %25 = vector.load %arg3[%c2_30, %c0_31, %c0_32] : memref<3x384x128xbf16, #tpu.memory_space<vmem>>, vector<1x384x128xbf16>
    %26 = vector.shape_cast %25 : vector<1x384x128xbf16> to vector<384x128xbf16>
    %cst_33 = arith.constant dense<0.000000e+00> : vector<32x128xf32>
    %27 = tpu.matmul %24, %26, %cst_33 {dimension_numbers = #tpu.dot_dimension_numbers<[1], [0], [0], [1], [0, 0, 1, 1], [], []>} : vector<32x384xbf16>, vector<384x128xbf16>, vector<32x128xf32> -> vector<32x128xf32>
    %c0_34 = arith.constant 0 : index
    %c0_35 = arith.constant 0 : index
    %28 = vector.load %arg9[%c0_34, %c0_35] : memref<32x128xf32, #tpu.memory_space<vmem>>, vector<32x128xf32>
    %29 = arith.addf %28, %27 : vector<32x128xf32>
    %c0_36 = arith.constant 0 : index
    %c0_37 = arith.constant 0 : index
    %30 = vector.load %arg9[%c0_36, %c0_37] : memref<32x128xf32, #tpu.memory_space<vmem>>, vector<32x128xf32>
    tpu.vector_store %arg9[%c0_36, %c0_37], %29 {strides = array<i32>} : memref<32x128xf32, #tpu.memory_space<vmem>>, vector<32x128xf32>,
    %c0_38 = arith.constant 0 : index
    %c0_39 = arith.constant 0 : index
    %31 = vector.load %arg9[%c0_38, %c0_39] : memref<32x128xf32, #tpu.memory_space<vmem>>, vector<32x128xf32>
    %c0_40 = arith.constant 0 : index
    %c0_41 = arith.constant 0 : index
    %32 = vector.load %arg4[%c0_40, %c0_41] : memref<1x128xf32, #tpu.memory_space<vmem>>, vector<1x128xf32>
    %33 = vector.broadcast %32 : vector<1x128xf32> to vector<32x128xf32>
    %34 = arith.addf %31, %33 : vector<32x128xf32>
    %35 = arith.truncf %34 : vector<32x128xf32> to vector<32x128xbf16>
    %c0_42 = arith.constant 0 : index
    %c0_43 = arith.constant 0 : index
    %36 = vector.load %arg5[%c0_42, %c0_43] : memref<128x128xbf16, #tpu.memory_space<vmem>>, vector<128x128xbf16>
    %cst_44 = arith.constant dense<0.000000e+00> : vector<32x128xf32>
    %37 = tpu.matmul %35, %36, %cst_44 {dimension_numbers = #tpu.dot_dimension_numbers<[1], [0], [0], [1], [0, 0, 1, 1], [], []>} : vector<32x128xbf16>, vector<128x128xbf16>, vector<32x128xf32> -> vector<32x128xf32>
    %c0_45 = arith.constant 0 : index
    %c0_46 = arith.constant 0 : index
    %38 = vector.load %arg6[%c0_45, %c0_46] : memref<1x128xf32, #tpu.memory_space<vmem>>, vector<1x128xf32>
    %39 = vector.broadcast %38 : vector<1x128xf32> to vector<32x128xf32>
    %40 = arith.addf %37, %39 : vector<32x128xf32>
    %41 = tpu.iota {dimensions = array<i32: 1>} : vector<32x128xi32>
    %c2_i32 = arith.constant 2 : i32
    %c0_i32 = arith.constant 0 : i32
    %42 = arith.cmpi eq, %c2_i32, %c0_i32 : i32
    %c1_i32 = arith.constant 1 : i32
    %43 = arith.select %42, %c1_i32, %c2_i32 : i32
    %44 = vector.broadcast %43 : i32 to vector<32x128xi32>
    %45 = arith.remsi %41, %44 : vector<32x128xi32>
    %c0_i32_47 = arith.constant 0 : i32
    %46 = vector.broadcast %c0_i32_47 : i32 to vector<32x128xi32>
    %47 = arith.cmpi ne, %45, %46 : vector<32x128xi32>
    %c0_i32_48 = arith.constant 0 : i32
    %48 = vector.broadcast %c0_i32_48 : i32 to vector<32x128xi32>
    %49 = arith.cmpi slt, %45, %48 : vector<32x128xi32>
    %c0_i32_49 = arith.constant 0 : i32
    %50 = arith.cmpi slt, %43, %c0_i32_49 : i32
    %51 = vector.broadcast %50 : i1 to vector<32x128xi1>
    %52 = vector.broadcast %51 : vector<32x128xi1> to vector<32x128xi1>
    %53 = arith.xori %49, %52 : vector<32x128xi1>
    %54 = arith.andi %53, %47 : vector<32x128xi1>
    %55 = vector.broadcast %43 : i32 to vector<32x128xi32>
    %56 = arith.addi %45, %55 : vector<32x128xi32>
    %57 = arith.select %54, %56, %45 : vector<32x128xi1>, vector<32x128xi32>
    %c0_i32_50 = arith.constant 0 : i32
    %58 = vector.broadcast %c0_i32_50 : i32 to vector<32x128xi32>
    %59 = arith.cmpi eq, %57, %58 : vector<32x128xi32>
    %c127_i32 = arith.constant 127 : i32
    %60 = tpu.dynamic_rotate %40 by %c127_i32 dim 1 : vector<32x128xf32>, i32 -> vector<32x128xf32>
    %c1_i32_51 = arith.constant 1 : i32
    %61 = tpu.dynamic_rotate %40 by %c1_i32_51 dim 1 : vector<32x128xf32>, i32 -> vector<32x128xf32>
    %62 = arith.select %59, %60, %61 : vector<32x128xi1>, vector<32x128xf32>
    %63 = arith.subf %62, %40 : vector<32x128xf32>
    %64 = math.exp %63 : vector<32x128xf32>
    %cst_52 = arith.constant 1.000000e+00 : f32
    %65 = vector.broadcast %cst_52 : f32 to vector<32x128xf32>
    %66 = arith.addf %65, %64 : vector<32x128xf32>
    %67 = tpu.reciprocal %66 {approx = true} : vector<32x128xf32> -> vector<32x128xf32>
    %c18_i32 = arith.constant 18 : i32
    %68 = vector.broadcast %c18_i32 : i32 to vector<32x128xi32>
    %69 = arith.cmpi slt, %41, %68 : vector<32x128xi32>
    %70 = arith.select %69, %67, %40 : vector<32x128xi1>, vector<32x128xf32>
    %c0_53 = arith.constant 0 : index
    %c0_54 = arith.constant 0 : index
    %c0_55 = arith.constant 0 : index
    %71 = vector.load %arg7[%c0_53, %c0_54, %c0_55] : memref<1x32x128xf32, #tpu.memory_space<vmem>>, vector<1x32x128xf32>
    %72 = vector.shape_cast %71 : vector<1x32x128xf32> to vector<32x128xf32>
    %73 = vector.shape_cast %70 : vector<32x128xf32> to vector<1x32x128xf32>
    tpu.vector_store %arg7[%c0_53, %c0_54, %c0_55], %73 {strides = array<i32>} : memref<1x32x128xf32, #tpu.memory_space<vmem>>, vector<1x32x128xf32>,
    return
  }
  func.func @transform_0(%arg0: i32, %arg1: i32) -> (i32, i32, i32, i32) {
    %c2_i32 = arith.constant 2 : i32
    %0 = arith.muli %arg0, %c2_i32 : i32
    %1 = arith.addi %0, %arg1 : i32
    %c0_i32 = arith.constant 0 : i32
    %c0_i32_0 = arith.constant 0 : i32
    %c0_i32_1 = arith.constant 0 : i32
    %c0_i32_2 = arith.constant 0 : i32
    return %1, %c0_i32, %c0_i32_0, %c0_i32_1 : i32, i32, i32, i32
  }
  func.func @transform_1(%arg0: i32, %arg1: i32) -> (i32, i32, i32) {
    %c0_i32 = arith.constant 0 : i32
    %c0_i32_0 = arith.constant 0 : i32
    %c0_i32_1 = arith.constant 0 : i32
    %c0_i32_2 = arith.constant 0 : i32
    return %c0_i32, %c0_i32_0, %c0_i32_1 : i32, i32, i32
  }
  func.func @transform_2(%arg0: i32, %arg1: i32) -> (i32, i32) {
    %c0_i32 = arith.constant 0 : i32
    %c0_i32_0 = arith.constant 0 : i32
    %c0_i32_1 = arith.constant 0 : i32
    return %c0_i32, %c0_i32_0 : i32, i32
  }
  func.func @transform_3(%arg0: i32, %arg1: i32) -> (i32, i32) {
    %c0_i32 = arith.constant 0 : i32
    %c0_i32_0 = arith.constant 0 : i32
    %c0_i32_1 = arith.constant 0 : i32
    return %c0_i32, %c0_i32_0 : i32, i32
  }
  func.func @transform_4(%arg0: i32, %arg1: i32) -> (i32, i32) {
    %c0_i32 = arith.constant 0 : i32
    %c0_i32_0 = arith.constant 0 : i32
    %c0_i32_1 = arith.constant 0 : i32
    return %c0_i32, %c0_i32_0 : i32, i32
  }
  func.func @transform_5(%arg0: i32, %arg1: i32) -> (i32, i32, i32) {
    %c0_i32 = arith.constant 0 : i32
    %c0_i32_0 = arith.constant 0 : i32
    return %arg0, %arg1, %c0_i32 : i32, i32, i32
  }
}

</mosaic_0001>

<llo_original>
// kernel: tpu_custom_call.1
$region0: #{tpu_custom_call.1}
  #allocation0 [shape = 'u32[]', space=smem, size = 0x4, offset = 0x4, fixed_abs, tag = 'smem constant byte address 0x4 - core index']
  #allocation1 [shape = 'u32[144,128]{1,0:T(1,128)}', space=vmem, size = 0x12000, scoped, tag = 'internal scratch']
  #allocation2 [shape = 'bf16[48,384]{1,0:T(8,128)(2,1)}', space=vmem, size = 0x9000, scoped, tag = 'scratch operand']
  #allocation3 [shape = 'f32[32,128]{1,0:T(8,128)}', space=vmem, size = 0x4000, scoped, tag = 'scratch operand']
  %s0 = inlined_call_operand.vmem [shape: bf16[4,6,10,128], index: 0, kind: input, shape index: {}]
  %s1 = inlined_call_operand.hbm [shape: bf16[3,384,128], index: 1, kind: input, shape index: {}]
  %s2 = inlined_call_operand.vmem [shape: f32[1,128], index: 2, kind: input, shape index: {}]
  %s3 = inlined_call_operand.vmem [shape: bf16[128,128], index: 3, kind: input, shape index: {}]
  %s4 = inlined_call_operand.vmem [shape: f32[1,128], index: 4, kind: input, shape index: {}]
  %s5 = inlined_call_operand.hbm [shape: f32[2,64,128], index: 5, kind: output, shape index: {}]
  %s6 = sld [smem:[#allocation0]]
  $region57: #{tpu_custom_call.1} parent=0
    _
  %s8 = ssub.s32 1, %s6
  %s9 = scalar_select 0, %s8, %s6
  $region1: #{tpu_custom_call.1} parent=0
    #allocation4 [shape = 'u8[294912]{0}', space=vmem, size = 0x48000, scoped, tag = 'input window, operand 1, single buffered']
    #allocation5 [shape = 's32[2]{0}', space=sflag, size = 0x8, scoped, tag = 'scoped memory for tpu_custom_call.1']
    #allocation6 [shape = 's32[2]{0}', space=sflag, size = 0x8, scoped, tag = 'scoped memory for tpu_custom_call.1']
    #allocation7 [shape = 'u8[32768]{0}', space=vmem, size = 0x8000, scoped, tag = 'output window, operand 0']
    %10 = vsyncpa [#allocation5], 0
    %11 = vsyncpa [#allocation6], 0
    %s12 = scalar_lea.sflag [#allocation6], 1
    %13 = vsyncpa %s12, 0
    loop: start=0, step=1, limit=6
    $region2: #{tpu_custom_call.1} parent=1 // loop_pre_header
      _
    $region3: #{tpu_custom_call.1} parent=1 // loop_header
      %s15 = sphi 0, %s19
      %p16 = scmp.ge.s32.totalorder %s15, 6
      %s22 = sphi 0, %s34
      %s23 = sphi 0, %s30
      %s24 = sphi 0, %s22
      %s25 = sphi 0, %s23
      %s26 = sphi 0, %s24
      %s27 = sphi 0, %s25
      %s41 = sphi 0, %s43
      %s44 = sphi 0, %s41
      %s45 = sphi 0, %s44
      %s61 = sphi 0, %s45
      %s65 = sphi 0, %s65
      %s67 = sphi 0, %s65
      %s68 = sphi 0, %s67
      %s82 = sphi 0, %s68
      %s86 = sphi 0, %s86
      %s88 = sphi 0, %s86
      %s89 = sphi 0, %s88
      %s103 = sphi 0, %s89
      %s107 = sphi 0, %s107
      %s109 = sphi 0, %s107
      %s110 = sphi 0, %s109
      %s124 = sphi 0, %s110
      %s128 = sphi 0, %s128
      %s130 = sphi 0, %s128
      %s131 = sphi 0, %s130
      %s145 = sphi 0, %s131
      %s153 = sphi 0, %s155
      %s156 = sphi 0, %s153
      %s157 = sphi 0, %s156
      %s173 = sphi 0, %s157
    $region4: #{tpu_custom_call.1} parent=1 // loop_header_branch
      %18 = sbr.rel (%p16) target = $region8
    $region5: #{tpu_custom_call.1} parent=1 // loop_body
      %s20 = ssub.s32 %s15, 1
      %s21 = ssub.s32 %s15, 2
      %s28 = sadd.s32 1, %s23
      %p29 = scmp.ge.s32.totalorder %s28, 2
      %s30 = scalar_select %p29, 0, %s28
      %s31 = sadd.s32 1, %s22
      %s32 = scalar_select %p29, %s31, %s22
      %p33 = scmp.ge.s32.totalorder %s32, 2
      %s34 = scalar_select %p33, 0, %s32
      %s35 = smul.u32 %s22, 2
      %s36 = sadd.s32 %s35, %s23
      %s37 = smul.u32 %s34, 2
      %s38 = sadd.s32 %s37, %s30
      %s39 = ssub.s32 %s36, %s38
      %p40 = scmp.eq.s32.totalorder %s39, 0
      %s42 = sadd.s32 %s41, 1
      %s43 = scalar_select %p40, %s41, %s42
      %p46 = pneg %p40
      %p47 = scmp.eq.s32.totalorder %s15, 3
      %p48 = por %p46, %p47
      %p49 = scmp.ne.s32.totalorder %s41, %s44
      %p50 = scmp.eq.s32.totalorder %s15, 0
      %p51 = por %p49, %p50
      %p52 = scmp.ne.s32.totalorder %s41, %s44
      %p53 = scmp.eq.s32.totalorder %s20, 3
      %p54 = por %p52, %p53
      %p55 = scmp.ne.s32.totalorder %s44, %s45
      %p56 = scmp.eq.s32.totalorder %s20, 0
      %p57 = por %p55, %p56
      %p58 = scmp.ne.s32.totalorder %s44, %s45
      %p59 = scmp.eq.s32.totalorder %s21, 3
      %p60 = por %p58, %p59
      %p62 = scmp.ne.s32.totalorder %s45, %s61
      %p63 = scmp.eq.s32.totalorder %s21, 0
      %p64 = por %p62, %p63
      %s66 = sadd.s32 %s65, 1
      %p69 = scmp.eq.s32.totalorder %s15, 3
      %p70 = scmp.ne.s32.totalorder %s65, %s67
      %p71 = scmp.eq.s32.totalorder %s15, 0
      %p72 = por %p70, %p71
      %p73 = scmp.ne.s32.totalorder %s65, %s67
      %p74 = scmp.eq.s32.totalorder %s20, 3
      %p75 = por %p73, %p74
      %p76 = scmp.ne.s32.totalorder %s67, %s68
      %p77 = scmp.eq.s32.totalorder %s20, 0
      %p78 = por %p76, %p77
      %p79 = scmp.ne.s32.totalorder %s67, %s68
      %p80 = scmp.eq.s32.totalorder %s21, 3
      %p81 = por %p79, %p80
      %p83 = scmp.ne.s32.totalorder %s68, %s82
      %p84 = scmp.eq.s32.totalorder %s21, 0
      %p85 = por %p83, %p84
      %s87 = sadd.s32 %s86, 1
      %p90 = scmp.eq.s32.totalorder %s15, 3
      %p91 = scmp.ne.s32.totalorder %s86, %s88
      %p92 = scmp.eq.s32.totalorder %s15, 0
      %p93 = por %p91, %p92
      %p94 = scmp.ne.s32.totalorder %s86, %s88
      %p95 = scmp.eq.s32.totalorder %s20, 3
      %p96 = por %p94, %p95
      %p97 = scmp.ne.s32.totalorder %s88, %s89
      %p98 = scmp.eq.s32.totalorder %s20, 0
      %p99 = por %p97, %p98
      %p100 = scmp.ne.s32.totalorder %s88, %s89
      %p101 = scmp.eq.s32.totalorder %s21, 3
      %p102 = por %p100, %p101
      %p104 = scmp.ne.s32.totalorder %s89, %s103
      %p105 = scmp.eq.s32.totalorder %s21, 0
      %p106 = por %p104, %p105
      %s108 = sadd.s32 %s107, 1
      %p111 = scmp.eq.s32.totalorder %s15, 3
      %p112 = scmp.ne.s32.totalorder %s107, %s109
      %p113 = scmp.eq.s32.totalorder %s15, 0
      %p114 = por %p112, %p113
      %p115 = scmp.ne.s32.totalorder %s107, %s109
      %p116 = scmp.eq.s32.totalorder %s20, 3
      %p117 = por %p115, %p116
      %p118 = scmp.ne.s32.totalorder %s109, %s110
      %p119 = scmp.eq.s32.totalorder %s20, 0
      %p120 = por %p118, %p119
      %p121 = scmp.ne.s32.totalorder %s109, %s110
      %p122 = scmp.eq.s32.totalorder %s21, 3
      %p123 = por %p121, %p122
      %p125 = scmp.ne.s32.totalorder %s110, %s124
      %p126 = scmp.eq.s32.totalorder %s21, 0
      %p127 = por %p125, %p126
      %s129 = sadd.s32 %s128, 1
      %p132 = scmp.eq.s32.totalorder %s15, 3
      %p133 = scmp.ne.s32.totalorder %s128, %s130
      %p134 = scmp.eq.s32.totalorder %s15, 0
      %p135 = por %p133, %p134
      %p136 = scmp.ne.s32.totalorder %s128, %s130
      %p137 = scmp.eq.s32.totalorder %s20, 3
      %p138 = por %p136, %p137
      %p139 = scmp.ne.s32.totalorder %s130, %s131
      %p140 = scmp.eq.s32.totalorder %s20, 0
      %p141 = por %p139, %p140
      %p142 = scmp.ne.s32.totalorder %s130, %s131
      %p143 = scmp.eq.s32.totalorder %s21, 3
      %p144 = por %p142, %p143
      %p146 = scmp.ne.s32.totalorder %s131, %s145
      %p147 = scmp.eq.s32.totalorder %s21, 0
      %p148 = por %p146, %p147
      %s149 = ssub.s32 %s22, %s34
      %s150 = ssub.s32 %s23, %s30
      %s151 = sor.u32 %s149, %s150
      %p152 = scmp.eq.s32.totalorder %s151, 0
      %s154 = sadd.s32 %s153, 1
      %s155 = scalar_select %p152, %s153, %s154
      %p158 = pneg %p152
      %p159 = scmp.eq.s32.totalorder %s15, 3
      %p160 = por %p158, %p159
      %p161 = scmp.ne.s32.totalorder %s153, %s156
      %p162 = scmp.eq.s32.totalorder %s15, 0
      %p163 = por %p161, %p162
      %p164 = scmp.ne.s32.totalorder %s153, %s156
      %p165 = scmp.eq.s32.totalorder %s20, 3
      %p166 = por %p164, %p165
      %p167 = scmp.ne.s32.totalorder %s156, %s157
      %p168 = scmp.eq.s32.totalorder %s20, 0
      %p169 = por %p167, %p168
      %p170 = scmp.ne.s32.totalorder %s156, %s157
      %p171 = scmp.eq.s32.totalorder %s21, 3
      %p172 = por %p170, %p171
      %p174 = scmp.ne.s32.totalorder %s157, %s173
      %p175 = scmp.eq.s32.totalorder %s21, 0
      %p176 = por %p174, %p175
      %p177 = scmp.le.s32.totalorder 1, %s15
      %p178 = scmp.lt.s32.totalorder %s15, 5
      %p179 = pnand %p177, %p178
      %p180 = pneg %p179
      // Predicated region
      $region9: #{tpu_custom_call.1} parent=5 // pred_check
        _
      $region10: #{tpu_custom_call.1} parent=5 // pred_check_branch
        %182 = sbr.rel (%p179) target = $region12
      $region11: #{tpu_custom_call.1} parent=5 // pred_region
        %s183 = ssub.s32 %s15, 1
        // Predicated region
        $region13: #{tpu_custom_call.1} parent=11 // pred_check
          %p184 = pneg %p78
        $region14: #{tpu_custom_call.1} parent=11 // pred_check_branch
          %186 = sbr.rel (%p184) target = $region16
        $region15: #{tpu_custom_call.1} parent=11 // pred_region
          %s188 = ssub.s32 9216, 9216
          %189 = vsyncadd [#allocation5], %s188
          %s190 = sshll.u32 [#allocation4], 4
          %s191 = int_to_ptr.vmem [resolvable:$true] %s190
          %196 = dma.hbm_to_vmem [thread:$0]  %s1, 9216, %s191, [#allocation5], 64, 64, 4
        $region16: #{tpu_custom_call.1} parent=11 // pred_fallthru
          _
        // Predicated region
        $region17: #{tpu_custom_call.1} parent=11 // pred_check
          %p197 = pneg %p99
        $region18: #{tpu_custom_call.1} parent=11 // pred_check_branch
          %199 = sbr.rel (%p197) target = $region20
        $region19: #{tpu_custom_call.1} parent=11 // pred_region
          _
        $region20: #{tpu_custom_call.1} parent=11 // pred_fallthru
          _
        // Predicated region
        $region21: #{tpu_custom_call.1} parent=11 // pred_check
          %p200 = pneg %p120
        $region22: #{tpu_custom_call.1} parent=11 // pred_check_branch
          %202 = sbr.rel (%p200) target = $region24
        $region23: #{tpu_custom_call.1} parent=11 // pred_region
          _
        $region24: #{tpu_custom_call.1} parent=11 // pred_fallthru
          _
        // Predicated region
        $region25: #{tpu_custom_call.1} parent=11 // pred_check
          %p203 = pneg %p141
        $region26: #{tpu_custom_call.1} parent=11 // pred_check_branch
          %205 = sbr.rel (%p203) target = $region28
        $region27: #{tpu_custom_call.1} parent=11 // pred_region
          _
        $region28: #{tpu_custom_call.1} parent=11 // pred_fallthru
          _
      $region12: #{tpu_custom_call.1} parent=5 // pred_fallthru
        _
      %p206 = scmp.lt.s32.totalorder %s15, 4
      // Predicated region
      $region29: #{tpu_custom_call.1} parent=5 // pred_check
        %p207 = pneg %p206
      $region30: #{tpu_custom_call.1} parent=5 // pred_check_branch
        %209 = sbr.rel (%p207) target = $region32
      $region31: #{tpu_custom_call.1} parent=5 // pred_region
        // Predicated region
        $region33: #{tpu_custom_call.1} parent=31 // pred_check
          %p210 = pneg %p51
        $region34: #{tpu_custom_call.1} parent=31 // pred_check_branch
          %212 = sbr.rel (%p210) target = $region36
        $region35: #{tpu_custom_call.1} parent=31 // pred_region
          %s213 = smul.u32 %s22, 2
          %s214 = sadd.s32 %s213, %s23
          %p215 = scmp.lt.s32.totalorder %s214, 3
          %s216 = scalar_select %p215, %s214, 3
          %s217 = smul.addr %s216, 12
          %s218 = smul.addr %s217, 4
          %s219 = scalar_lea.vmem %s0, %s218
          %s220 = smul.u32 %s22, 2
          %s221 = sadd.s32 %s220, %s23
        $region36: #{tpu_custom_call.1} parent=31 // pred_fallthru
          _
      $region32: #{tpu_custom_call.1} parent=5 // pred_fallthru
        _
      %p222 = scmp.le.s32.totalorder 1, %s15
      %p223 = scmp.lt.s32.totalorder %s15, 5
      %p224 = pnand %p222, %p223
      %p225 = pneg %p224
      // Predicated region
      $region37: #{tpu_custom_call.1} parent=5 // pred_check
        _
      $region38: #{tpu_custom_call.1} parent=5 // pred_check_branch
        %227 = sbr.rel (%p224) target = $region40
      $region39: #{tpu_custom_call.1} parent=5 // pred_region
        %s228 = ssub.s32 %s15, 1
        // Predicated region
        $region41: #{tpu_custom_call.1} parent=39 // pred_check
          %p229 = pneg %p78
        $region42: #{tpu_custom_call.1} parent=39 // pred_check_branch
          %231 = sbr.rel (%p229) target = $region44
        $region43: #{tpu_custom_call.1} parent=39 // pred_region
          %232 = dma.done [#allocation5], 9216
        $region44: #{tpu_custom_call.1} parent=39 // pred_fallthru
          _
        %s233 = smul.u32 %s24, 2
        %s234 = sadd.s32 %s233, %s25
        %p235 = scmp.lt.s32.totalorder %s234, 3
        %s236 = scalar_select %p235, %s234, 3
        %s237 = smul.addr %s236, 12
        %s238 = smul.addr %s237, 4
        %s239 = scalar_lea.vmem %s0, %s238
        %p240 = pneg %p57
        %p241 = pneg %p54
        %p242 = pneg %p78
        %p243 = pneg %p75
        %p244 = pneg %p99
        %p245 = pneg %p96
        %p246 = pneg %p120
        %p247 = pneg %p117
        %p248 = pneg %p141
        %p249 = pneg %p138
        %p250 = pneg %p169
        %p251 = pneg %p166
        %s252 = sand.u32 %s156, 1
        %s253 = scalar_lea.sflag [#allocation6], %s252
        %s254 = sand.u32 %s156, 1
        %s255 = smul.addr %s254, 32
        %s256 = scalar_lea.vmem [#allocation7], %s255
        %s257 = smul.u32 %s24, 2
        %s258 = sadd.s32 %s257, %s25
        %p259 = scmp.lt.s32.totalorder %s258, 3
        %s260 = scalar_select %p259, %s258, 3
        %s261 = smul.addr %s260, 12
        %s262 = smul.addr %s261, 4
        %s263 = scalar_lea.vmem %s0, %s262
        %s264 = smul.u32 %s24, 2
        %s265 = sadd.s32 %s264, %s25
        %s266 = smul.u32 4, %s25
        %v268 = vld [vmem:[%s263] sm:$0xf]
        %v269 = vld [vmem:[%s263 + $0x8] sm:$0xf]
        %v270 = vld [vmem:[%s263 + $0x10] sm:$0xf]
        %v271 = vld [vmem:[%s263 + $0x18] sm:$0xf]
        %v272 = vld [vmem:[%s263 + $0x20] sm:$0xf]
        %v273 = vld [vmem:[%s263 + $0x28] sm:$0xf]
        %274 = vst [vmem:[#allocation2] sm:$0xf] %v268
        %275 = vst [vmem:[#allocation2 + $0xc] sm:$0xf] %v269
        %276 = vst [vmem:[#allocation2 + $0x18] sm:$0xf] %v270
        %277 = vst [vmem:[#allocation2 + $0x24] sm:$0xf] %v271
        %278 = vst [vmem:[#allocation2 + $0x30] sm:$0xf] %v272
        %279 = vst [vmem:[#allocation2 + $0x3c] sm:$0xf] %v273
        %v280 = vld [vmem:[%s263] sm:$0xf]
        %v281 = vld [vmem:[%s263 + $0x4] sm:$0x1]
        %v282 = vld [vmem:[%s263 + $0x8] sm:$0xf]
        %v283 = vld [vmem:[%s263 + $0xc] sm:$0x1]
        %v284 = vld [vmem:[%s263 + $0x10] sm:$0xf]
        %v285 = vld [vmem:[%s263 + $0x14] sm:$0x1]
        %v286 = vld [vmem:[%s263 + $0x18] sm:$0xf]
        %v287 = vld [vmem:[%s263 + $0x1c] sm:$0x1]
        %v288 = vld [vmem:[%s263 + $0x20] sm:$0xf]
        %v289 = vld [vmem:[%s263 + $0x24] sm:$0x1]
        %v290 = vld [vmem:[%s263 + $0x28] sm:$0xf]
        %v291 = vld [vmem:[%s263 + $0x2c] sm:$0x1]
        %vm292 = vsmask.f32 3328
        %vm293 = vsmask.f32 7440
        %vm294 = vmor %vm292, %vm293
        %v296 = vshrl.u32 %v280, 16
        %v298 = vrot.slane %v296, 4
        %v299 = vshll.u32 %v280, 16
        %v301 = vrot.slane %v299, 5
        %v302 = vor.u32 %v298, %v301
        %v303 = vrot.slane %v302, 4
        %v305 = vshll.u32 %v281, 16
        %v307 = vrot.slane %v305, 5
        %v308 = vsel %vm294, %v303, %v307
        %v310 = vshrl.u32 %v282, 16
        %v312 = vrot.slane %v310, 4
        %v313 = vshll.u32 %v282, 16
        %v315 = vrot.slane %v313, 5
        %v316 = vor.u32 %v312, %v315
        %v317 = vrot.slane %v316, 4
        %v319 = vshll.u32 %v283, 16
        %v321 = vrot.slane %v319, 5
        %v322 = vsel %vm294, %v317, %v321
        %v324 = vshrl.u32 %v284, 16
        %v326 = vrot.slane %v324, 4
        %v327 = vshll.u32 %v284, 16
        %v329 = vrot.slane %v327, 5
        %v330 = vor.u32 %v326, %v329
        %v331 = vrot.slane %v330, 4
        %v333 = vshll.u32 %v285, 16
        %v335 = vrot.slane %v333, 5
        %v336 = vsel %vm294, %v331, %v335
        %v338 = vshrl.u32 %v286, 16
        %v340 = vrot.slane %v338, 4
        %v341 = vshll.u32 %v286, 16
        %v343 = vrot.slane %v341, 5
        %v344 = vor.u32 %v340, %v343
        %v345 = vrot.slane %v344, 4
        %v347 = vshll.u32 %v287, 16
        %v349 = vrot.slane %v347, 5
        %v350 = vsel %vm294, %v345, %v349
        %v352 = vshrl.u32 %v288, 16
        %v354 = vrot.slane %v352, 4
        %v355 = vshll.u32 %v288, 16
        %v357 = vrot.slane %v355, 5
        %v358 = vor.u32 %v354, %v357
        %v359 = vrot.slane %v358, 4
        %v361 = vshll.u32 %v289, 16
        %v363 = vrot.slane %v361, 5
        %v364 = vsel %vm294, %v359, %v363
        %v366 = vshrl.u32 %v290, 16
        %v368 = vrot.slane %v366, 4
        %v369 = vshll.u32 %v290, 16
        %v371 = vrot.slane %v369, 5
        %v372 = vor.u32 %v368, %v371
        %v373 = vrot.slane %v372, 4
        %v375 = vshll.u32 %v291, 16
        %v377 = vrot.slane %v375, 5
        %v378 = vsel %vm294, %v373, %v377
        %385 = vst [vmem:[#allocation2 + $0x4] sm:$0xf] %v308
        %386 = vst [vmem:[#allocation2 + $0x10] sm:$0xf] %v322
        %387 = vst [vmem:[#allocation2 + $0x1c] sm:$0xf] %v336
        %388 = vst [vmem:[#allocation2 + $0x28] sm:$0xf] %v350
        %389 = vst [vmem:[#allocation2 + $0x34] sm:$0xf] %v364
        %390 = vst [vmem:[#allocation2 + $0x40] sm:$0xf] %v378
        %v391 = vld [vmem:[%s263] sm:$0xe]
        %v392 = vld [vmem:[%s263 + $0x4] sm:$0x1]
        %v393 = vld [vmem:[%s263 + $0x8] sm:$0xe]
        %v394 = vld [vmem:[%s263 + $0xc] sm:$0x1]
        %v395 = vld [vmem:[%s263 + $0x10] sm:$0xe]
        %v396 = vld [vmem:[%s263 + $0x14] sm:$0x1]
        %v397 = vld [vmem:[%s263 + $0x18] sm:$0xe]
        %v398 = vld [vmem:[%s263 + $0x1c] sm:$0x1]
        %v399 = vld [vmem:[%s263 + $0x20] sm:$0xe]
        %v400 = vld [vmem:[%s263 + $0x24] sm:$0x1]
        %v401 = vld [vmem:[%s263 + $0x28] sm:$0xe]
        %v402 = vld [vmem:[%s263 + $0x2c] sm:$0x1]
        %vm415 = vcmask 1042432
        %vm416 = vcmask 1046532
        %vm417 = vmor %vm415, %vm416
        %v418 = vrot.slane %v391, 5
        %v419 = vrot.slane %v418, 4
        %v420 = vrot.slane %v392, 5
        %v421 = vsel %vm417, %v419, %v420
        %v422 = vrot.slane %v393, 5
        %v423 = vrot.slane %v422, 4
        %v424 = vrot.slane %v394, 5
        %v425 = vsel %vm417, %v423, %v424
        %v426 = vrot.slane %v395, 5
        %v427 = vrot.slane %v426, 4
        %v428 = vrot.slane %v396, 5
        %v429 = vsel %vm417, %v427, %v428
        %v430 = vrot.slane %v397, 5
        %v431 = vrot.slane %v430, 4
        %v432 = vrot.slane %v398, 5
        %v433 = vsel %vm417, %v431, %v432
        %v434 = vrot.slane %v399, 5
        %v435 = vrot.slane %v434, 4
        %v436 = vrot.slane %v400, 5
        %v437 = vsel %vm417, %v435, %v436
        %v438 = vrot.slane %v401, 5
        %v439 = vrot.slane %v438, 4
        %v440 = vrot.slane %v402, 5
        %v441 = vsel %vm417, %v439, %v440
        %448 = vst [vmem:[#allocation2 + $0x8] sm:$0xf] %v421
        %449 = vst [vmem:[#allocation2 + $0x14] sm:$0xf] %v425
        %450 = vst [vmem:[#allocation2 + $0x20] sm:$0xf] %v429
        %451 = vst [vmem:[#allocation2 + $0x2c] sm:$0xf] %v433
        %452 = vst [vmem:[#allocation2 + $0x38] sm:$0xf] %v437
        %453 = vst [vmem:[#allocation2 + $0x44] sm:$0xf] %v441
        %v454 = vld [vmem:[#allocation2] sm:$0xff]
        %v455 = vld [vmem:[#allocation2 + $0x8] sm:$0xf]
        %v456 = vld [vmem:[#allocation2 + $0xc] sm:$0xff]
        %v457 = vld [vmem:[#allocation2 + $0x14] sm:$0xf]
        %v458 = vld [vmem:[#allocation2 + $0x18] sm:$0xff]
        %v459 = vld [vmem:[#allocation2 + $0x20] sm:$0xf]
        %v460 = vld [vmem:[#allocation2 + $0x24] sm:$0xff]
        %v461 = vld [vmem:[#allocation2 + $0x2c] sm:$0xf]
        %v462 = vld [vmem:[#allocation4] sm:$0xf]
        %v463 = vld [vmem:[#allocation4 + $0x4] sm:$0xf]
        %v464 = vld [vmem:[#allocation4 + $0x8] sm:$0xf]
        %v465 = vld [vmem:[#allocation4 + $0xc] sm:$0xf]
        %v466 = vld [vmem:[#allocation4 + $0x10] sm:$0xf]
        %v467 = vld [vmem:[#allocation4 + $0x14] sm:$0xf]
        %v468 = vld [vmem:[#allocation4 + $0x18] sm:$0xf]
        %v469 = vld [vmem:[#allocation4 + $0x1c] sm:$0xf]
        %v470 = vld [vmem:[#allocation4 + $0x20] sm:$0xf]
        %v471 = vld [vmem:[#allocation4 + $0x24] sm:$0xf]
        %v472 = vld [vmem:[#allocation4 + $0x28] sm:$0xf]
        %v473 = vld [vmem:[#allocation4 + $0x2c] sm:$0xf]
        %v474 = vld [vmem:[#allocation4 + $0x30] sm:$0xf]
        %v475 = vld [vmem:[#allocation4 + $0x34] sm:$0xf]
        %v476 = vld [vmem:[#allocation4 + $0x38] sm:$0xf]
        %v477 = vld [vmem:[#allocation4 + $0x3c] sm:$0xf]
        %v478 = vld [vmem:[#allocation4 + $0x40] sm:$0xf]
        %v479 = vld [vmem:[#allocation4 + $0x44] sm:$0xf]
        %v480 = vld [vmem:[#allocation4 + $0x48] sm:$0xf]
        %v481 = vld [vmem:[#allocation4 + $0x4c] sm:$0xf]
        %v482 = vld [vmem:[#allocation4 + $0x50] sm:$0xf]
        %v483 = vld [vmem:[#allocation4 + $0x54] sm:$0xf]
        %v484 = vld [vmem:[#allocation4 + $0x58] sm:$0xf]
        %v485 = vld [vmem:[#allocation4 + $0x5c] sm:$0xf]
        %v486 = vld [vmem:[#allocation4 + $0x60] sm:$0xf]
        %v487 = vld [vmem:[#allocation4 + $0x64] sm:$0xf]
        %v488 = vld [vmem:[#allocation4 + $0x68] sm:$0xf]
        %v489 = vld [vmem:[#allocation4 + $0x6c] sm:$0xf]
        %v490 = vld [vmem:[#allocation4 + $0x70] sm:$0xf]
        %v491 = vld [vmem:[#allocation4 + $0x74] sm:$0xf]
        %v492 = vld [vmem:[#allocation4 + $0x78] sm:$0xf]
        %v493 = vld [vmem:[#allocation4 + $0x7c] sm:$0xf]
        %v494 = vld [vmem:[#allocation4 + $0x80] sm:$0xf]
        %v495 = vld [vmem:[#allocation4 + $0x84] sm:$0xf]
        %v496 = vld [vmem:[#allocation4 + $0x88] sm:$0xf]
        %v497 = vld [vmem:[#allocation4 + $0x8c] sm:$0xf]
        %v498 = vld [vmem:[#allocation4 + $0x90] sm:$0xf]
        %v499 = vld [vmem:[#allocation4 + $0x94] sm:$0xf]
        %v500 = vld [vmem:[#allocation4 + $0x98] sm:$0xf]
        %v501 = vld [vmem:[#allocation4 + $0x9c] sm:$0xf]
        %v502 = vld [vmem:[#allocation4 + $0xa0] sm:$0xf]
        %v503 = vld [vmem:[#allocation4 + $0xa4] sm:$0xf]
        %v504 = vld [vmem:[#allocation4 + $0xa8] sm:$0xf]
        %v505 = vld [vmem:[#allocation4 + $0xac] sm:$0xf]
        %v506 = vld [vmem:[#allocation4 + $0xb0] sm:$0xf]
        %v507 = vld [vmem:[#allocation4 + $0xb4] sm:$0xf]
        %v508 = vld [vmem:[#allocation4 + $0xb8] sm:$0xf]
        %v509 = vld [vmem:[#allocation4 + $0xbc] sm:$0xf]
        %v518 = vunpack.c.l.b16 %v454
        %v519 = vunpack.c.h.b16 %v454
        %v520 = vunpack.c.l.b16 %v455
        %v521 = vunpack.c.l.b16 %v456
        %v522 = vunpack.c.h.b16 %v456
        %v523 = vunpack.c.l.b16 %v457
        %v524 = vunpack.c.l.b16 %v458
        %v525 = vunpack.c.h.b16 %v458
        %v526 = vunpack.c.l.b16 %v459
        %v527 = vunpack.c.l.b16 %v460
        %v528 = vunpack.c.h.b16 %v460
        %v529 = vunpack.c.l.b16 %v461
        %v530 = vpack.c.b16 %v521, %v518
        %v531 = vpack.c.b16 %v522, %v519
        %v532 = vpack.c.b16 %v523, %v520
        %v533 = vpack.c.b16 %v527, %v524
        %v534 = vpack.c.b16 %v528, %v525
        %v535 = vpack.c.b16 %v529, %v526
        %v590 = vunpack.c.l.b16 %v462
        %v591 = vunpack.c.l.b16 %v463
        %v592 = vunpack.c.l.b16 %v464
        %v593 = vunpack.c.l.b16 %v465
        %v594 = vunpack.c.l.b16 %v466
        %v595 = vunpack.c.l.b16 %v467
        %v596 = vunpack.c.l.b16 %v468
        %v597 = vunpack.c.l.b16 %v469
        %v598 = vunpack.c.l.b16 %v470
        %v599 = vunpack.c.l.b16 %v471
        %v600 = vunpack.c.l.b16 %v472
        %v601 = vunpack.c.l.b16 %v473
        %v602 = vunpack.c.l.b16 %v474
        %v603 = vunpack.c.l.b16 %v475
        %v604 = vunpack.c.l.b16 %v476
        %v605 = vunpack.c.l.b16 %v477
        %v606 = vunpack.c.l.b16 %v478
        %v607 = vunpack.c.l.b16 %v479
        %v608 = vunpack.c.l.b16 %v480
        %v609 = vunpack.c.l.b16 %v481
        %v610 = vunpack.c.l.b16 %v482
        %v611 = vunpack.c.l.b16 %v483
        %v612 = vunpack.c.l.b16 %v484
        %v613 = vunpack.c.l.b16 %v485
        %v614 = vunpack.c.l.b16 %v486
        %v615 = vunpack.c.l.b16 %v487
        %v616 = vunpack.c.l.b16 %v488
        %v617 = vunpack.c.l.b16 %v489
        %v618 = vunpack.c.l.b16 %v490
        %v619 = vunpack.c.l.b16 %v491
        %v620 = vunpack.c.l.b16 %v492
        %v621 = vunpack.c.l.b16 %v493
        %v622 = vunpack.c.l.b16 %v494
        %v623 = vunpack.c.l.b16 %v495
        %v624 = vunpack.c.l.b16 %v496
        %v625 = vunpack.c.l.b16 %v497
        %v626 = vunpack.c.l.b16 %v498
        %v627 = vunpack.c.l.b16 %v499
        %v628 = vunpack.c.l.b16 %v500
        %v629 = vunpack.c.l.b16 %v501
        %v630 = vunpack.c.l.b16 %v502
        %v631 = vunpack.c.l.b16 %v503
        %v632 = vunpack.c.l.b16 %v504
        %v633 = vunpack.c.l.b16 %v505
        %v634 = vunpack.c.l.b16 %v506
        %v635 = vunpack.c.l.b16 %v507
        %v636 = vunpack.c.l.b16 %v508
        %v637 = vunpack.c.l.b16 %v509
        %v638 = vpack.c.b16 %v591, %v590
        %v639 = vpack.c.b16 %v593, %v592
        %v640 = vpack.c.b16 %v595, %v594
        %v641 = vpack.c.b16 %v597, %v596
        %v642 = vpack.c.b16 %v599, %v598
        %v643 = vpack.c.b16 %v601, %v600
        %v644 = vpack.c.b16 %v603, %v602
        %v645 = vpack.c.b16 %v605, %v604
        %v646 = vpack.c.b16 %v607, %v606
        %v647 = vpack.c.b16 %v609, %v608
        %v648 = vpack.c.b16 %v611, %v610
        %v649 = vpack.c.b16 %v613, %v612
        %v650 = vpack.c.b16 %v615, %v614
        %v651 = vpack.c.b16 %v617, %v616
        %v652 = vpack.c.b16 %v619, %v618
        %v653 = vpack.c.b16 %v621, %v620
        %v654 = vpack.c.b16 %v623, %v622
        %v655 = vpack.c.b16 %v625, %v624
        %v656 = vpack.c.b16 %v627, %v626
        %v657 = vpack.c.b16 %v629, %v628
        %v658 = vpack.c.b16 %v631, %v630
        %v659 = vpack.c.b16 %v633, %v632
        %v660 = vpack.c.b16 %v635, %v634
        %v661 = vpack.c.b16 %v637, %v636
        %686 = vmatprep.subr.bf16.mxu0 0
        %687 = vmatpush1.bf16.msra.mxu0 %v645
        %688 = vmatprep.subr.bf16.mxu0 0
        %689 = vmatpush1.bf16.msra.mxu0 %v644
        %690 = vmatprep.subr.bf16.mxu0 0
        %691 = vmatpush1.bf16.msra.mxu0 %v643
        %692 = vmatprep.subr.bf16.mxu0 0
        %693 = vmatpush1.bf16.msra.mxu0 %v642
        %694 = vmatprep.subr.bf16.mxu0 0
        %695 = vmatpush1.bf16.msra.mxu0 %v641
        %696 = vmatprep.subr.bf16.mxu0 0
        %697 = vmatpush1.bf16.msra.mxu0 %v640
        %698 = vmatprep.subr.bf16.mxu0 0
        %699 = vmatpush1.bf16.msra.mxu0 %v639
        %700 = vmatprep.subr.bf16.mxu0 0
        %701 = vmatpush1.bf16.msra.mxu0 %v638
        %702 = vmatprep.subr.bf16.mxu0 0
        %703 = vmatpush2.bf16.msra.mxu0 %v653
        %704 = vmatprep.subr.bf16.mxu0 0
        %705 = vmatpush2.bf16.msra.mxu0 %v652
        %706 = vmatprep.subr.bf16.mxu0 0
        %707 = vmatpush2.bf16.msra.mxu0 %v651
        %708 = vmatprep.subr.bf16.mxu0 0
        %709 = vmatpush2.bf16.msra.mxu0 %v650
        %710 = vmatprep.subr.bf16.mxu0 0
        %711 = vmatpush2.bf16.msra.mxu0 %v649
        %712 = vmatprep.subr.bf16.mxu0 0
        %713 = vmatpush2.bf16.msra.mxu0 %v648
        %714 = vmatprep.subr.bf16.mxu0 0
        %715 = vmatpush2.bf16.msra.mxu0 %v647
        %716 = vmatprep.subr.bf16.mxu0 0
        %717 = vmatpush2.bf16.msra.mxu0 %v646
        %718 = vmatprep.mubr.bf16.mxu0 %v531
        %719 = vmatmul.mubr.bf16.gmra.mxu0 %v530
        %v720 = vpop.f32.mrf.mxu0
        %v721 = vadd.f32 0.0, %v720
        %v722 = vpop.f32.mrf.mxu0
        %v723 = vpop.f32.mrf.mxu0
        %v724 = vadd.f32 0.0, %v723
        %v725 = vpop.f32.mrf.mxu0
        %726 = vmatprep.mubr.bf16.mxu0 %v534
        %727 = vmatmul.mubr.bf16.gmra.mxu0 %v533
        %v728 = vpop.f32.mrf.mxu0
        %v729 = vadd.f32 0.0, %v728
        %v730 = vpop.f32.mrf.mxu0
        %v731 = vpop.f32.mrf.mxu0
        %v732 = vadd.f32 0.0, %v731
        %v733 = vpop.f32.mrf.mxu0
        %734 = vdwg.mxu0
        %735 = vmatprep.subr.bf16.mxu0 0
        %736 = vmatpush1.bf16.msra.mxu0 %v661
        %737 = vmatprep.subr.bf16.mxu0 0
        %738 = vmatpush1.bf16.msra.mxu0 %v660
        %739 = vmatprep.subr.bf16.mxu0 0
        %740 = vmatpush1.bf16.msra.mxu0 %v659
        %741 = vmatprep.subr.bf16.mxu0 0
        %742 = vmatpush1.bf16.msra.mxu0 %v658
        %743 = vmatprep.subr.bf16.mxu0 0
        %744 = vmatpush1.bf16.msra.mxu0 %v657
        %745 = vmatprep.subr.bf16.mxu0 0
        %746 = vmatpush1.bf16.msra.mxu0 %v656
        %747 = vmatprep.subr.bf16.mxu0 0
        %748 = vmatpush1.bf16.msra.mxu0 %v655
        %749 = vmatprep.subr.bf16.mxu0 0
        %750 = vmatpush1.bf16.msra.mxu0 %v654
        %751 = vmatprep.subr.bf16.mxu0 0
        %752 = vmatpush2.bf16.msra.mxu0 0
        %753 = vmatprep.subr.bf16.mxu0 0
        %754 = vmatpush2.bf16.msra.mxu0 0
        %755 = vmatprep.subr.bf16.mxu0 0
        %756 = vmatpush2.bf16.msra.mxu0 0
        %757 = vmatprep.subr.bf16.mxu0 0
        %758 = vmatpush2.bf16.msra.mxu0 0
        %759 = vmatprep.subr.bf16.mxu0 0
        %760 = vmatpush2.bf16.msra.mxu0 0
        %761 = vmatprep.subr.bf16.mxu0 0
        %762 = vmatpush2.bf16.msra.mxu0 0
        %763 = vmatprep.subr.bf16.mxu0 0
        %764 = vmatpush2.bf16.msra.mxu0 0
        %765 = vmatprep.subr.bf16.mxu0 0
        %766 = vmatpush2.bf16.msra.mxu0 0
        %767 = vmatprep.mubr.bf16.mxu0 0
        %768 = vmatmul.mubr.bf16.gmra.mxu0 %v532
        %v769 = vpop.f32.mrf.mxu0
        %v770 = vadd.f32 %v721, %v769
        %v771 = vpop.f32.mrf.mxu0
        %v772 = vpop.f32.mrf.mxu0
        %v773 = vadd.f32 %v724, %v772
        %v774 = vpop.f32.mrf.mxu0
        %775 = vmatprep.mubr.bf16.mxu0 0
        %776 = vmatmul.mubr.bf16.gmra.mxu0 %v535
        %v777 = vpop.f32.mrf.mxu0
        %v778 = vadd.f32 %v729, %v777
        %v779 = vpop.f32.mrf.mxu0
        %v780 = vpop.f32.mrf.mxu0
        %v781 = vadd.f32 %v732, %v780
        %v782 = vpop.f32.mrf.mxu0
        %783 = vdwg.mxu0
        %784 = vst [vmem:[#allocation3] sm:$0xff] %v770
        %785 = vst [vmem:[#allocation3 + $0x8] sm:$0xff] %v773
        %786 = vst [vmem:[#allocation3 + $0x10] sm:$0xff] %v778
        %787 = vst [vmem:[#allocation3 + $0x18] sm:$0xff] %v781
        %v788 = vld [vmem:[#allocation2 + $0xc] sm:$0xff]
        %v789 = vld [vmem:[#allocation2 + $0x14] sm:$0xf]
        %v790 = vld [vmem:[#allocation2 + $0x18] sm:$0xff]
        %v791 = vld [vmem:[#allocation2 + $0x20] sm:$0xf]
        %v792 = vld [vmem:[#allocation2 + $0x24] sm:$0xff]
        %v793 = vld [vmem:[#allocation2 + $0x2c] sm:$0xf]
        %v794 = vld [vmem:[#allocation2 + $0x30] sm:$0xff]
        %v795 = vld [vmem:[#allocation2 + $0x38] sm:$0xf]
        %s796 = scalar_lea.vmem [#allocation4], 192
        %v797 = vld [vmem:[%s796] sm:$0xf]
        %v798 = vld [vmem:[%s796 + $0x4] sm:$0xf]
        %v799 = vld [vmem:[%s796 + $0x8] sm:$0xf]
        %v800 = vld [vmem:[%s796 + $0xc] sm:$0xf]
        %v801 = vld [vmem:[%s796 + $0x10] sm:$0xf]
        %v802 = vld [vmem:[%s796 + $0x14] sm:$0xf]
        %v803 = vld [vmem:[%s796 + $0x18] sm:$0xf]
        %v804 = vld [vmem:[%s796 + $0x1c] sm:$0xf]
        %v805 = vld [vmem:[%s796 + $0x20] sm:$0xf]
        %v806 = vld [vmem:[%s796 + $0x24] sm:$0xf]
        %v807 = vld [vmem:[%s796 + $0x28] sm:$0xf]
        %v808 = vld [vmem:[%s796 + $0x2c] sm:$0xf]
        %v809 = vld [vmem:[%s796 + $0x30] sm:$0xf]
        %v810 = vld [vmem:[%s796 + $0x34] sm:$0xf]
        %v811 = vld [vmem:[%s796 + $0x38] sm:$0xf]
        %v812 = vld [vmem:[%s796 + $0x3c] sm:$0xf]
        %v813 = vld [vmem:[%s796 + $0x40] sm:$0xf]
        %v814 = vld [vmem:[%s796 + $0x44] sm:$0xf]
        %v815 = vld [vmem:[%s796 + $0x48] sm:$0xf]
        %v816 = vld [vmem:[%s796 + $0x4c] sm:$0xf]
        %v817 = vld [vmem:[%s796 + $0x50] sm:$0xf]
        %v818 = vld [vmem:[%s796 + $0x54] sm:$0xf]
        %v819 = vld [vmem:[%s796 + $0x58] sm:$0xf]
        %v820 = vld [vmem:[%s796 + $0x5c] sm:$0xf]
        %v821 = vld [vmem:[%s796 + $0x60] sm:$0xf]
        %v822 = vld [vmem:[%s796 + $0x64] sm:$0xf]
        %v823 = vld [vmem:[%s796 + $0x68] sm:$0xf]
        %v824 = vld [vmem:[%s796 + $0x6c] sm:$0xf]
        %v825 = vld [vmem:[%s796 + $0x70] sm:$0xf]
        %v826 = vld [vmem:[%s796 + $0x74] sm:$0xf]
        %v827 = vld [vmem:[%s796 + $0x78] sm:$0xf]
        %v828 = vld [vmem:[%s796 + $0x7c] sm:$0xf]
        %v829 = vld [vmem:[%s796 + $0x80] sm:$0xf]
        %v830 = vld [vmem:[%s796 + $0x84] sm:$0xf]
        %v831 = vld [vmem:[%s796 + $0x88] sm:$0xf]
        %v832 = vld [vmem:[%s796 + $0x8c] sm:$0xf]
        %v833 = vld [vmem:[%s796 + $0x90] sm:$0xf]
        %v834 = vld [vmem:[%s796 + $0x94] sm:$0xf]
        %v835 = vld [vmem:[%s796 + $0x98] sm:$0xf]
        %v836 = vld [vmem:[%s796 + $0x9c] sm:$0xf]
        %v837 = vld [vmem:[%s796 + $0xa0] sm:$0xf]
        %v838 = vld [vmem:[%s796 + $0xa4] sm:$0xf]
        %v839 = vld [vmem:[%s796 + $0xa8] sm:$0xf]
        %v840 = vld [vmem:[%s796 + $0xac] sm:$0xf]
        %v841 = vld [vmem:[%s796 + $0xb0] sm:$0xf]
        %v842 = vld [vmem:[%s796 + $0xb4] sm:$0xf]
        %v843 = vld [vmem:[%s796 + $0xb8] sm:$0xf]
        %v844 = vld [vmem:[%s796 + $0xbc] sm:$0xf]
        %v853 = vunpack.c.l.b16 %v788
        %v854 = vunpack.c.h.b16 %v788
        %v855 = vunpack.c.l.b16 %v789
        %v856 = vunpack.c.l.b16 %v790
        %v857 = vunpack.c.h.b16 %v790
        %v858 = vunpack.c.l.b16 %v791
        %v859 = vunpack.c.l.b16 %v792
        %v860 = vunpack.c.h.b16 %v792
        %v861 = vunpack.c.l.b16 %v793
        %v862 = vunpack.c.l.b16 %v794
        %v863 = vunpack.c.h.b16 %v794
        %v864 = vunpack.c.l.b16 %v795
        %v865 = vpack.c.b16 %v856, %v853
        %v866 = vpack.c.b16 %v857, %v854
        %v867 = vpack.c.b16 %v858, %v855
        %v868 = vpack.c.b16 %v862, %v859
        %v869 = vpack.c.b16 %v863, %v860
        %v870 = vpack.c.b16 %v864, %v861
        %v925 = vunpack.c.l.b16 %v797
        %v926 = vunpack.c.l.b16 %v798
        %v927 = vunpack.c.l.b16 %v799
        %v928 = vunpack.c.l.b16 %v800
        %v929 = vunpack.c.l.b16 %v801
        %v930 = vunpack.c.l.b16 %v802
        %v931 = vunpack.c.l.b16 %v803
        %v932 = vunpack.c.l.b16 %v804
        %v933 = vunpack.c.l.b16 %v805
        %v934 = vunpack.c.l.b16 %v806
        %v935 = vunpack.c.l.b16 %v807
        %v936 = vunpack.c.l.b16 %v808
        %v937 = vunpack.c.l.b16 %v809
        %v938 = vunpack.c.l.b16 %v810
        %v939 = vunpack.c.l.b16 %v811
        %v940 = vunpack.c.l.b16 %v812
        %v941 = vunpack.c.l.b16 %v813
        %v942 = vunpack.c.l.b16 %v814
        %v943 = vunpack.c.l.b16 %v815
        %v944 = vunpack.c.l.b16 %v816
        %v945 = vunpack.c.l.b16 %v817
        %v946 = vunpack.c.l.b16 %v818
        %v947 = vunpack.c.l.b16 %v819
        %v948 = vunpack.c.l.b16 %v820
        %v949 = vunpack.c.l.b16 %v821
        %v950 = vunpack.c.l.b16 %v822
        %v951 = vunpack.c.l.b16 %v823
        %v952 = vunpack.c.l.b16 %v824
        %v953 = vunpack.c.l.b16 %v825
        %v954 = vunpack.c.l.b16 %v826
        %v955 = vunpack.c.l.b16 %v827
        %v956 = vunpack.c.l.b16 %v828
        %v957 = vunpack.c.l.b16 %v829
        %v958 = vunpack.c.l.b16 %v830
        %v959 = vunpack.c.l.b16 %v831
        %v960 = vunpack.c.l.b16 %v832
        %v961 = vunpack.c.l.b16 %v833
        %v962 = vunpack.c.l.b16 %v834
        %v963 = vunpack.c.l.b16 %v835
        %v964 = vunpack.c.l.b16 %v836
        %v965 = vunpack.c.l.b16 %v837
        %v966 = vunpack.c.l.b16 %v838
        %v967 = vunpack.c.l.b16 %v839
        %v968 = vunpack.c.l.b16 %v840
        %v969 = vunpack.c.l.b16 %v841
        %v970 = vunpack.c.l.b16 %v842
        %v971 = vunpack.c.l.b16 %v843
        %v972 = vunpack.c.l.b16 %v844
        %v973 = vpack.c.b16 %v926, %v925
        %v974 = vpack.c.b16 %v928, %v927
        %v975 = vpack.c.b16 %v930, %v929
        %v976 = vpack.c.b16 %v932, %v931
        %v977 = vpack.c.b16 %v934, %v933
        %v978 = vpack.c.b16 %v936, %v935
        %v979 = vpack.c.b16 %v938, %v937
        %v980 = vpack.c.b16 %v940, %v939
        %v981 = vpack.c.b16 %v942, %v941
        %v982 = vpack.c.b16 %v944, %v943
        %v983 = vpack.c.b16 %v946, %v945
        %v984 = vpack.c.b16 %v948, %v947
        %v985 = vpack.c.b16 %v950, %v949
        %v986 = vpack.c.b16 %v952, %v951
        %v987 = vpack.c.b16 %v954, %v953
        %v988 = vpack.c.b16 %v956, %v955
        %v989 = vpack.c.b16 %v958, %v957
        %v990 = vpack.c.b16 %v960, %v959
        %v991 = vpack.c.b16 %v962, %v961
        %v992 = vpack.c.b16 %v964, %v963
        %v993 = vpack.c.b16 %v966, %v965
        %v994 = vpack.c.b16 %v968, %v967
        %v995 = vpack.c.b16 %v970, %v969
        %v996 = vpack.c.b16 %v972, %v971
        %1021 = vmatprep.subr.bf16.mxu0 0
        %1022 = vmatpush1.bf16.msra.mxu0 %v980
        %1023 = vmatprep.subr.bf16.mxu0 0
        %1024 = vmatpush1.bf16.msra.mxu0 %v979
        %1025 = vmatprep.subr.bf16.mxu0 0
        %1026 = vmatpush1.bf16.msra.mxu0 %v978
        %1027 = vmatprep.subr.bf16.mxu0 0
        %1028 = vmatpush1.bf16.msra.mxu0 %v977
        %1029 = vmatprep.subr.bf16.mxu0 0
        %1030 = vmatpush1.bf16.msra.mxu0 %v976
        %1031 = vmatprep.subr.bf16.mxu0 0
        %1032 = vmatpush1.bf16.msra.mxu0 %v975
        %1033 = vmatprep.subr.bf16.mxu0 0
        %1034 = vmatpush1.bf16.msra.mxu0 %v974
        %1035 = vmatprep.subr.bf16.mxu0 0
        %1036 = vmatpush1.bf16.msra.mxu0 %v973
        %1037 = vmatprep.subr.bf16.mxu0 0
        %1038 = vmatpush2.bf16.msra.mxu0 %v988
        %1039 = vmatprep.subr.bf16.mxu0 0
        %1040 = vmatpush2.bf16.msra.mxu0 %v987
        %1041 = vmatprep.subr.bf16.mxu0 0
        %1042 = vmatpush2.bf16.msra.mxu0 %v986
        %1043 = vmatprep.subr.bf16.mxu0 0
        %1044 = vmatpush2.bf16.msra.mxu0 %v985
        %1045 = vmatprep.subr.bf16.mxu0 0
        %1046 = vmatpush2.bf16.msra.mxu0 %v984
        %1047 = vmatprep.subr.bf16.mxu0 0
        %1048 = vmatpush2.bf16.msra.mxu0 %v983
        %1049 = vmatprep.subr.bf16.mxu0 0
        %1050 = vmatpush2.bf16.msra.mxu0 %v982
        %1051 = vmatprep.subr.bf16.mxu0 0
        %1052 = vmatpush2.bf16.msra.mxu0 %v981
        %1053 = vmatprep.mubr.bf16.mxu0 %v866
        %1054 = vmatmul.mubr.bf16.gmra.mxu0 %v865
        %v1055 = vpop.f32.mrf.mxu0
        %v1056 = vadd.f32 0.0, %v1055
        %v1057 = vpop.f32.mrf.mxu0
        %v1058 = vpop.f32.mrf.mxu0
        %v1059 = vadd.f32 0.0, %v1058
        %v1060 = vpop.f32.mrf.mxu0
        %1061 = vmatprep.mubr.bf16.mxu0 %v869
        %1062 = vmatmul.mubr.bf16.gmra.mxu0 %v868
        %v1063 = vpop.f32.mrf.mxu0
        %v1064 = vadd.f32 0.0, %v1063
        %v1065 = vpop.f32.mrf.mxu0
        %v1066 = vpop.f32.mrf.mxu0
        %v1067 = vadd.f32 0.0, %v1066
        %v1068 = vpop.f32.mrf.mxu0
        %1069 = vdwg.mxu0
        %1070 = vmatprep.subr.bf16.mxu0 0
        %1071 = vmatpush1.bf16.msra.mxu0 %v996
        %1072 = vmatprep.subr.bf16.mxu0 0
        %1073 = vmatpush1.bf16.msra.mxu0 %v995
        %1074 = vmatprep.subr.bf16.mxu0 0
        %1075 = vmatpush1.bf16.msra.mxu0 %v994
        %1076 = vmatprep.subr.bf16.mxu0 0
        %1077 = vmatpush1.bf16.msra.mxu0 %v993
        %1078 = vmatprep.subr.bf16.mxu0 0
        %1079 = vmatpush1.bf16.msra.mxu0 %v992
        %1080 = vmatprep.subr.bf16.mxu0 0
        %1081 = vmatpush1.bf16.msra.mxu0 %v991
        %1082 = vmatprep.subr.bf16.mxu0 0
        %1083 = vmatpush1.bf16.msra.mxu0 %v990
        %1084 = vmatprep.subr.bf16.mxu0 0
        %1085 = vmatpush1.bf16.msra.mxu0 %v989
        %1086 = vmatprep.subr.bf16.mxu0 0
        %1087 = vmatpush2.bf16.msra.mxu0 0
        %1088 = vmatprep.subr.bf16.mxu0 0
        %1089 = vmatpush2.bf16.msra.mxu0 0
        %1090 = vmatprep.subr.bf16.mxu0 0
        %1091 = vmatpush2.bf16.msra.mxu0 0
        %1092 = vmatprep.subr.bf16.mxu0 0
        %1093 = vmatpush2.bf16.msra.mxu0 0
        %1094 = vmatprep.subr.bf16.mxu0 0
        %1095 = vmatpush2.bf16.msra.mxu0 0
        %1096 = vmatprep.subr.bf16.mxu0 0
        %1097 = vmatpush2.bf16.msra.mxu0 0
        %1098 = vmatprep.subr.bf16.mxu0 0
        %1099 = vmatpush2.bf16.msra.mxu0 0
        %1100 = vmatprep.subr.bf16.mxu0 0
        %1101 = vmatpush2.bf16.msra.mxu0 0
        %1102 = vmatprep.mubr.bf16.mxu0 0
        %1103 = vmatmul.mubr.bf16.gmra.mxu0 %v867
        %v1104 = vpop.f32.mrf.mxu0
        %v1105 = vadd.f32 %v1056, %v1104
        %v1106 = vpop.f32.mrf.mxu0
        %v1107 = vpop.f32.mrf.mxu0
        %v1108 = vadd.f32 %v1059, %v1107
        %v1109 = vpop.f32.mrf.mxu0
        %1110 = vmatprep.mubr.bf16.mxu0 0
        %1111 = vmatmul.mubr.bf16.gmra.mxu0 %v870
        %v1112 = vpop.f32.mrf.mxu0
        %v1113 = vadd.f32 %v1064, %v1112
        %v1114 = vpop.f32.mrf.mxu0
        %v1115 = vpop.f32.mrf.mxu0
        %v1116 = vadd.f32 %v1067, %v1115
        %v1117 = vpop.f32.mrf.mxu0
        %1118 = vdwg.mxu0
        %v1119 = vld [vmem:[#allocation3] sm:$0xff]
        %v1120 = vld [vmem:[#allocation3 + $0x8] sm:$0xff]
        %v1121 = vld [vmem:[#allocation3 + $0x10] sm:$0xff]
        %v1122 = vld [vmem:[#allocation3 + $0x18] sm:$0xff]
        %v1123 = vadd.f32 %v1119, %v1105
        %v1124 = vadd.f32 %v1120, %v1108
        %v1125 = vadd.f32 %v1121, %v1113
        %v1126 = vadd.f32 %v1122, %v1116
        %1127 = vst [vmem:[#allocation3] sm:$0xff] %v1123
        %1128 = vst [vmem:[#allocation3 + $0x8] sm:$0xff] %v1124
        %1129 = vst [vmem:[#allocation3 + $0x10] sm:$0xff] %v1125
        %1130 = vst [vmem:[#allocation3 + $0x18] sm:$0xff] %v1126
        %v1131 = vld [vmem:[#allocation2 + $0x18] sm:$0xff]
        %v1132 = vld [vmem:[#allocation2 + $0x20] sm:$0xf]
        %v1133 = vld [vmem:[#allocation2 + $0x24] sm:$0xff]
        %v1134 = vld [vmem:[#allocation2 + $0x2c] sm:$0xf]
        %v1135 = vld [vmem:[#allocation2 + $0x30] sm:$0xff]
        %v1136 = vld [vmem:[#allocation2 + $0x38] sm:$0xf]
        %v1137 = vld [vmem:[#allocation2 + $0x3c] sm:$0xff]
        %v1138 = vld [vmem:[#allocation2 + $0x44] sm:$0xf]
        %s1139 = scalar_lea.vmem [#allocation4], 384
        %v1140 = vld [vmem:[%s1139] sm:$0xf]
        %v1141 = vld [vmem:[%s1139 + $0x4] sm:$0xf]
        %v1142 = vld [vmem:[%s1139 + $0x8] sm:$0xf]
        %v1143 = vld [vmem:[%s1139 + $0xc] sm:$0xf]
        %v1144 = vld [vmem:[%s1139 + $0x10] sm:$0xf]
        %v1145 = vld [vmem:[%s1139 + $0x14] sm:$0xf]
        %v1146 = vld [vmem:[%s1139 + $0x18] sm:$0xf]
        %v1147 = vld [vmem:[%s1139 + $0x1c] sm:$0xf]
        %v1148 = vld [vmem:[%s1139 + $0x20] sm:$0xf]
        %v1149 = vld [vmem:[%s1139 + $0x24] sm:$0xf]
        %v1150 = vld [vmem:[%s1139 + $0x28] sm:$0xf]
        %v1151 = vld [vmem:[%s1139 + $0x2c] sm:$0xf]
        %v1152 = vld [vmem:[%s1139 + $0x30] sm:$0xf]
        %v1153 = vld [vmem:[%s1139 + $0x34] sm:$0xf]
        %v1154 = vld [vmem:[%s1139 + $0x38] sm:$0xf]
        %v1155 = vld [vmem:[%s1139 + $0x3c] sm:$0xf]
        %v1156 = vld [vmem:[%s1139 + $0x40] sm:$0xf]
        %v1157 = vld [vmem:[%s1139 + $0x44] sm:$0xf]
        %v1158 = vld [vmem:[%s1139 + $0x48] sm:$0xf]
        %v1159 = vld [vmem:[%s1139 + $0x4c] sm:$0xf]
        %v1160 = vld [vmem:[%s1139 + $0x50] sm:$0xf]
        %v1161 = vld [vmem:[%s1139 + $0x54] sm:$0xf]
        %v1162 = vld [vmem:[%s1139 + $0x58] sm:$0xf]
        %v1163 = vld [vmem:[%s1139 + $0x5c] sm:$0xf]
        %v1164 = vld [vmem:[%s1139 + $0x60] sm:$0xf]
        %v1165 = vld [vmem:[%s1139 + $0x64] sm:$0xf]
        %v1166 = vld [vmem:[%s1139 + $0x68] sm:$0xf]
        %v1167 = vld [vmem:[%s1139 + $0x6c] sm:$0xf]
        %v1168 = vld [vmem:[%s1139 + $0x70] sm:$0xf]
        %v1169 = vld [vmem:[%s1139 + $0x74] sm:$0xf]
        %v1170 = vld [vmem:[%s1139 + $0x78] sm:$0xf]
        %v1171 = vld [vmem:[%s1139 + $0x7c] sm:$0xf]
        %v1172 = vld [vmem:[%s1139 + $0x80] sm:$0xf]
        %v1173 = vld [vmem:[%s1139 + $0x84] sm:$0xf]
        %v1174 = vld [vmem:[%s1139 + $0x88] sm:$0xf]
        %v1175 = vld [vmem:[%s1139 + $0x8c] sm:$0xf]
        %v1176 = vld [vmem:[%s1139 + $0x90] sm:$0xf]
        %v1177 = vld [vmem:[%s1139 + $0x94] sm:$0xf]
        %v1178 = vld [vmem:[%s1139 + $0x98] sm:$0xf]
        %v1179 = vld [vmem:[%s1139 + $0x9c] sm:$0xf]
        %v1180 = vld [vmem:[%s1139 + $0xa0] sm:$0xf]
        %v1181 = vld [vmem:[%s1139 + $0xa4] sm:$0xf]
        %v1182 = vld [vmem:[%s1139 + $0xa8] sm:$0xf]
        %v1183 = vld [vmem:[%s1139 + $0xac] sm:$0xf]
        %v1184 = vld [vmem:[%s1139 + $0xb0] sm:$0xf]
        %v1185 = vld [vmem:[%s1139 + $0xb4] sm:$0xf]
        %v1186 = vld [vmem:[%s1139 + $0xb8] sm:$0xf]
        %v1187 = vld [vmem:[%s1139 + $0xbc] sm:$0xf]
        %v1196 = vunpack.c.l.b16 %v1131
        %v1197 = vunpack.c.h.b16 %v1131
        %v1198 = vunpack.c.l.b16 %v1132
        %v1199 = vunpack.c.l.b16 %v1133
        %v1200 = vunpack.c.h.b16 %v1133
        %v1201 = vunpack.c.l.b16 %v1134
        %v1202 = vunpack.c.l.b16 %v1135
        %v1203 = vunpack.c.h.b16 %v1135
        %v1204 = vunpack.c.l.b16 %v1136
        %v1205 = vunpack.c.l.b16 %v1137
        %v1206 = vunpack.c.h.b16 %v1137
        %v1207 = vunpack.c.l.b16 %v1138
        %v1208 = vpack.c.b16 %v1199, %v1196
        %v1209 = vpack.c.b16 %v1200, %v1197
        %v1210 = vpack.c.b16 %v1201, %v1198
        %v1211 = vpack.c.b16 %v1205, %v1202
        %v1212 = vpack.c.b16 %v1206, %v1203
        %v1213 = vpack.c.b16 %v1207, %v1204
        %v1268 = vunpack.c.l.b16 %v1140
        %v1269 = vunpack.c.l.b16 %v1141
        %v1270 = vunpack.c.l.b16 %v1142
        %v1271 = vunpack.c.l.b16 %v1143
        %v1272 = vunpack.c.l.b16 %v1144
        %v1273 = vunpack.c.l.b16 %v1145
        %v1274 = vunpack.c.l.b16 %v1146
        %v1275 = vunpack.c.l.b16 %v1147
        %v1276 = vunpack.c.l.b16 %v1148
        %v1277 = vunpack.c.l.b16 %v1149
        %v1278 = vunpack.c.l.b16 %v1150
        %v1279 = vunpack.c.l.b16 %v1151
        %v1280 = vunpack.c.l.b16 %v1152
        %v1281 = vunpack.c.l.b16 %v1153
        %v1282 = vunpack.c.l.b16 %v1154
        %v1283 = vunpack.c.l.b16 %v1155
        %v1284 = vunpack.c.l.b16 %v1156
        %v1285 = vunpack.c.l.b16 %v1157
        %v1286 = vunpack.c.l.b16 %v1158
        %v1287 = vunpack.c.l.b16 %v1159
        %v1288 = vunpack.c.l.b16 %v1160
        %v1289 = vunpack.c.l.b16 %v1161
        %v1290 = vunpack.c.l.b16 %v1162
        %v1291 = vunpack.c.l.b16 %v1163
        %v1292 = vunpack.c.l.b16 %v1164
        %v1293 = vunpack.c.l.b16 %v1165
        %v1294 = vunpack.c.l.b16 %v1166
        %v1295 = vunpack.c.l.b16 %v1167
        %v1296 = vunpack.c.l.b16 %v1168
        %v1297 = vunpack.c.l.b16 %v1169
        %v1298 = vunpack.c.l.b16 %v1170
        %v1299 = vunpack.c.l.b16 %v1171
        %v1300 = vunpack.c.l.b16 %v1172
        %v1301 = vunpack.c.l.b16 %v1173
        %v1302 = vunpack.c.l.b16 %v1174
        %v1303 = vunpack.c.l.b16 %v1175
        %v1304 = vunpack.c.l.b16 %v1176
        %v1305 = vunpack.c.l.b16 %v1177
        %v1306 = vunpack.c.l.b16 %v1178
        %v1307 = vunpack.c.l.b16 %v1179
        %v1308 = vunpack.c.l.b16 %v1180
        %v1309 = vunpack.c.l.b16 %v1181
        %v1310 = vunpack.c.l.b16 %v1182
        %v1311 = vunpack.c.l.b16 %v1183
        %v1312 = vunpack.c.l.b16 %v1184
        %v1313 = vunpack.c.l.b16 %v1185
        %v1314 = vunpack.c.l.b16 %v1186
        %v1315 = vunpack.c.l.b16 %v1187
        %v1316 = vpack.c.b16 %v1269, %v1268
        %v1317 = vpack.c.b16 %v1271, %v1270
        %v1318 = vpack.c.b16 %v1273, %v1272
        %v1319 = vpack.c.b16 %v1275, %v1274
        %v1320 = vpack.c.b16 %v1277, %v1276
        %v1321 = vpack.c.b16 %v1279, %v1278
        %v1322 = vpack.c.b16 %v1281, %v1280
        %v1323 = vpack.c.b16 %v1283, %v1282
        %v1324 = vpack.c.b16 %v1285, %v1284
        %v1325 = vpack.c.b16 %v1287, %v1286
        %v1326 = vpack.c.b16 %v1289, %v1288
        %v1327 = vpack.c.b16 %v1291, %v1290
        %v1328 = vpack.c.b16 %v1293, %v1292
        %v1329 = vpack.c.b16 %v1295, %v1294
        %v1330 = vpack.c.b16 %v1297, %v1296
        %v1331 = vpack.c.b16 %v1299, %v1298
        %v1332 = vpack.c.b16 %v1301, %v1300
        %v1333 = vpack.c.b16 %v1303, %v1302
        %v1334 = vpack.c.b16 %v1305, %v1304
        %v1335 = vpack.c.b16 %v1307, %v1306
        %v1336 = vpack.c.b16 %v1309, %v1308
        %v1337 = vpack.c.b16 %v1311, %v1310
        %v1338 = vpack.c.b16 %v1313, %v1312
        %v1339 = vpack.c.b16 %v1315, %v1314
        %1364 = vmatprep.subr.bf16.mxu0 0
        %1365 = vmatpush1.bf16.msra.mxu0 %v1323
        %1366 = vmatprep.subr.bf16.mxu0 0
        %1367 = vmatpush1.bf16.msra.mxu0 %v1322
        %1368 = vmatprep.subr.bf16.mxu0 0
        %1369 = vmatpush1.bf16.msra.mxu0 %v1321
        %1370 = vmatprep.subr.bf16.mxu0 0
        %1371 = vmatpush1.bf16.msra.mxu0 %v1320
        %1372 = vmatprep.subr.bf16.mxu0 0
        %1373 = vmatpush1.bf16.msra.mxu0 %v1319
        %1374 = vmatprep.subr.bf16.mxu0 0
        %1375 = vmatpush1.bf16.msra.mxu0 %v1318
        %1376 = vmatprep.subr.bf16.mxu0 0
        %1377 = vmatpush1.bf16.msra.mxu0 %v1317
        %1378 = vmatprep.subr.bf16.mxu0 0
        %1379 = vmatpush1.bf16.msra.mxu0 %v1316
        %1380 = vmatprep.subr.bf16.mxu0 0
        %1381 = vmatpush2.bf16.msra.mxu0 %v1331
        %1382 = vmatprep.subr.bf16.mxu0 0
        %1383 = vmatpush2.bf16.msra.mxu0 %v1330
        %1384 = vmatprep.subr.bf16.mxu0 0
        %1385 = vmatpush2.bf16.msra.mxu0 %v1329
        %1386 = vmatprep.subr.bf16.mxu0 0
        %1387 = vmatpush2.bf16.msra.mxu0 %v1328
        %1388 = vmatprep.subr.bf16.mxu0 0
        %1389 = vmatpush2.bf16.msra.mxu0 %v1327
        %1390 = vmatprep.subr.bf16.mxu0 0
        %1391 = vmatpush2.bf16.msra.mxu0 %v1326
        %1392 = vmatprep.subr.bf16.mxu0 0
        %1393 = vmatpush2.bf16.msra.mxu0 %v1325
        %1394 = vmatprep.subr.bf16.mxu0 0
        %1395 = vmatpush2.bf16.msra.mxu0 %v1324
        %1396 = vmatprep.mubr.bf16.mxu0 %v1209
        %1397 = vmatmul.mubr.bf16.gmra.mxu0 %v1208
        %v1398 = vpop.f32.mrf.mxu0
        %v1399 = vadd.f32 0.0, %v1398
        %v1400 = vpop.f32.mrf.mxu0
        %v1401 = vpop.f32.mrf.mxu0
        %v1402 = vadd.f32 0.0, %v1401
        %v1403 = vpop.f32.mrf.mxu0
        %1404 = vmatprep.mubr.bf16.mxu0 %v1212
        %1405 = vmatmul.mubr.bf16.gmra.mxu0 %v1211
        %v1406 = vpop.f32.mrf.mxu0
        %v1407 = vadd.f32 0.0, %v1406
        %v1408 = vpop.f32.mrf.mxu0
        %v1409 = vpop.f32.mrf.mxu0
        %v1410 = vadd.f32 0.0, %v1409
        %v1411 = vpop.f32.mrf.mxu0
        %1412 = vdwg.mxu0
        %1413 = vmatprep.subr.bf16.mxu0 0
        %1414 = vmatpush1.bf16.msra.mxu0 %v1339
        %1415 = vmatprep.subr.bf16.mxu0 0
        %1416 = vmatpush1.bf16.msra.mxu0 %v1338
        %1417 = vmatprep.subr.bf16.mxu0 0
        %1418 = vmatpush1.bf16.msra.mxu0 %v1337
        %1419 = vmatprep.subr.bf16.mxu0 0
        %1420 = vmatpush1.bf16.msra.mxu0 %v1336
        %1421 = vmatprep.subr.bf16.mxu0 0
        %1422 = vmatpush1.bf16.msra.mxu0 %v1335
        %1423 = vmatprep.subr.bf16.mxu0 0
        %1424 = vmatpush1.bf16.msra.mxu0 %v1334
        %1425 = vmatprep.subr.bf16.mxu0 0
        %1426 = vmatpush1.bf16.msra.mxu0 %v1333
        %1427 = vmatprep.subr.bf16.mxu0 0
        %1428 = vmatpush1.bf16.msra.mxu0 %v1332
        %1429 = vmatprep.subr.bf16.mxu0 0
        %1430 = vmatpush2.bf16.msra.mxu0 0
        %1431 = vmatprep.subr.bf16.mxu0 0
        %1432 = vmatpush2.bf16.msra.mxu0 0
        %1433 = vmatprep.subr.bf16.mxu0 0
        %1434 = vmatpush2.bf16.msra.mxu0 0
        %1435 = vmatprep.subr.bf16.mxu0 0
        %1436 = vmatpush2.bf16.msra.mxu0 0
        %1437 = vmatprep.subr.bf16.mxu0 0
        %1438 = vmatpush2.bf16.msra.mxu0 0
        %1439 = vmatprep.subr.bf16.mxu0 0
        %1440 = vmatpush2.bf16.msra.mxu0 0
        %1441 = vmatprep.subr.bf16.mxu0 0
        %1442 = vmatpush2.bf16.msra.mxu0 0
        %1443 = vmatprep.subr.bf16.mxu0 0
        %1444 = vmatpush2.bf16.msra.mxu0 0
        %1445 = vmatprep.mubr.bf16.mxu0 0
        %1446 = vmatmul.mubr.bf16.gmra.mxu0 %v1210
        %v1447 = vpop.f32.mrf.mxu0
        %v1448 = vadd.f32 %v1399, %v1447
        %v1449 = vpop.f32.mrf.mxu0
        %v1450 = vpop.f32.mrf.mxu0
        %v1451 = vadd.f32 %v1402, %v1450
        %v1452 = vpop.f32.mrf.mxu0
        %1453 = vmatprep.mubr.bf16.mxu0 0
        %1454 = vmatmul.mubr.bf16.gmra.mxu0 %v1213
        %v1455 = vpop.f32.mrf.mxu0
        %v1456 = vadd.f32 %v1407, %v1455
        %v1457 = vpop.f32.mrf.mxu0
        %v1458 = vpop.f32.mrf.mxu0
        %v1459 = vadd.f32 %v1410, %v1458
        %v1460 = vpop.f32.mrf.mxu0
        %1461 = vdwg.mxu0
        %v1462 = vld [vmem:[#allocation3] sm:$0xff]
        %v1463 = vld [vmem:[#allocation3 + $0x8] sm:$0xff]
        %v1464 = vld [vmem:[#allocation3 + $0x10] sm:$0xff]
        %v1465 = vld [vmem:[#allocation3 + $0x18] sm:$0xff]
        %v1466 = vadd.f32 %v1462, %v1448
        %v1467 = vadd.f32 %v1463, %v1451
        %v1468 = vadd.f32 %v1464, %v1456
        %v1469 = vadd.f32 %v1465, %v1459
        %1470 = vst [vmem:[#allocation3] sm:$0xff] %v1466
        %1471 = vst [vmem:[#allocation3 + $0x8] sm:$0xff] %v1467
        %1472 = vst [vmem:[#allocation3 + $0x10] sm:$0xff] %v1468
        %1473 = vst [vmem:[#allocation3 + $0x18] sm:$0xff] %v1469
        %v1474 = vld [vmem:[#allocation3] sm:$0xff]
        %v1475 = vld [vmem:[#allocation3 + $0x8] sm:$0xff]
        %v1476 = vld [vmem:[#allocation3 + $0x10] sm:$0xff]
        %v1477 = vld [vmem:[#allocation3 + $0x18] sm:$0xff]
        %v1478 = vld [vmem:[%s2] sm:$0x1]
        %v1480 = vlaneseq
        %v1481 = vshrl.u32 %v1480, 7
        %v1482 = vsub.s32 0, %v1481
        %v1483 = vrot.slane %v1478, %v1482
        %v1485 = vadd.f32 %v1474, %v1483
        %v1486 = vadd.f32 %v1475, %v1483
        %v1487 = vadd.f32 %v1476, %v1483
        %v1488 = vadd.f32 %v1477, %v1483
        %v1489 = vpack.c.bf16 %v1486, %v1485
        %v1490 = vpack.c.bf16 %v1488, %v1487
        %v1491 = vld [vmem:[%s3] sm:$0xf]
        %v1492 = vld [vmem:[%s3 + $0x4] sm:$0xf]
        %v1493 = vld [vmem:[%s3 + $0x8] sm:$0xf]
        %v1494 = vld [vmem:[%s3 + $0xc] sm:$0xf]
        %v1495 = vld [vmem:[%s3 + $0x10] sm:$0xf]
        %v1496 = vld [vmem:[%s3 + $0x14] sm:$0xf]
        %v1497 = vld [vmem:[%s3 + $0x18] sm:$0xf]
        %v1498 = vld [vmem:[%s3 + $0x1c] sm:$0xf]
        %v1499 = vld [vmem:[%s3 + $0x20] sm:$0xf]
        %v1500 = vld [vmem:[%s3 + $0x24] sm:$0xf]
        %v1501 = vld [vmem:[%s3 + $0x28] sm:$0xf]
        %v1502 = vld [vmem:[%s3 + $0x2c] sm:$0xf]
        %v1503 = vld [vmem:[%s3 + $0x30] sm:$0xf]
        %v1504 = vld [vmem:[%s3 + $0x34] sm:$0xf]
        %v1505 = vld [vmem:[%s3 + $0x38] sm:$0xf]
        %v1506 = vld [vmem:[%s3 + $0x3c] sm:$0xf]
        %v1507 = vld [vmem:[%s4] sm:$0x1]
        %v1509 = vlaneseq
        %v1510 = vshrl.u32 %v1509, 7
        %v1511 = vsub.s32 0, %v1510
        %v1512 = vrot.slane %v1507, %v1511
        %v1530 = vunpack.c.l.b16 %v1491
        %v1531 = vunpack.c.l.b16 %v1492
        %v1532 = vunpack.c.l.b16 %v1493
        %v1533 = vunpack.c.l.b16 %v1494
        %v1534 = vunpack.c.l.b16 %v1495
        %v1535 = vunpack.c.l.b16 %v1496
        %v1536 = vunpack.c.l.b16 %v1497
        %v1537 = vunpack.c.l.b16 %v1498
        %v1538 = vunpack.c.l.b16 %v1499
        %v1539 = vunpack.c.l.b16 %v1500
        %v1540 = vunpack.c.l.b16 %v1501
        %v1541 = vunpack.c.l.b16 %v1502
        %v1542 = vunpack.c.l.b16 %v1503
        %v1543 = vunpack.c.l.b16 %v1504
        %v1544 = vunpack.c.l.b16 %v1505
        %v1545 = vunpack.c.l.b16 %v1506
        %v1546 = vpack.c.b16 %v1531, %v1530
        %v1547 = vpack.c.b16 %v1533, %v1532
        %v1548 = vpack.c.b16 %v1535, %v1534
        %v1549 = vpack.c.b16 %v1537, %v1536
        %v1550 = vpack.c.b16 %v1539, %v1538
        %v1551 = vpack.c.b16 %v1541, %v1540
        %v1552 = vpack.c.b16 %v1543, %v1542
        %v1553 = vpack.c.b16 %v1545, %v1544
        %1562 = vmatprep.subr.bf16.mxu0 0
        %1563 = vmatpush1.bf16.msra.mxu0 %v1553
        %1564 = vmatprep.subr.bf16.mxu0 0
        %1565 = vmatpush1.bf16.msra.mxu0 %v1552
        %1566 = vmatprep.subr.bf16.mxu0 0
        %1567 = vmatpush1.bf16.msra.mxu0 %v1551
        %1568 = vmatprep.subr.bf16.mxu0 0
        %1569 = vmatpush1.bf16.msra.mxu0 %v1550
        %1570 = vmatprep.subr.bf16.mxu0 0
        %1571 = vmatpush1.bf16.msra.mxu0 %v1549
        %1572 = vmatprep.subr.bf16.mxu0 0
        %1573 = vmatpush1.bf16.msra.mxu0 %v1548
        %1574 = vmatprep.subr.bf16.mxu0 0
        %1575 = vmatpush1.bf16.msra.mxu0 %v1547
        %1576 = vmatprep.subr.bf16.mxu0 0
        %1577 = vmatpush1.bf16.msra.mxu0 %v1546
        %1578 = vmatprep.subr.bf16.mxu0 0
        %1579 = vmatpush2.bf16.msra.mxu0 0
        %1580 = vmatprep.subr.bf16.mxu0 0
        %1581 = vmatpush2.bf16.msra.mxu0 0
        %1582 = vmatprep.subr.bf16.mxu0 0
        %1583 = vmatpush2.bf16.msra.mxu0 0
        %1584 = vmatprep.subr.bf16.mxu0 0
        %1585 = vmatpush2.bf16.msra.mxu0 0
        %1586 = vmatprep.subr.bf16.mxu0 0
        %1587 = vmatpush2.bf16.msra.mxu0 0
        %1588 = vmatprep.subr.bf16.mxu0 0
        %1589 = vmatpush2.bf16.msra.mxu0 0
        %1590 = vmatprep.subr.bf16.mxu0 0
        %1591 = vmatpush2.bf16.msra.mxu0 0
        %1592 = vmatprep.subr.bf16.mxu0 0
        %1593 = vmatpush2.bf16.msra.mxu0 0
        %1594 = vmatprep.mubr.bf16.mxu0 0
        %1595 = vmatmul.mubr.bf16.gmra.mxu0 %v1489
        %v1596 = vpop.f32.mrf.mxu0
        %v1597 = vadd.f32 %v1512, %v1596
        %v1598 = vpop.f32.mrf.mxu0
        %v1599 = vpop.f32.mrf.mxu0
        %v1600 = vadd.f32 %v1512, %v1599
        %v1601 = vpop.f32.mrf.mxu0
        %1602 = vmatprep.mubr.bf16.mxu0 0
        %1603 = vmatmul.mubr.bf16.gmra.mxu0 %v1490
        %v1604 = vpop.f32.mrf.mxu0
        %v1605 = vadd.f32 %v1512, %v1604
        %v1606 = vpop.f32.mrf.mxu0
        %v1607 = vpop.f32.mrf.mxu0
        %v1608 = vadd.f32 %v1512, %v1607
        %v1609 = vpop.f32.mrf.mxu0
        %1610 = vdwg.mxu0
        %v1611 = vlaneseq
        %v1612 = vand.u32 %v1611, 127
        %vm1613 = vcmp.lt.s32.totalorder %v1612, 0
        %v1614 = vsub.s32 0, %v1612
        %v1615 = vsel %vm1613, %v1614, %v1612
        %v1616 = vshrl.u32 %v1615, 1
        %v1617 = vand.u32 %v1615, 1
        %v1618 = vsub.s32 0, %v1617
        %v1619 = vsel %vm1613, %v1618, %v1617
        %vm1620 = vcmp.ne.s32.totalorder %v1619, 0
        %vm1621 = vcmp.lt.s32.totalorder %v1619, 0
        %vm1622 = vmand %vm1621, %vm1620
        %v1623 = vadd.s32 %v1619, 2
        %v1624 = vsel %vm1622, %v1623, %v1619
        %vm1625 = vcmp.eq.s32.totalorder %v1624, 0
        %1626 = vrot.lane.b32.xlu0 %v1597, 127
        %v1627 = vpop.permute.xlu0 %1626
        %1628 = vrot.lane.b32.xlu0 %v1600, 127
        %v1629 = vpop.permute.xlu0 %1628
        %1630 = vrot.lane.b32.xlu0 %v1605, 127
        %v1631 = vpop.permute.xlu0 %1630
        %1632 = vrot.lane.b32.xlu0 %v1608, 127
        %v1633 = vpop.permute.xlu0 %1632
        %1634 = vrot.lane.b32.xlu0 %v1597, 1
        %v1635 = vpop.permute.xlu0 %1634
        %1636 = vrot.lane.b32.xlu0 %v1600, 1
        %v1637 = vpop.permute.xlu0 %1636
        %1638 = vrot.lane.b32.xlu0 %v1605, 1
        %v1639 = vpop.permute.xlu0 %1638
        %1640 = vrot.lane.b32.xlu0 %v1608, 1
        %v1641 = vpop.permute.xlu0 %1640
        %v1642 = vsel %vm1625, %v1627, %v1635
        %v1643 = vsel %vm1625, %v1629, %v1637
        %v1644 = vsel %vm1625, %v1631, %v1639
        %v1645 = vsel %vm1625, %v1633, %v1641
        %v1646 = vsub.f32 %v1642, %v1597
        %v1647 = vsub.f32 %v1643, %v1600
        %v1648 = vsub.f32 %v1644, %v1605
        %v1649 = vsub.f32 %v1645, %v1608
        %v1650 = vmul.f32 %v1646, 1.442695
        %v1651 = vpow.pop %v1650
        %v1652 = vmul.f32 %v1647, 1.442695
        %v1653 = vpow.pop %v1652
        %v1654 = vmul.f32 %v1648, 1.442695
        %v1655 = vpow.pop %v1654
        %v1656 = vmul.f32 %v1649, 1.442695
        %v1657 = vpow.pop %v1656
        %v1658 = vadd.f32 %v1651, 1.0
        %v1659 = vadd.f32 %v1653, 1.0
        %v1660 = vadd.f32 %v1655, 1.0
        %v1661 = vadd.f32 %v1657, 1.0
        %v1662 = vrcp.pop %v1658
        %v1663 = vrcp.pop %v1659
        %v1664 = vrcp.pop %v1660
        %v1665 = vrcp.pop %v1661
        %vm1666 = vcmp.lt.s32.totalorder %v1612, 18
        %v1667 = vsel %vm1666, %v1662, %v1597
        %v1668 = vsel %vm1666, %v1663, %v1600
        %v1669 = vsel %vm1666, %v1664, %v1605
        %v1670 = vsel %vm1666, %v1665, %v1608
        %1671 = vst [vmem:[%s256] sm:$0xff] %v1667
        %1672 = vst [vmem:[%s256 + $0x8] sm:$0xff] %v1668
        %1673 = vst [vmem:[%s256 + $0x10] sm:$0xff] %v1669
        %1674 = vst [vmem:[%s256 + $0x18] sm:$0xff] %v1670
        %s1675 = sand.u32 %s156, 1
        %s1676 = scalar_lea.sflag [#allocation6], %s1675
        %s1677 = sand.u32 %s156, 1
        %s1678 = smul.addr %s1677, 32
        %s1679 = scalar_lea.vmem [#allocation7], %s1678
        // Predicated region
        $region45: #{tpu_custom_call.1} parent=39 // pred_check
          %p1680 = pneg %p166
        $region46: #{tpu_custom_call.1} parent=39 // pred_check_branch
          %1682 = sbr.rel (%p1680) target = $region48
        $region47: #{tpu_custom_call.1} parent=39 // pred_region
          %s1683 = smul.u32 4, %s25
          %s1685 = ssub.s32 512, 512
          %1686 = vsyncadd %s1676, %s1685
          %s1687 = smul.addr %s24, 8
          %s1688 = sadd.s32 %s1683, %s1687
          %s1689 = smul.addr %s1688, 128
          %s1690 = scalar_lea.hbm %s5, %s1689
          %s1691 = sshll.u32 %s1679, 4
          %s1692 = int_to_ptr.vmem [resolvable:$true] %s1691
          %1697 = dma.vmem_to_hbm [thread:$0]  %s1692, 512, %s1690, %s1676, 128, 128, 8
        $region48: #{tpu_custom_call.1} parent=39 // pred_fallthru
          _
      $region40: #{tpu_custom_call.1} parent=5 // pred_fallthru
        _
      %p1698 = scmp.le.s32.totalorder 2, %s15
      // Predicated region
      $region49: #{tpu_custom_call.1} parent=5 // pred_check
        %p1699 = pneg %p1698
      $region50: #{tpu_custom_call.1} parent=5 // pred_check_branch
        %1701 = sbr.rel (%p1699) target = $region52
      $region51: #{tpu_custom_call.1} parent=5 // pred_region
        %s1702 = ssub.s32 %s15, 2
        // Predicated region
        $region53: #{tpu_custom_call.1} parent=51 // pred_check
          %p1703 = pneg %p172
        $region54: #{tpu_custom_call.1} parent=51 // pred_check_branch
          %1705 = sbr.rel (%p1703) target = $region56
        $region55: #{tpu_custom_call.1} parent=51 // pred_region
          %s1706 = sand.u32 %s157, 1
          %s1707 = scalar_lea.sflag [#allocation6], %s1706
          %s1708 = sand.u32 %s157, 1
          %s1709 = smul.addr %s1708, 32
          %s1710 = scalar_lea.vmem [#allocation7], %s1709
          %1711 = dma.done %s1707, 512
        $region56: #{tpu_custom_call.1} parent=51 // pred_fallthru
          _
      $region52: #{tpu_custom_call.1} parent=5 // pred_fallthru
        _
    $region6: #{tpu_custom_call.1} parent=1 // loop_footer
      %s19 = sadd.s32 1, %s15
    $region7: #{tpu_custom_call.1} parent=1 // loop_footer_branch
      %14 = sbr.rel target = $region3
    $region8: #{tpu_custom_call.1} parent=1 // loop_exit
      _
    %1712 = vsyncpa [#allocation5], 1
    %s1713 = scalar_lea.sflag [#allocation5], 1
    %1714 = vsyncpa %s1713, 1
    %1715 = vsyncpa [#allocation6], 1
    %s1716 = scalar_lea.sflag [#allocation6], 1
    %1717 = vsyncpa %s1716, 1

// kernel: tpu_custom_call.1
$region0: #{tpu_custom_call.1}
  #allocation0 [shape = 'u32[]', space=smem, size = 0x4, offset = 0x4, fixed_abs, tag = 'smem constant byte address 0x4 - core index']
  #allocation1 [shape = 'u32[144,128]{1,0:T(1,128)}', space=vmem, size = 0x12000, scoped, tag = 'internal scratch']
  #allocation2 [shape = 'bf16[48,384]{1,0:T(8,128)(2,1)}', space=vmem, size = 0x9000, scoped, tag = 'scratch operand']
  #allocation3 [shape = 'f32[32,128]{1,0:T(8,128)}', space=vmem, size = 0x4000, scoped, tag = 'scratch operand']
  %s0 = inlined_call_operand.vmem [shape: bf16[4,6,10,128], index: 0, kind: input, shape index: {}]
  %s1 = inlined_call_operand.hbm [shape: bf16[3,384,128], index: 1, kind: input, shape index: {}]
  %s2 = inlined_call_operand.vmem [shape: f32[1,128], index: 2, kind: input, shape index: {}]
  %s3 = inlined_call_operand.vmem [shape: bf16[128,128], index: 3, kind: input, shape index: {}]
  %s4 = inlined_call_operand.vmem [shape: f32[1,128], index: 4, kind: input, shape index: {}]
  %s5 = inlined_call_operand.hbm [shape: f32[2,64,128], index: 5, kind: output, shape index: {}]
  %s6 = sld [smem:[#allocation0]]
  $region57: #{tpu_custom_call.1} parent=0
    _
  %s8 = ssub.s32 1, %s6
  %s9 = scalar_select 0, %s8, %s6
  $region1: #{tpu_custom_call.1} parent=0
    #allocation4 [shape = 'u8[294912]{0}', space=vmem, size = 0x48000, scoped, tag = 'input window, operand 1, single buffered']
    #allocation5 [shape = 's32[2]{0}', space=sflag, size = 0x8, scoped, tag = 'scoped memory for tpu_custom_call.1']
    #allocation6 [shape = 's32[2]{0}', space=sflag, size = 0x8, scoped, tag = 'scoped memory for tpu_custom_call.1']
    #allocation7 [shape = 'u8[32768]{0}', space=vmem, size = 0x8000, scoped, tag = 'output window, operand 0']
    %10 = vsyncpa [#allocation5], 0
    %11 = vsyncpa [#allocation6], 0
    %s12 = scalar_lea.sflag [#allocation6], 1
    %13 = vsyncpa %s12, 0
    loop: start=0, step=1, limit=6
    $region2: #{tpu_custom_call.1} parent=1 // loop_pre_header
      _
    $region3: #{tpu_custom_call.1} parent=1 // loop_header
      %s15 = sphi 0, %s19
      %p16 = scmp.ge.s32.totalorder %s15, 6
      %s22 = sphi 0, %s34
      %s23 = sphi 0, %s30
      %s24 = sphi 0, %s22
      %s25 = sphi 0, %s23
      %s26 = sphi 0, %s24
      %s27 = sphi 0, %s25
      %s41 = sphi 0, %s43
      %s44 = sphi 0, %s41
      %s45 = sphi 0, %s44
      %s61 = sphi 0, %s45
      %s65 = sphi 0, %s65
      %s67 = sphi 0, %s65
      %s68 = sphi 0, %s67
      %s82 = sphi 0, %s68
      %s86 = sphi 0, %s86
      %s88 = sphi 0, %s86
      %s89 = sphi 0, %s88
      %s103 = sphi 0, %s89
      %s107 = sphi 0, %s107
      %s109 = sphi 0, %s107
      %s110 = sphi 0, %s109
      %s124 = sphi 0, %s110
      %s128 = sphi 0, %s128
      %s130 = sphi 0, %s128
      %s131 = sphi 0, %s130
      %s145 = sphi 0, %s131
      %s153 = sphi 0, %s155
      %s156 = sphi 0, %s153
      %s157 = sphi 0, %s156
      %s173 = sphi 0, %s157
    $region4: #{tpu_custom_call.1} parent=1 // loop_header_branch
      %18 = sbr.rel (%p16) target = $region8
    $region5: #{tpu_custom_call.1} parent=1 // loop_body
      %s20 = ssub.s32 %s15, 1
      %s21 = ssub.s32 %s15, 2
      %s28 = sadd.s32 1, %s23
      %p29 = scmp.ge.s32.totalorder %s28, 2
      %s30 = scalar_select %p29, 0, %s28
      %s31 = sadd.s32 1, %s22
      %s32 = scalar_select %p29, %s31, %s22
      %p33 = scmp.ge.s32.totalorder %s32, 2
      %s34 = scalar_select %p33, 0, %s32
      %s35 = smul.u32 %s22, 2
      %s36 = sadd.s32 %s35, %s23
      %s37 = smul.u32 %s34, 2
      %s38 = sadd.s32 %s37, %s30
      %s39 = ssub.s32 %s36, %s38
      %p40 = scmp.eq.s32.totalorder %s39, 0
      %s42 = sadd.s32 %s41, 1
      %s43 = scalar_select %p40, %s41, %s42
      %p46 = pneg %p40
      %p47 = scmp.eq.s32.totalorder %s15, 3
      %p48 = por %p46, %p47
      %p49 = scmp.ne.s32.totalorder %s41, %s44
      %p50 = scmp.eq.s32.totalorder %s15, 0
      %p51 = por %p49, %p50
      %p52 = scmp.ne.s32.totalorder %s41, %s44
      %p53 = scmp.eq.s32.totalorder %s20, 3
      %p54 = por %p52, %p53
      %p55 = scmp.ne.s32.totalorder %s44, %s45
      %p56 = scmp.eq.s32.totalorder %s20, 0
      %p57 = por %p55, %p56
      %p58 = scmp.ne.s32.totalorder %s44, %s45
      %p59 = scmp.eq.s32.totalorder %s21, 3
      %p60 = por %p58, %p59
      %p62 = scmp.ne.s32.totalorder %s45, %s61
      %p63 = scmp.eq.s32.totalorder %s21, 0
      %p64 = por %p62, %p63
      %s66 = sadd.s32 %s65, 1
      %p69 = scmp.eq.s32.totalorder %s15, 3
      %p70 = scmp.ne.s32.totalorder %s65, %s67
      %p71 = scmp.eq.s32.totalorder %s15, 0
      %p72 = por %p70, %p71
      %p73 = scmp.ne.s32.totalorder %s65, %s67
      %p74 = scmp.eq.s32.totalorder %s20, 3
      %p75 = por %p73, %p74
      %p76 = scmp.ne.s32.totalorder %s67, %s68
      %p77 = scmp.eq.s32.totalorder %s20, 0
      %p78 = por %p76, %p77
      %p79 = scmp.ne.s32.totalorder %s67, %s68
      %p80 = scmp.eq.s32.totalorder %s21, 3
      %p81 = por %p79, %p80
      %p83 = scmp.ne.s32.totalorder %s68, %s82
      %p84 = scmp.eq.s32.totalorder %s21, 0
      %p85 = por %p83, %p84
      %s87 = sadd.s32 %s86, 1
      %p90 = scmp.eq.s32.totalorder %s15, 3
      %p91 = scmp.ne.s32.totalorder %s86, %s88
      %p92 = scmp.eq.s32.totalorder %s15, 0
      %p93 = por %p91, %p92
      %p94 = scmp.ne.s32.totalorder %s86, %s88
      %p95 = scmp.eq.s32.totalorder %s20, 3
      %p96 = por %p94, %p95
      %p97 = scmp.ne.s32.totalorder %s88, %s89
      %p98 = scmp.eq.s32.totalorder %s20, 0
      %p99 = por %p97, %p98
      %p100 = scmp.ne.s32.totalorder %s88, %s89
      %p101 = scmp.eq.s32.totalorder %s21, 3
      %p102 = por %p100, %p101
      %p104 = scmp.ne.s32.totalorder %s89, %s103
      %p105 = scmp.eq.s32.totalorder %s21, 0
      %p106 = por %p104, %p105
      %s108 = sadd.s32 %s107, 1
      %p111 = scmp.eq.s32.totalorder %s15, 3
      %p112 = scmp.ne.s32.totalorder %s107, %s109
      %p113 = scmp.eq.s32.totalorder %s15, 0
      %p114 = por %p112, %p113
      %p115 = scmp.ne.s32.totalorder %s107, %s109
      %p116 = scmp.eq.s32.totalorder %s20, 3
      %p117 = por %p115, %p116
      %p118 = scmp.ne.s32.totalorder %s109, %s110
      %p119 = scmp.eq.s32.totalorder %s20, 0
      %p120 = por %p118, %p119
      %p121 = scmp.ne.s32.totalorder %s109, %s110
      %p122 = scmp.eq.s32.totalorder %s21, 3
      %p123 = por %p121, %p122
      %p125 = scmp.ne.s32.totalorder %s110, %s124
      %p126 = scmp.eq.s32.totalorder %s21, 0
      %p127 = por %p125, %p126
      %s129 = sadd.s32 %s128, 1
      %p132 = scmp.eq.s32.totalorder %s15, 3
      %p133 = scmp.ne.s32.totalorder %s128, %s130
      %p134 = scmp.eq.s32.totalorder %s15, 0
      %p135 = por %p133, %p134
      %p136 = scmp.ne.s32.totalorder %s128, %s130
      %p137 = scmp.eq.s32.totalorder %s20, 3
      %p138 = por %p136, %p137
      %p139 = scmp.ne.s32.totalorder %s130, %s131
      %p140 = scmp.eq.s32.totalorder %s20, 0
      %p141 = por %p139, %p140
      %p142 = scmp.ne.s32.totalorder %s130, %s131
      %p143 = scmp.eq.s32.totalorder %s21, 3
      %p144 = por %p142, %p143
      %p146 = scmp.ne.s32.totalorder %s131, %s145
      %p147 = scmp.eq.s32.totalorder %s21, 0
      %p148 = por %p146, %p147
      %s149 = ssub.s32 %s22, %s34
      %s150 = ssub.s32 %s23, %s30
      %s151 = sor.u32 %s149, %s150
      %p152 = scmp.eq.s32.totalorder %s151, 0
      %s154 = sadd.s32 %s153, 1
      %s155 = scalar_select %p152, %s153, %s154
      %p158 = pneg %p152
      %p159 = scmp.eq.s32.totalorder %s15, 3
      %p160 = por %p158, %p159
      %p161 = scmp.ne.s32.totalorder %s153, %s156
      %p162 = scmp.eq.s32.totalorder %s15, 0
      %p163 = por %p161, %p162
      %p164 = scmp.ne.s32.totalorder %s153, %s156
      %p165 = scmp.eq.s32.totalorder %s20, 3
      %p166 = por %p164, %p165
      %p167 = scmp.ne.s32.totalorder %s156, %s157
      %p168 = scmp.eq.s32.totalorder %s20, 0
      %p169 = por %p167, %p168
      %p170 = scmp.ne.s32.totalorder %s156, %s157
      %p171 = scmp.eq.s32.totalorder %s21, 3
      %p172 = por %p170, %p171
      %p174 = scmp.ne.s32.totalorder %s157, %s173
      %p175 = scmp.eq.s32.totalorder %s21, 0
      %p176 = por %p174, %p175
      %p177 = scmp.le.s32.totalorder 1, %s15
      %p178 = scmp.lt.s32.totalorder %s15, 5
      %p179 = pnand %p177, %p178
      %p180 = pneg %p179
      // Predicated region
      $region9: #{tpu_custom_call.1} parent=5 // pred_check
        _
      $region10: #{tpu_custom_call.1} parent=5 // pred_check_branch
        %182 = sbr.rel (%p179) target = $region12
      $region11: #{tpu_custom_call.1} parent=5 // pred_region
        %s183 = ssub.s32 %s15, 1
        // Predicated region
        $region13: #{tpu_custom_call.1} parent=11 // pred_check
          %p184 = pneg %p78
        $region14: #{tpu_custom_call.1} parent=11 // pred_check_branch
          %186 = sbr.rel (%p184) target = $region16
        $region15: #{tpu_custom_call.1} parent=11 // pred_region
          %s188 = ssub.s32 9216, 9216
          %189 = vsyncadd [#allocation5], %s188
          %s190 = sshll.u32 [#allocation4], 4
          %s191 = int_to_ptr.vmem [resolvable:$true] %s190
          %196 = dma.hbm_to_vmem [thread:$0]  %s1, 9216, %s191, [#allocation5], 64, 64, 4
        $region16: #{tpu_custom_call.1} parent=11 // pred_fallthru
          _
        // Predicated region
        $region17: #{tpu_custom_call.1} parent=11 // pred_check
          %p197 = pneg %p99
        $region18: #{tpu_custom_call.1} parent=11 // pred_check_branch
          %199 = sbr.rel (%p197) target = $region20
        $region19: #{tpu_custom_call.1} parent=11 // pred_region
          _
        $region20: #{tpu_custom_call.1} parent=11 // pred_fallthru
          _
        // Predicated region
        $region21: #{tpu_custom_call.1} parent=11 // pred_check
          %p200 = pneg %p120
        $region22: #{tpu_custom_call.1} parent=11 // pred_check_branch
          %202 = sbr.rel (%p200) target = $region24
        $region23: #{tpu_custom_call.1} parent=11 // pred_region
          _
        $region24: #{tpu_custom_call.1} parent=11 // pred_fallthru
          _
        // Predicated region
        $region25: #{tpu_custom_call.1} parent=11 // pred_check
          %p203 = pneg %p141
        $region26: #{tpu_custom_call.1} parent=11 // pred_check_branch
          %205 = sbr.rel (%p203) target = $region28
        $region27: #{tpu_custom_call.1} parent=11 // pred_region
          _
        $region28: #{tpu_custom_call.1} parent=11 // pred_fallthru
          _
      $region12: #{tpu_custom_call.1} parent=5 // pred_fallthru
        _
      %p206 = scmp.lt.s32.totalorder %s15, 4
      // Predicated region
      $region29: #{tpu_custom_call.1} parent=5 // pred_check
        %p207 = pneg %p206
      $region30: #{tpu_custom_call.1} parent=5 // pred_check_branch
        %209 = sbr.rel (%p207) target = $region32
      $region31: #{tpu_custom_call.1} parent=5 // pred_region
        // Predicated region
        $region33: #{tpu_custom_call.1} parent=31 // pred_check
          %p210 = pneg %p51
        $region34: #{tpu_custom_call.1} parent=31 // pred_check_branch
          %212 = sbr.rel (%p210) target = $region36
        $region35: #{tpu_custom_call.1} parent=31 // pred_region
          %s213 = smul.u32 %s22, 2
          %s214 = sadd.s32 %s213, %s23
          %p215 = scmp.lt.s32.totalorder %s214, 3
          %s216 = scalar_select %p215, %s214, 3
          %s217 = smul.addr %s216, 12
          %s218 = smul.addr %s217, 4
          %s219 = scalar_lea.vmem %s0, %s218
          %s220 = smul.u32 %s22, 2
          %s221 = sadd.s32 %s220, %s23
        $region36: #{tpu_custom_call.1} parent=31 // pred_fallthru
          _
      $region32: #{tpu_custom_call.1} parent=5 // pred_fallthru
        _
      %p222 = scmp.le.s32.totalorder 1, %s15
      %p223 = scmp.lt.s32.totalorder %s15, 5
      %p224 = pnand %p222, %p223
      %p225 = pneg %p224
      // Predicated region
      $region37: #{tpu_custom_call.1} parent=5 // pred_check
        _
      $region38: #{tpu_custom_call.1} parent=5 // pred_check_branch
        %227 = sbr.rel (%p224) target = $region40
      $region39: #{tpu_custom_call.1} parent=5 // pred_region
        %s228 = ssub.s32 %s15, 1
        // Predicated region
        $region41: #{tpu_custom_call.1} parent=39 // pred_check
          %p229 = pneg %p78
        $region42: #{tpu_custom_call.1} parent=39 // pred_check_branch
          %231 = sbr.rel (%p229) target = $region44
        $region43: #{tpu_custom_call.1} parent=39 // pred_region
          %232 = dma.done [#allocation5], 9216
        $region44: #{tpu_custom_call.1} parent=39 // pred_fallthru
          _
        %s233 = smul.u32 %s24, 2
        %s234 = sadd.s32 %s233, %s25
        %p235 = scmp.lt.s32.totalorder %s234, 3
        %s236 = scalar_select %p235, %s234, 3
        %s237 = smul.addr %s236, 12
        %s238 = smul.addr %s237, 4
        %s239 = scalar_lea.vmem %s0, %s238
        %p240 = pneg %p57
        %p241 = pneg %p54
        %p242 = pneg %p78
        %p243 = pneg %p75
        %p244 = pneg %p99
        %p245 = pneg %p96
        %p246 = pneg %p120
        %p247 = pneg %p117
        %p248 = pneg %p141
        %p249 = pneg %p138
        %p250 = pneg %p169
        %p251 = pneg %p166
        %s252 = sand.u32 %s156, 1
        %s253 = scalar_lea.sflag [#allocation6], %s252
        %s254 = sand.u32 %s156, 1
        %s255 = smul.addr %s254, 32
        %s256 = scalar_lea.vmem [#allocation7], %s255
        %s257 = smul.u32 %s24, 2
        %s258 = sadd.s32 %s257, %s25
        %p259 = scmp.lt.s32.totalorder %s258, 3
        %s260 = scalar_select %p259, %s258, 3
        %s261 = smul.addr %s260, 12
        %s262 = smul.addr %s261, 4
        %s263 = scalar_lea.vmem %s0, %s262
        %s264 = smul.u32 %s24, 2
        %s265 = sadd.s32 %s264, %s25
        %s266 = smul.u32 4, %s25
        %v268 = vld [vmem:[%s263] sm:$0xf]
        %v269 = vld [vmem:[%s263 + $0x8] sm:$0xf]
        %v270 = vld [vmem:[%s263 + $0x10] sm:$0xf]
        %v271 = vld [vmem:[%s263 + $0x18] sm:$0xf]
        %v272 = vld [vmem:[%s263 + $0x20] sm:$0xf]
        %v273 = vld [vmem:[%s263 + $0x28] sm:$0xf]
        %274 = vst [vmem:[#allocation2] sm:$0xf] %v268
        %275 = vst [vmem:[#allocation2 + $0xc] sm:$0xf] %v269
        %276 = vst [vmem:[#allocation2 + $0x18] sm:$0xf] %v270
        %277 = vst [vmem:[#allocation2 + $0x24] sm:$0xf] %v271
        %278 = vst [vmem:[#allocation2 + $0x30] sm:$0xf] %v272
        %279 = vst [vmem:[#allocation2 + $0x3c] sm:$0xf] %v273
        %v280 = vld [vmem:[%s263] sm:$0xf]
        %v281 = vld [vmem:[%s263 + $0x4] sm:$0x1]
        %v282 = vld [vmem:[%s263 + $0x8] sm:$0xf]
        %v283 = vld [vmem:[%s263 + $0xc] sm:$0x1]
        %v284 = vld [vmem:[%s263 + $0x10] sm:$0xf]
        %v285 = vld [vmem:[%s263 + $0x14] sm:$0x1]
        %v286 = vld [vmem:[%s263 + $0x18] sm:$0xf]
        %v287 = vld [vmem:[%s263 + $0x1c] sm:$0x1]
        %v288 = vld [vmem:[%s263 + $0x20] sm:$0xf]
        %v289 = vld [vmem:[%s263 + $0x24] sm:$0x1]
        %v290 = vld [vmem:[%s263 + $0x28] sm:$0xf]
        %v291 = vld [vmem:[%s263 + $0x2c] sm:$0x1]
        %vm292 = vsmask.f32 3328
        %vm293 = vsmask.f32 7440
        %vm294 = vmor %vm292, %vm293
        %v296 = vshrl.u32 %v280, 16
        %v298 = vrot.slane %v296, 4
        %v299 = vshll.u32 %v280, 16
        %v301 = vrot.slane %v299, 5
        %v302 = vor.u32 %v298, %v301
        %v303 = vrot.slane %v302, 4
        %v305 = vshll.u32 %v281, 16
        %v307 = vrot.slane %v305, 5
        %v308 = vsel %vm294, %v303, %v307
        %v310 = vshrl.u32 %v282, 16
        %v312 = vrot.slane %v310, 4
        %v313 = vshll.u32 %v282, 16
        %v315 = vrot.slane %v313, 5
        %v316 = vor.u32 %v312, %v315
        %v317 = vrot.slane %v316, 4
        %v319 = vshll.u32 %v283, 16
        %v321 = vrot.slane %v319, 5
        %v322 = vsel %vm294, %v317, %v321
        %v324 = vshrl.u32 %v284, 16
        %v326 = vrot.slane %v324, 4
        %v327 = vshll.u32 %v284, 16
        %v329 = vrot.slane %v327, 5
        %v330 = vor.u32 %v326, %v329
        %v331 = vrot.slane %v330, 4
        %v333 = vshll.u32 %v285, 16
        %v335 = vrot.slane %v333, 5
        %v336 = vsel %vm294, %v331, %v335
        %v338 = vshrl.u32 %v286, 16
        %v340 = vrot.slane %v338, 4
        %v341 = vshll.u32 %v286, 16
        %v343 = vrot.slane %v341, 5
        %v344 = vor.u32 %v340, %v343
        %v345 = vrot.slane %v344, 4
        %v347 = vshll.u32 %v287, 16
        %v349 = vrot.slane %v347, 5
        %v350 = vsel %vm294, %v345, %v349
        %v352 = vshrl.u32 %v288, 16
        %v354 = vrot.slane %v352, 4
        %v355 = vshll.u32 %v288, 16
        %v357 = vrot.slane %v355, 5
        %v358 = vor.u32 %v354, %v357
        %v359 = vrot.slane %v358, 4
        %v361 = vshll.u32 %v289, 16
        %v363 = vrot.slane %v361, 5
        %v364 = vsel %vm294, %v359, %v363
        %v366 = vshrl.u32 %v290, 16
        %v368 = vrot.slane %v366, 4
        %v369 = vshll.u32 %v290, 16
        %v371 = vrot.slane %v369, 5
        %v372 = vor.u32 %v368, %v371
        %v373 = vrot.slane %v372, 4
        %v375 = vshll.u32 %v291, 16
        %v377 = vrot.slane %v375, 5
        %v378 = vsel %vm294, %v373, %v377
        %385 = vst [vmem:[#allocation2 + $0x4] sm:$0xf] %v308
        %386 = vst [vmem:[#allocation2 + $0x10] sm:$0xf] %v322
        %387 = vst [vmem:[#allocation2 + $0x1c] sm:$0xf] %v336
        %388 = vst [vmem:[#allocation2 + $0x28] sm:$0xf] %v350
        %389 = vst [vmem:[#allocation2 + $0x34] sm:$0xf] %v364
        %390 = vst [vmem:[#allocation2 + $0x40] sm:$0xf] %v378
        %v391 = vld [vmem:[%s263] sm:$0xe]
        %v392 = vld [vmem:[%s263 + $0x4] sm:$0x1]
        %v393 = vld [vmem:[%s263 + $0x8] sm:$0xe]
        %v394 = vld [vmem:[%s263 + $0xc] sm:$0x1]
        %v395 = vld [vmem:[%s263 + $0x10] sm:$0xe]
        %v396 = vld [vmem:[%s263 + $0x14] sm:$0x1]
        %v397 = vld [vmem:[%s263 + $0x18] sm:$0xe]
        %v398 = vld [vmem:[%s263 + $0x1c] sm:$0x1]
        %v399 = vld [vmem:[%s263 + $0x20] sm:$0xe]
        %v400 = vld [vmem:[%s263 + $0x24] sm:$0x1]
        %v401 = vld [vmem:[%s263 + $0x28] sm:$0xe]
        %v402 = vld [vmem:[%s263 + $0x2c] sm:$0x1]
        %vm415 = vcmask 1042432
        %vm416 = vcmask 1046532
        %vm417 = vmor %vm415, %vm416
        %v418 = vrot.slane %v391, 5
        %v419 = vrot.slane %v418, 4
        %v420 = vrot.slane %v392, 5
        %v421 = vsel %vm417, %v419, %v420
        %v422 = vrot.slane %v393, 5
        %v423 = vrot.slane %v422, 4
        %v424 = vrot.slane %v394, 5
        %v425 = vsel %vm417, %v423, %v424
        %v426 = vrot.slane %v395, 5
        %v427 = vrot.slane %v426, 4
        %v428 = vrot.slane %v396, 5
        %v429 = vsel %vm417, %v427, %v428
        %v430 = vrot.slane %v397, 5
        %v431 = vrot.slane %v430, 4
        %v432 = vrot.slane %v398, 5
        %v433 = vsel %vm417, %v431, %v432
        %v434 = vrot.slane %v399, 5
        %v435 = vrot.slane %v434, 4
        %v436 = vrot.slane %v400, 5
        %v437 = vsel %vm417, %v435, %v436
        %v438 = vrot.slane %v401, 5
        %v439 = vrot.slane %v438, 4
        %v440 = vrot.slane %v402, 5
        %v441 = vsel %vm417, %v439, %v440
        %448 = vst [vmem:[#allocation2 + $0x8] sm:$0xf] %v421
        %449 = vst [vmem:[#allocation2 + $0x14] sm:$0xf] %v425
        %450 = vst [vmem:[#allocation2 + $0x20] sm:$0xf] %v429
        %451 = vst [vmem:[#allocation2 + $0x2c] sm:$0xf] %v433
        %452 = vst [vmem:[#allocation2 + $0x38] sm:$0xf] %v437
        %453 = vst [vmem:[#allocation2 + $0x44] sm:$0xf] %v441
        %v454 = vld [vmem:[#allocation2] sm:$0xff]
        %v455 = vld [vmem:[#allocation2 + $0x8] sm:$0xf]
        %v456 = vld [vmem:[#allocation2 + $0xc] sm:$0xff]
        %v457 = vld [vmem:[#allocation2 + $0x14] sm:$0xf]
        %v458 = vld [vmem:[#allocation2 + $0x18] sm:$0xff]
        %v459 = vld [vmem:[#allocation2 + $0x20] sm:$0xf]
        %v460 = vld [vmem:[#allocation2 + $0x24] sm:$0xff]
        %v461 = vld [vmem:[#allocation2 + $0x2c] sm:$0xf]
        %v462 = vld [vmem:[#allocation4] sm:$0xf]
        %v463 = vld [vmem:[#allocation4 + $0x4] sm:$0xf]
        %v464 = vld [vmem:[#allocation4 + $0x8] sm:$0xf]
        %v465 = vld [vmem:[#allocation4 + $0xc] sm:$0xf]
        %v466 = vld [vmem:[#allocation4 + $0x10] sm:$0xf]
        %v467 = vld [vmem:[#allocation4 + $0x14] sm:$0xf]
        %v468 = vld [vmem:[#allocation4 + $0x18] sm:$0xf]
        %v469 = vld [vmem:[#allocation4 + $0x1c] sm:$0xf]
        %v470 = vld [vmem:[#allocation4 + $0x20] sm:$0xf]
        %v471 = vld [vmem:[#allocation4 + $0x24] sm:$0xf]
        %v472 = vld [vmem:[#allocation4 + $0x28] sm:$0xf]
        %v473 = vld [vmem:[#allocation4 + $0x2c] sm:$0xf]
        %v474 = vld [vmem:[#allocation4 + $0x30] sm:$0xf]
        %v475 = vld [vmem:[#allocation4 + $0x34] sm:$0xf]
        %v476 = vld [vmem:[#allocation4 + $0x38] sm:$0xf]
        %v477 = vld [vmem:[#allocation4 + $0x3c] sm:$0xf]
        %v478 = vld [vmem:[#allocation4 + $0x40] sm:$0xf]
        %v479 = vld [vmem:[#allocation4 + $0x44] sm:$0xf]
        %v480 = vld [vmem:[#allocation4 + $0x48] sm:$0xf]
        %v481 = vld [vmem:[#allocation4 + $0x4c] sm:$0xf]
        %v482 = vld [vmem:[#allocation4 + $0x50] sm:$0xf]
        %v483 = vld [vmem:[#allocation4 + $0x54] sm:$0xf]
        %v484 = vld [vmem:[#allocation4 + $0x58] sm:$0xf]
        %v485 = vld [vmem:[#allocation4 + $0x5c] sm:$0xf]
        %v486 = vld [vmem:[#allocation4 + $0x60] sm:$0xf]
        %v487 = vld [vmem:[#allocation4 + $0x64] sm:$0xf]
        %v488 = vld [vmem:[#allocation4 + $0x68] sm:$0xf]
        %v489 = vld [vmem:[#allocation4 + $0x6c] sm:$0xf]
        %v490 = vld [vmem:[#allocation4 + $0x70] sm:$0xf]
        %v491 = vld [vmem:[#allocation4 + $0x74] sm:$0xf]
        %v492 = vld [vmem:[#allocation4 + $0x78] sm:$0xf]
        %v493 = vld [vmem:[#allocation4 + $0x7c] sm:$0xf]
        %v494 = vld [vmem:[#allocation4 + $0x80] sm:$0xf]
        %v495 = vld [vmem:[#allocation4 + $0x84] sm:$0xf]
        %v496 = vld [vmem:[#allocation4 + $0x88] sm:$0xf]
        %v497 = vld [vmem:[#allocation4 + $0x8c] sm:$0xf]
        %v498 = vld [vmem:[#allocation4 + $0x90] sm:$0xf]
        %v499 = vld [vmem:[#allocation4 + $0x94] sm:$0xf]
        %v500 = vld [vmem:[#allocation4 + $0x98] sm:$0xf]
        %v501 = vld [vmem:[#allocation4 + $0x9c] sm:$0xf]
        %v502 = vld [vmem:[#allocation4 + $0xa0] sm:$0xf]
        %v503 = vld [vmem:[#allocation4 + $0xa4] sm:$0xf]
        %v504 = vld [vmem:[#allocation4 + $0xa8] sm:$0xf]
        %v505 = vld [vmem:[#allocation4 + $0xac] sm:$0xf]
        %v506 = vld [vmem:[#allocation4 + $0xb0] sm:$0xf]
        %v507 = vld [vmem:[#allocation4 + $0xb4] sm:$0xf]
        %v508 = vld [vmem:[#allocation4 + $0xb8] sm:$0xf]
        %v509 = vld [vmem:[#allocation4 + $0xbc] sm:$0xf]
        %v518 = vunpack.c.l.b16 %v454
        %v519 = vunpack.c.h.b16 %v454
        %v520 = vunpack.c.l.b16 %v455
        %v521 = vunpack.c.l.b16 %v456
        %v522 = vunpack.c.h.b16 %v456
        %v523 = vunpack.c.l.b16 %v457
        %v524 = vunpack.c.l.b16 %v458
        %v525 = vunpack.c.h.b16 %v458
        %v526 = vunpack.c.l.b16 %v459
        %v527 = vunpack.c.l.b16 %v460
        %v528 = vunpack.c.h.b16 %v460
        %v529 = vunpack.c.l.b16 %v461
        %v530 = vpack.c.b16 %v521, %v518
        %v531 = vpack.c.b16 %v522, %v519
        %v532 = vpack.c.b16 %v523, %v520
        %v533 = vpack.c.b16 %v527, %v524
        %v534 = vpack.c.b16 %v528, %v525
        %v535 = vpack.c.b16 %v529, %v526
        %v590 = vunpack.c.l.b16 %v462
        %v591 = vunpack.c.l.b16 %v463
        %v592 = vunpack.c.l.b16 %v464
        %v593 = vunpack.c.l.b16 %v465
        %v594 = vunpack.c.l.b16 %v466
        %v595 = vunpack.c.l.b16 %v467
        %v596 = vunpack.c.l.b16 %v468
        %v597 = vunpack.c.l.b16 %v469
        %v598 = vunpack.c.l.b16 %v470
        %v599 = vunpack.c.l.b16 %v471
        %v600 = vunpack.c.l.b16 %v472
        %v601 = vunpack.c.l.b16 %v473
        %v602 = vunpack.c.l.b16 %v474
        %v603 = vunpack.c.l.b16 %v475
        %v604 = vunpack.c.l.b16 %v476
        %v605 = vunpack.c.l.b16 %v477
        %v606 = vunpack.c.l.b16 %v478
        %v607 = vunpack.c.l.b16 %v479
        %v608 = vunpack.c.l.b16 %v480
        %v609 = vunpack.c.l.b16 %v481
        %v610 = vunpack.c.l.b16 %v482
        %v611 = vunpack.c.l.b16 %v483
        %v612 = vunpack.c.l.b16 %v484
        %v613 = vunpack.c.l.b16 %v485
        %v614 = vunpack.c.l.b16 %v486
        %v615 = vunpack.c.l.b16 %v487
        %v616 = vunpack.c.l.b16 %v488
        %v617 = vunpack.c.l.b16 %v489
        %v618 = vunpack.c.l.b16 %v490
        %v619 = vunpack.c.l.b16 %v491
        %v620 = vunpack.c.l.b16 %v492
        %v621 = vunpack.c.l.b16 %v493
        %v622 = vunpack.c.l.b16 %v494
        %v623 = vunpack.c.l.b16 %v495
        %v624 = vunpack.c.l.b16 %v496
        %v625 = vunpack.c.l.b16 %v497
        %v626 = vunpack.c.l.b16 %v498
        %v627 = vunpack.c.l.b16 %v499
        %v628 = vunpack.c.l.b16 %v500
        %v629 = vunpack.c.l.b16 %v501
        %v630 = vunpack.c.l.b16 %v502
        %v631 = vunpack.c.l.b16 %v503
        %v632 = vunpack.c.l.b16 %v504
        %v633 = vunpack.c.l.b16 %v505
        %v634 = vunpack.c.l.b16 %v506
        %v635 = vunpack.c.l.b16 %v507
        %v636 = vunpack.c.l.b16 %v508
        %v637 = vunpack.c.l.b16 %v509
        %v638 = vpack.c.b16 %v591, %v590
        %v639 = vpack.c.b16 %v593, %v592
        %v640 = vpack.c.b16 %v595, %v594
        %v641 = vpack.c.b16 %v597, %v596
        %v642 = vpack.c.b16 %v599, %v598
        %v643 = vpack.c.b16 %v601, %v600
        %v644 = vpack.c.b16 %v603, %v602
        %v645 = vpack.c.b16 %v605, %v604
        %v646 = vpack.c.b16 %v607, %v606
        %v647 = vpack.c.b16 %v609, %v608
        %v648 = vpack.c.b16 %v611, %v610
        %v649 = vpack.c.b16 %v613, %v612
        %v650 = vpack.c.b16 %v615, %v614
        %v651 = vpack.c.b16 %v617, %v616
        %v652 = vpack.c.b16 %v619, %v618
        %v653 = vpack.c.b16 %v621, %v620
        %v654 = vpack.c.b16 %v623, %v622
        %v655 = vpack.c.b16 %v625, %v624
        %v656 = vpack.c.b16 %v627, %v626
        %v657 = vpack.c.b16 %v629, %v628
        %v658 = vpack.c.b16 %v631, %v630
        %v659 = vpack.c.b16 %v633, %v632
        %v660 = vpack.c.b16 %v635, %v634
        %v661 = vpack.c.b16 %v637, %v636
        %686 = vmatprep.subr.bf16.mxu0 0
        %687 = vmatpush1.bf16.msra.mxu0 %v645
        %688 = vmatprep.subr.bf16.mxu0 0
        %689 = vmatpush1.bf16.msra.mxu0 %v644
        %690 = vmatprep.subr.bf16.mxu0 0
        %691 = vmatpush1.bf16.msra.mxu0 %v643
        %692 = vmatprep.subr.bf16.mxu0 0
        %693 = vmatpush1.bf16.msra.mxu0 %v642
        %694 = vmatprep.subr.bf16.mxu0 0
        %695 = vmatpush1.bf16.msra.mxu0 %v641
        %696 = vmatprep.subr.bf16.mxu0 0
        %697 = vmatpush1.bf16.msra.mxu0 %v640
        %698 = vmatprep.subr.bf16.mxu0 0
        %699 = vmatpush1.bf16.msra.mxu0 %v639
        %700 = vmatprep.subr.bf16.mxu0 0
        %701 = vmatpush1.bf16.msra.mxu0 %v638
        %702 = vmatprep.subr.bf16.mxu0 0
        %703 = vmatpush2.bf16.msra.mxu0 %v653
        %704 = vmatprep.subr.bf16.mxu0 0
        %705 = vmatpush2.bf16.msra.mxu0 %v652
        %706 = vmatprep.subr.bf16.mxu0 0
        %707 = vmatpush2.bf16.msra.mxu0 %v651
        %708 = vmatprep.subr.bf16.mxu0 0
        %709 = vmatpush2.bf16.msra.mxu0 %v650
        %710 = vmatprep.subr.bf16.mxu0 0
        %711 = vmatpush2.bf16.msra.mxu0 %v649
        %712 = vmatprep.subr.bf16.mxu0 0
        %713 = vmatpush2.bf16.msra.mxu0 %v648
        %714 = vmatprep.subr.bf16.mxu0 0
        %715 = vmatpush2.bf16.msra.mxu0 %v647
        %716 = vmatprep.subr.bf16.mxu0 0
        %717 = vmatpush2.bf16.msra.mxu0 %v646
        %718 = vmatprep.mubr.bf16.mxu0 %v531
        %719 = vmatmul.mubr.bf16.gmra.mxu0 %v530
        %v720 = vpop.f32.mrf.mxu0
        %v721 = vadd.f32 0.0, %v720
        %v722 = vpop.f32.mrf.mxu0
        %v723 = vpop.f32.mrf.mxu0
        %v724 = vadd.f32 0.0, %v723
        %v725 = vpop.f32.mrf.mxu0
        %726 = vmatprep.mubr.bf16.mxu0 %v534
        %727 = vmatmul.mubr.bf16.gmra.mxu0 %v533
        %v728 = vpop.f32.mrf.mxu0
        %v729 = vadd.f32 0.0, %v728
        %v730 = vpop.f32.mrf.mxu0
        %v731 = vpop.f32.mrf.mxu0
        %v732 = vadd.f32 0.0, %v731
        %v733 = vpop.f32.mrf.mxu0
        %734 = vdwg.mxu0
        %735 = vmatprep.subr.bf16.mxu0 0
        %736 = vmatpush1.bf16.msra.mxu0 %v661
        %737 = vmatprep.subr.bf16.mxu0 0
        %738 = vmatpush1.bf16.msra.mxu0 %v660
        %739 = vmatprep.subr.bf16.mxu0 0
        %740 = vmatpush1.bf16.msra.mxu0 %v659
        %741 = vmatprep.subr.bf16.mxu0 0
        %742 = vmatpush1.bf16.msra.mxu0 %v658
        %743 = vmatprep.subr.bf16.mxu0 0
        %744 = vmatpush1.bf16.msra.mxu0 %v657
        %745 = vmatprep.subr.bf16.mxu0 0
        %746 = vmatpush1.bf16.msra.mxu0 %v656
        %747 = vmatprep.subr.bf16.mxu0 0
        %748 = vmatpush1.bf16.msra.mxu0 %v655
        %749 = vmatprep.subr.bf16.mxu0 0
        %750 = vmatpush1.bf16.msra.mxu0 %v654
        %751 = vmatprep.subr.bf16.mxu0 0
        %752 = vmatpush2.bf16.msra.mxu0 0
        %753 = vmatprep.subr.bf16.mxu0 0
        %754 = vmatpush2.bf16.msra.mxu0 0
        %755 = vmatprep.subr.bf16.mxu0 0
        %756 = vmatpush2.bf16.msra.mxu0 0
        %757 = vmatprep.subr.bf16.mxu0 0
        %758 = vmatpush2.bf16.msra.mxu0 0
        %759 = vmatprep.subr.bf16.mxu0 0
        %760 = vmatpush2.bf16.msra.mxu0 0
        %761 = vmatprep.subr.bf16.mxu0 0
        %762 = vmatpush2.bf16.msra.mxu0 0
        %763 = vmatprep.subr.bf16.mxu0 0
        %764 = vmatpush2.bf16.msra.mxu0 0
        %765 = vmatprep.subr.bf16.mxu0 0
        %766 = vmatpush2.bf16.msra.mxu0 0
        %767 = vmatprep.mubr.bf16.mxu0 0
        %768 = vmatmul.mubr.bf16.gmra.mxu0 %v532
        %v769 = vpop.f32.mrf.mxu0
        %v770 = vadd.f32 %v721, %v769
        %v771 = vpop.f32.mrf.mxu0
        %v772 = vpop.f32.mrf.mxu0
        %v773 = vadd.f32 %v724, %v772
        %v774 = vpop.f32.mrf.mxu0
        %775 = vmatprep.mubr.bf16.mxu0 0
        %776 = vmatmul.mubr.bf16.gmra.mxu0 %v535
        %v777 = vpop.f32.mrf.mxu0
        %v778 = vadd.f32 %v729, %v777
        %v779 = vpop.f32.mrf.mxu0
        %v780 = vpop.f32.mrf.mxu0
        %v781 = vadd.f32 %v732, %v780
        %v782 = vpop.f32.mrf.mxu0
        %783 = vdwg.mxu0
        %784 = vst [vmem:[#allocation3] sm:$0xff] %v770
        %785 = vst [vmem:[#allocation3 + $0x8] sm:$0xff] %v773
        %786 = vst [vmem:[#allocation3 + $0x10] sm:$0xff] %v778
        %787 = vst [vmem:[#allocation3 + $0x18] sm:$0xff] %v781
        %v788 = vld [vmem:[#allocation2 + $0xc] sm:$0xff]
        %v789 = vld [vmem:[#allocation2 + $0x14] sm:$0xf]
        %v790 = vld [vmem:[#allocation2 + $0x18] sm:$0xff]
        %v791 = vld [vmem:[#allocation2 + $0x20] sm:$0xf]
        %v792 = vld [vmem:[#allocation2 + $0x24] sm:$0xff]
        %v793 = vld [vmem:[#allocation2 + $0x2c] sm:$0xf]
        %v794 = vld [vmem:[#allocation2 + $0x30] sm:$0xff]
        %v795 = vld [vmem:[#allocation2 + $0x38] sm:$0xf]
        %s796 = scalar_lea.vmem [#allocation4], 192
        %v797 = vld [vmem:[%s796] sm:$0xf]
        %v798 = vld [vmem:[%s796 + $0x4] sm:$0xf]
        %v799 = vld [vmem:[%s796 + $0x8] sm:$0xf]
        %v800 = vld [vmem:[%s796 + $0xc] sm:$0xf]
        %v801 = vld [vmem:[%s796 + $0x10] sm:$0xf]
        %v802 = vld [vmem:[%s796 + $0x14] sm:$0xf]
        %v803 = vld [vmem:[%s796 + $0x18] sm:$0xf]
        %v804 = vld [vmem:[%s796 + $0x1c] sm:$0xf]
        %v805 = vld [vmem:[%s796 + $0x20] sm:$0xf]
        %v806 = vld [vmem:[%s796 + $0x24] sm:$0xf]
        %v807 = vld [vmem:[%s796 + $0x28] sm:$0xf]
        %v808 = vld [vmem:[%s796 + $0x2c] sm:$0xf]
        %v809 = vld [vmem:[%s796 + $0x30] sm:$0xf]
        %v810 = vld [vmem:[%s796 + $0x34] sm:$0xf]
        %v811 = vld [vmem:[%s796 + $0x38] sm:$0xf]
        %v812 = vld [vmem:[%s796 + $0x3c] sm:$0xf]
        %v813 = vld [vmem:[%s796 + $0x40] sm:$0xf]
        %v814 = vld [vmem:[%s796 + $0x44] sm:$0xf]
        %v815 = vld [vmem:[%s796 + $0x48] sm:$0xf]
        %v816 = vld [vmem:[%s796 + $0x4c] sm:$0xf]
        %v817 = vld [vmem:[%s796 + $0x50] sm:$0xf]
        %v818 = vld [vmem:[%s796 + $0x54] sm:$0xf]
        %v819 = vld [vmem:[%s796 + $0x58] sm:$0xf]
        %v820 = vld [vmem:[%s796 + $0x5c] sm:$0xf]
        %v821 = vld [vmem:[%s796 + $0x60] sm:$0xf]
        %v822 = vld [vmem:[%s796 + $0x64] sm:$0xf]
        %v823 = vld [vmem:[%s796 + $0x68] sm:$0xf]
        %v824 = vld [vmem:[%s796 + $0x6c] sm:$0xf]
        %v825 = vld [vmem:[%s796 + $0x70] sm:$0xf]
        %v826 = vld [vmem:[%s796 + $0x74] sm:$0xf]
        %v827 = vld [vmem:[%s796 + $0x78] sm:$0xf]
        %v828 = vld [vmem:[%s796 + $0x7c] sm:$0xf]
        %v829 = vld [vmem:[%s796 + $0x80] sm:$0xf]
        %v830 = vld [vmem:[%s796 + $0x84] sm:$0xf]
        %v831 = vld [vmem:[%s796 + $0x88] sm:$0xf]
        %v832 = vld [vmem:[%s796 + $0x8c] sm:$0xf]
        %v833 = vld [vmem:[%s796 + $0x90] sm:$0xf]
        %v834 = vld [vmem:[%s796 + $0x94] sm:$0xf]
        %v835 = vld [vmem:[%s796 + $0x98] sm:$0xf]
        %v836 = vld [vmem:[%s796 + $0x9c] sm:$0xf]
        %v837 = vld [vmem:[%s796 + $0xa0] sm:$0xf]
        %v838 = vld [vmem:[%s796 + $0xa4] sm:$0xf]
        %v839 = vld [vmem:[%s796 + $0xa8] sm:$0xf]
        %v840 = vld [vmem:[%s796 + $0xac] sm:$0xf]
        %v841 = vld [vmem:[%s796 + $0xb0] sm:$0xf]
        %v842 = vld [vmem:[%s796 + $0xb4] sm:$0xf]
        %v843 = vld [vmem:[%s796 + $0xb8] sm:$0xf]
        %v844 = vld [vmem:[%s796 + $0xbc] sm:$0xf]
        %v853 = vunpack.c.l.b16 %v788
        %v854 = vunpack.c.h.b16 %v788
        %v855 = vunpack.c.l.b16 %v789
        %v856 = vunpack.c.l.b16 %v790
        %v857 = vunpack.c.h.b16 %v790
        %v858 = vunpack.c.l.b16 %v791
        %v859 = vunpack.c.l.b16 %v792
        %v860 = vunpack.c.h.b16 %v792
        %v861 = vunpack.c.l.b16 %v793
        %v862 = vunpack.c.l.b16 %v794
        %v863 = vunpack.c.h.b16 %v794
        %v864 = vunpack.c.l.b16 %v795
        %v865 = vpack.c.b16 %v856, %v853
        %v866 = vpack.c.b16 %v857, %v854
        %v867 = vpack.c.b16 %v858, %v855
        %v868 = vpack.c.b16 %v862, %v859
        %v869 = vpack.c.b16 %v863, %v860
        %v870 = vpack.c.b16 %v864, %v861
        %v925 = vunpack.c.l.b16 %v797
        %v926 = vunpack.c.l.b16 %v798
        %v927 = vunpack.c.l.b16 %v799
        %v928 = vunpack.c.l.b16 %v800
        %v929 = vunpack.c.l.b16 %v801
        %v930 = vunpack.c.l.b16 %v802
        %v931 = vunpack.c.l.b16 %v803
        %v932 = vunpack.c.l.b16 %v804
        %v933 = vunpack.c.l.b16 %v805
        %v934 = vunpack.c.l.b16 %v806
        %v935 = vunpack.c.l.b16 %v807
        %v936 = vunpack.c.l.b16 %v808
        %v937 = vunpack.c.l.b16 %v809
        %v938 = vunpack.c.l.b16 %v810
        %v939 = vunpack.c.l.b16 %v811
        %v940 = vunpack.c.l.b16 %v812
        %v941 = vunpack.c.l.b16 %v813
        %v942 = vunpack.c.l.b16 %v814
        %v943 = vunpack.c.l.b16 %v815
        %v944 = vunpack.c.l.b16 %v816
        %v945 = vunpack.c.l.b16 %v817
        %v946 = vunpack.c.l.b16 %v818
        %v947 = vunpack.c.l.b16 %v819
        %v948 = vunpack.c.l.b16 %v820
        %v949 = vunpack.c.l.b16 %v821
        %v950 = vunpack.c.l.b16 %v822
        %v951 = vunpack.c.l.b16 %v823
        %v952 = vunpack.c.l.b16 %v824
        %v953 = vunpack.c.l.b16 %v825
        %v954 = vunpack.c.l.b16 %v826
        %v955 = vunpack.c.l.b16 %v827
        %v956 = vunpack.c.l.b16 %v828
        %v957 = vunpack.c.l.b16 %v829
        %v958 = vunpack.c.l.b16 %v830
        %v959 = vunpack.c.l.b16 %v831
        %v960 = vunpack.c.l.b16 %v832
        %v961 = vunpack.c.l.b16 %v833
        %v962 = vunpack.c.l.b16 %v834
        %v963 = vunpack.c.l.b16 %v835
        %v964 = vunpack.c.l.b16 %v836
        %v965 = vunpack.c.l.b16 %v837
        %v966 = vunpack.c.l.b16 %v838
        %v967 = vunpack.c.l.b16 %v839
        %v968 = vunpack.c.l.b16 %v840
        %v969 = vunpack.c.l.b16 %v841
        %v970 = vunpack.c.l.b16 %v842
        %v971 = vunpack.c.l.b16 %v843
        %v972 = vunpack.c.l.b16 %v844
        %v973 = vpack.c.b16 %v926, %v925
        %v974 = vpack.c.b16 %v928, %v927
        %v975 = vpack.c.b16 %v930, %v929
        %v976 = vpack.c.b16 %v932, %v931
        %v977 = vpack.c.b16 %v934, %v933
        %v978 = vpack.c.b16 %v936, %v935
        %v979 = vpack.c.b16 %v938, %v937
        %v980 = vpack.c.b16 %v940, %v939
        %v981 = vpack.c.b16 %v942, %v941
        %v982 = vpack.c.b16 %v944, %v943
        %v983 = vpack.c.b16 %v946, %v945
        %v984 = vpack.c.b16 %v948, %v947
        %v985 = vpack.c.b16 %v950, %v949
        %v986 = vpack.c.b16 %v952, %v951
        %v987 = vpack.c.b16 %v954, %v953
        %v988 = vpack.c.b16 %v956, %v955
        %v989 = vpack.c.b16 %v958, %v957
        %v990 = vpack.c.b16 %v960, %v959
        %v991 = vpack.c.b16 %v962, %v961
        %v992 = vpack.c.b16 %v964, %v963
        %v993 = vpack.c.b16 %v966, %v965
        %v994 = vpack.c.b16 %v968, %v967
        %v995 = vpack.c.b16 %v970, %v969
        %v996 = vpack.c.b16 %v972, %v971
        %1021 = vmatprep.subr.bf16.mxu0 0
        %1022 = vmatpush1.bf16.msra.mxu0 %v980
        %1023 = vmatprep.subr.bf16.mxu0 0
        %1024 = vmatpush1.bf16.msra.mxu0 %v979
        %1025 = vmatprep.subr.bf16.mxu0 0
        %1026 = vmatpush1.bf16.msra.mxu0 %v978
        %1027 = vmatprep.subr.bf16.mxu0 0
        %1028 = vmatpush1.bf16.msra.mxu0 %v977
        %1029 = vmatprep.subr.bf16.mxu0 0
        %1030 = vmatpush1.bf16.msra.mxu0 %v976
        %1031 = vmatprep.subr.bf16.mxu0 0
        %1032 = vmatpush1.bf16.msra.mxu0 %v975
        %1033 = vmatprep.subr.bf16.mxu0 0
        %1034 = vmatpush1.bf16.msra.mxu0 %v974
        %1035 = vmatprep.subr.bf16.mxu0 0
        %1036 = vmatpush1.bf16.msra.mxu0 %v973
        %1037 = vmatprep.subr.bf16.mxu0 0
        %1038 = vmatpush2.bf16.msra.mxu0 %v988
        %1039 = vmatprep.subr.bf16.mxu0 0
        %1040 = vmatpush2.bf16.msra.mxu0 %v987
        %1041 = vmatprep.subr.bf16.mxu0 0
        %1042 = vmatpush2.bf16.msra.mxu0 %v986
        %1043 = vmatprep.subr.bf16.mxu0 0
        %1044 = vmatpush2.bf16.msra.mxu0 %v985
        %1045 = vmatprep.subr.bf16.mxu0 0
        %1046 = vmatpush2.bf16.msra.mxu0 %v984
        %1047 = vmatprep.subr.bf16.mxu0 0
        %1048 = vmatpush2.bf16.msra.mxu0 %v983
        %1049 = vmatprep.subr.bf16.mxu0 0
        %1050 = vmatpush2.bf16.msra.mxu0 %v982
        %1051 = vmatprep.subr.bf16.mxu0 0
        %1052 = vmatpush2.bf16.msra.mxu0 %v981
        %1053 = vmatprep.mubr.bf16.mxu0 %v866
        %1054 = vmatmul.mubr.bf16.gmra.mxu0 %v865
        %v1055 = vpop.f32.mrf.mxu0
        %v1056 = vadd.f32 0.0, %v1055
        %v1057 = vpop.f32.mrf.mxu0
        %v1058 = vpop.f32.mrf.mxu0
        %v1059 = vadd.f32 0.0, %v1058
        %v1060 = vpop.f32.mrf.mxu0
        %1061 = vmatprep.mubr.bf16.mxu0 %v869
        %1062 = vmatmul.mubr.bf16.gmra.mxu0 %v868
        %v1063 = vpop.f32.mrf.mxu0
        %v1064 = vadd.f32 0.0, %v1063
        %v1065 = vpop.f32.mrf.mxu0
        %v1066 = vpop.f32.mrf.mxu0
        %v1067 = vadd.f32 0.0, %v1066
        %v1068 = vpop.f32.mrf.mxu0
        %1069 = vdwg.mxu0
        %1070 = vmatprep.subr.bf16.mxu0 0
        %1071 = vmatpush1.bf16.msra.mxu0 %v996
        %1072 = vmatprep.subr.bf16.mxu0 0
        %1073 = vmatpush1.bf16.msra.mxu0 %v995
        %1074 = vmatprep.subr.bf16.mxu0 0
        %1075 = vmatpush1.bf16.msra.mxu0 %v994
        %1076 = vmatprep.subr.bf16.mxu0 0
        %1077 = vmatpush1.bf16.msra.mxu0 %v993
        %1078 = vmatprep.subr.bf16.mxu0 0
        %1079 = vmatpush1.bf16.msra.mxu0 %v992
        %1080 = vmatprep.subr.bf16.mxu0 0
        %1081 = vmatpush1.bf16.msra.mxu0 %v991
        %1082 = vmatprep.subr.bf16.mxu0 0
        %1083 = vmatpush1.bf16.msra.mxu0 %v990
        %1084 = vmatprep.subr.bf16.mxu0 0
        %1085 = vmatpush1.bf16.msra.mxu0 %v989
        %1086 = vmatprep.subr.bf16.mxu0 0
        %1087 = vmatpush2.bf16.msra.mxu0 0
        %1088 = vmatprep.subr.bf16.mxu0 0
        %1089 = vmatpush2.bf16.msra.mxu0 0
        %1090 = vmatprep.subr.bf16.mxu0 0
        %1091 = vmatpush2.bf16.msra.mxu0 0
        %1092 = vmatprep.subr.bf16.mxu0 0
        %1093 = vmatpush2.bf16.msra.mxu0 0
        %1094 = vmatprep.subr.bf16.mxu0 0
        %1095 = vmatpush2.bf16.msra.mxu0 0
        %1096 = vmatprep.subr.bf16.mxu0 0
        %1097 = vmatpush2.bf16.msra.mxu0 0
        %1098 = vmatprep.subr.bf16.mxu0 0
        %1099 = vmatpush2.bf16.msra.mxu0 0
        %1100 = vmatprep.subr.bf16.mxu0 0
        %1101 = vmatpush2.bf16.msra.mxu0 0
        %1102 = vmatprep.mubr.bf16.mxu0 0
        %1103 = vmatmul.mubr.bf16.gmra.mxu0 %v867
        %v1104 = vpop.f32.mrf.mxu0
        %v1105 = vadd.f32 %v1056, %v1104
        %v1106 = vpop.f32.mrf.mxu0
        %v1107 = vpop.f32.mrf.mxu0
        %v1108 = vadd.f32 %v1059, %v1107
        %v1109 = vpop.f32.mrf.mxu0
        %1110 = vmatprep.mubr.bf16.mxu0 0
        %1111 = vmatmul.mubr.bf16.gmra.mxu0 %v870
        %v1112 = vpop.f32.mrf.mxu0
        %v1113 = vadd.f32 %v1064, %v1112
        %v1114 = vpop.f32.mrf.mxu0
        %v1115 = vpop.f32.mrf.mxu0
        %v1116 = vadd.f32 %v1067, %v1115
        %v1117 = vpop.f32.mrf.mxu0
        %1118 = vdwg.mxu0
        %v1119 = vld [vmem:[#allocation3] sm:$0xff]
        %v1120 = vld [vmem:[#allocation3 + $0x8] sm:$0xff]
        %v1121 = vld [vmem:[#allocation3 + $0x10] sm:$0xff]
        %v1122 = vld [vmem:[#allocation3 + $0x18] sm:$0xff]
        %v1123 = vadd.f32 %v1119, %v1105
        %v1124 = vadd.f32 %v1120, %v1108
        %v1125 = vadd.f32 %v1121, %v1113
        %v1126 = vadd.f32 %v1122, %v1116
        %1127 = vst [vmem:[#allocation3] sm:$0xff] %v1123
        %1128 = vst [vmem:[#allocation3 + $0x8] sm:$0xff] %v1124
        %1129 = vst [vmem:[#allocation3 + $0x10] sm:$0xff] %v1125
        %1130 = vst [vmem:[#allocation3 + $0x18] sm:$0xff] %v1126
        %v1131 = vld [vmem:[#allocation2 + $0x18] sm:$0xff]
        %v1132 = vld [vmem:[#allocation2 + $0x20] sm:$0xf]
        %v1133 = vld [vmem:[#allocation2 + $0x24] sm:$0xff]
        %v1134 = vld [vmem:[#allocation2 + $0x2c] sm:$0xf]
        %v1135 = vld [vmem:[#allocation2 + $0x30] sm:$0xff]
        %v1136 = vld [vmem:[#allocation2 + $0x38] sm:$0xf]
        %v1137 = vld [vmem:[#allocation2 + $0x3c] sm:$0xff]
        %v1138 = vld [vmem:[#allocation2 + $0x44] sm:$0xf]
        %s1139 = scalar_lea.vmem [#allocation4], 384
        %v1140 = vld [vmem:[%s1139] sm:$0xf]
        %v1141 = vld [vmem:[%s1139 + $0x4] sm:$0xf]
        %v1142 = vld [vmem:[%s1139 + $0x8] sm:$0xf]
        %v1143 = vld [vmem:[%s1139 + $0xc] sm:$0xf]
        %v1144 = vld [vmem:[%s1139 + $0x10] sm:$0xf]
        %v1145 = vld [vmem:[%s1139 + $0x14] sm:$0xf]
        %v1146 = vld [vmem:[%s1139 + $0x18] sm:$0xf]
        %v1147 = vld [vmem:[%s1139 + $0x1c] sm:$0xf]
        %v1148 = vld [vmem:[%s1139 + $0x20] sm:$0xf]
        %v1149 = vld [vmem:[%s1139 + $0x24] sm:$0xf]
        %v1150 = vld [vmem:[%s1139 + $0x28] sm:$0xf]
        %v1151 = vld [vmem:[%s1139 + $0x2c] sm:$0xf]
        %v1152 = vld [vmem:[%s1139 + $0x30] sm:$0xf]
        %v1153 = vld [vmem:[%s1139 + $0x34] sm:$0xf]
        %v1154 = vld [vmem:[%s1139 + $0x38] sm:$0xf]
        %v1155 = vld [vmem:[%s1139 + $0x3c] sm:$0xf]
        %v1156 = vld [vmem:[%s1139 + $0x40] sm:$0xf]
        %v1157 = vld [vmem:[%s1139 + $0x44] sm:$0xf]
        %v1158 = vld [vmem:[%s1139 + $0x48] sm:$0xf]
        %v1159 = vld [vmem:[%s1139 + $0x4c] sm:$0xf]
        %v1160 = vld [vmem:[%s1139 + $0x50] sm:$0xf]
        %v1161 = vld [vmem:[%s1139 + $0x54] sm:$0xf]
        %v1162 = vld [vmem:[%s1139 + $0x58] sm:$0xf]
        %v1163 = vld [vmem:[%s1139 + $0x5c] sm:$0xf]
        %v1164 = vld [vmem:[%s1139 + $0x60] sm:$0xf]
        %v1165 = vld [vmem:[%s1139 + $0x64] sm:$0xf]
        %v1166 = vld [vmem:[%s1139 + $0x68] sm:$0xf]
        %v1167 = vld [vmem:[%s1139 + $0x6c] sm:$0xf]
        %v1168 = vld [vmem:[%s1139 + $0x70] sm:$0xf]
        %v1169 = vld [vmem:[%s1139 + $0x74] sm:$0xf]
        %v1170 = vld [vmem:[%s1139 + $0x78] sm:$0xf]
        %v1171 = vld [vmem:[%s1139 + $0x7c] sm:$0xf]
        %v1172 = vld [vmem:[%s1139 + $0x80] sm:$0xf]
        %v1173 = vld [vmem:[%s1139 + $0x84] sm:$0xf]
        %v1174 = vld [vmem:[%s1139 + $0x88] sm:$0xf]
        %v1175 = vld [vmem:[%s1139 + $0x8c] sm:$0xf]
        %v1176 = vld [vmem:[%s1139 + $0x90] sm:$0xf]
        %v1177 = vld [vmem:[%s1139 + $0x94] sm:$0xf]
        %v1178 = vld [vmem:[%s1139 + $0x98] sm:$0xf]
        %v1179 = vld [vmem:[%s1139 + $0x9c] sm:$0xf]
        %v1180 = vld [vmem:[%s1139 + $0xa0] sm:$0xf]
        %v1181 = vld [vmem:[%s1139 + $0xa4] sm:$0xf]
        %v1182 = vld [vmem:[%s1139 + $0xa8] sm:$0xf]
        %v1183 = vld [vmem:[%s1139 + $0xac] sm:$0xf]
        %v1184 = vld [vmem:[%s1139 + $0xb0] sm:$0xf]
        %v1185 = vld [vmem:[%s1139 + $0xb4] sm:$0xf]
        %v1186 = vld [vmem:[%s1139 + $0xb8] sm:$0xf]
        %v1187 = vld [vmem:[%s1139 + $0xbc] sm:$0xf]
        %v1196 = vunpack.c.l.b16 %v1131
        %v1197 = vunpack.c.h.b16 %v1131
        %v1198 = vunpack.c.l.b16 %v1132
        %v1199 = vunpack.c.l.b16 %v1133
        %v1200 = vunpack.c.h.b16 %v1133
        %v1201 = vunpack.c.l.b16 %v1134
        %v1202 = vunpack.c.l.b16 %v1135
        %v1203 = vunpack.c.h.b16 %v1135
        %v1204 = vunpack.c.l.b16 %v1136
        %v1205 = vunpack.c.l.b16 %v1137
        %v1206 = vunpack.c.h.b16 %v1137
        %v1207 = vunpack.c.l.b16 %v1138
        %v1208 = vpack.c.b16 %v1199, %v1196
        %v1209 = vpack.c.b16 %v1200, %v1197
        %v1210 = vpack.c.b16 %v1201, %v1198
        %v1211 = vpack.c.b16 %v1205, %v1202
        %v1212 = vpack.c.b16 %v1206, %v1203
        %v1213 = vpack.c.b16 %v1207, %v1204
        %v1268 = vunpack.c.l.b16 %v1140
        %v1269 = vunpack.c.l.b16 %v1141
        %v1270 = vunpack.c.l.b16 %v1142
        %v1271 = vunpack.c.l.b16 %v1143
        %v1272 = vunpack.c.l.b16 %v1144
        %v1273 = vunpack.c.l.b16 %v1145
        %v1274 = vunpack.c.l.b16 %v1146
        %v1275 = vunpack.c.l.b16 %v1147
        %v1276 = vunpack.c.l.b16 %v1148
        %v1277 = vunpack.c.l.b16 %v1149
        %v1278 = vunpack.c.l.b16 %v1150
        %v1279 = vunpack.c.l.b16 %v1151
        %v1280 = vunpack.c.l.b16 %v1152
        %v1281 = vunpack.c.l.b16 %v1153
        %v1282 = vunpack.c.l.b16 %v1154
        %v1283 = vunpack.c.l.b16 %v1155
        %v1284 = vunpack.c.l.b16 %v1156
        %v1285 = vunpack.c.l.b16 %v1157
        %v1286 = vunpack.c.l.b16 %v1158
        %v1287 = vunpack.c.l.b16 %v1159
        %v1288 = vunpack.c.l.b16 %v1160
        %v1289 = vunpack.c.l.b16 %v1161
        %v1290 = vunpack.c.l.b16 %v1162
        %v1291 = vunpack.c.l.b16 %v1163
        %v1292 = vunpack.c.l.b16 %v1164
        %v1293 = vunpack.c.l.b16 %v1165
        %v1294 = vunpack.c.l.b16 %v1166
        %v1295 = vunpack.c.l.b16 %v1167
        %v1296 = vunpack.c.l.b16 %v1168
        %v1297 = vunpack.c.l.b16 %v1169
        %v1298 = vunpack.c.l.b16 %v1170
        %v1299 = vunpack.c.l.b16 %v1171
        %v1300 = vunpack.c.l.b16 %v1172
        %v1301 = vunpack.c.l.b16 %v1173
        %v1302 = vunpack.c.l.b16 %v1174
        %v1303 = vunpack.c.l.b16 %v1175
        %v1304 = vunpack.c.l.b16 %v1176
        %v1305 = vunpack.c.l.b16 %v1177
        %v1306 = vunpack.c.l.b16 %v1178
        %v1307 = vunpack.c.l.b16 %v1179
        %v1308 = vunpack.c.l.b16 %v1180
        %v1309 = vunpack.c.l.b16 %v1181
        %v1310 = vunpack.c.l.b16 %v1182
        %v1311 = vunpack.c.l.b16 %v1183
        %v1312 = vunpack.c.l.b16 %v1184
        %v1313 = vunpack.c.l.b16 %v1185
        %v1314 = vunpack.c.l.b16 %v1186
        %v1315 = vunpack.c.l.b16 %v1187
        %v1316 = vpack.c.b16 %v1269, %v1268
        %v1317 = vpack.c.b16 %v1271, %v1270
        %v1318 = vpack.c.b16 %v1273, %v1272
        %v1319 = vpack.c.b16 %v1275, %v1274
        %v1320 = vpack.c.b16 %v1277, %v1276
        %v1321 = vpack.c.b16 %v1279, %v1278
        %v1322 = vpack.c.b16 %v1281, %v1280
        %v1323 = vpack.c.b16 %v1283, %v1282
        %v1324 = vpack.c.b16 %v1285, %v1284
        %v1325 = vpack.c.b16 %v1287, %v1286
        %v1326 = vpack.c.b16 %v1289, %v1288
        %v1327 = vpack.c.b16 %v1291, %v1290
        %v1328 = vpack.c.b16 %v1293, %v1292
        %v1329 = vpack.c.b16 %v1295, %v1294
        %v1330 = vpack.c.b16 %v1297, %v1296
        %v1331 = vpack.c.b16 %v1299, %v1298
        %v1332 = vpack.c.b16 %v1301, %v1300
        %v1333 = vpack.c.b16 %v1303, %v1302
        %v1334 = vpack.c.b16 %v1305, %v1304
        %v1335 = vpack.c.b16 %v1307, %v1306
        %v1336 = vpack.c.b16 %v1309, %v1308
        %v1337 = vpack.c.b16 %v1311, %v1310
        %v1338 = vpack.c.b16 %v1313, %v1312
        %v1339 = vpack.c.b16 %v1315, %v1314
        %1364 = vmatprep.subr.bf16.mxu0 0
        %1365 = vmatpush1.bf16.msra.mxu0 %v1323
        %1366 = vmatprep.subr.bf16.mxu0 0
        %1367 = vmatpush1.bf16.msra.mxu0 %v1322
        %1368 = vmatprep.subr.bf16.mxu0 0
        %1369 = vmatpush1.bf16.msra.mxu0 %v1321
        %1370 = vmatprep.subr.bf16.mxu0 0
        %1371 = vmatpush1.bf16.msra.mxu0 %v1320
        %1372 = vmatprep.subr.bf16.mxu0 0
        %1373 = vmatpush1.bf16.msra.mxu0 %v1319
        %1374 = vmatprep.subr.bf16.mxu0 0
        %1375 = vmatpush1.bf16.msra.mxu0 %v1318
        %1376 = vmatprep.subr.bf16.mxu0 0
        %1377 = vmatpush1.bf16.msra.mxu0 %v1317
        %1378 = vmatprep.subr.bf16.mxu0 0
        %1379 = vmatpush1.bf16.msra.mxu0 %v1316
        %1380 = vmatprep.subr.bf16.mxu0 0
        %1381 = vmatpush2.bf16.msra.mxu0 %v1331
        %1382 = vmatprep.subr.bf16.mxu0 0
        %1383 = vmatpush2.bf16.msra.mxu0 %v1330
        %1384 = vmatprep.subr.bf16.mxu0 0
        %1385 = vmatpush2.bf16.msra.mxu0 %v1329
        %1386 = vmatprep.subr.bf16.mxu0 0
        %1387 = vmatpush2.bf16.msra.mxu0 %v1328
        %1388 = vmatprep.subr.bf16.mxu0 0
        %1389 = vmatpush2.bf16.msra.mxu0 %v1327
        %1390 = vmatprep.subr.bf16.mxu0 0
        %1391 = vmatpush2.bf16.msra.mxu0 %v1326
        %1392 = vmatprep.subr.bf16.mxu0 0
        %1393 = vmatpush2.bf16.msra.mxu0 %v1325
        %1394 = vmatprep.subr.bf16.mxu0 0
        %1395 = vmatpush2.bf16.msra.mxu0 %v1324
        %1396 = vmatprep.mubr.bf16.mxu0 %v1209
        %1397 = vmatmul.mubr.bf16.gmra.mxu0 %v1208
        %v1398 = vpop.f32.mrf.mxu0
        %v1399 = vadd.f32 0.0, %v1398
        %v1400 = vpop.f32.mrf.mxu0
        %v1401 = vpop.f32.mrf.mxu0
        %v1402 = vadd.f32 0.0, %v1401
        %v1403 = vpop.f32.mrf.mxu0
        %1404 = vmatprep.mubr.bf16.mxu0 %v1212
        %1405 = vmatmul.mubr.bf16.gmra.mxu0 %v1211
        %v1406 = vpop.f32.mrf.mxu0
        %v1407 = vadd.f32 0.0, %v1406
        %v1408 = vpop.f32.mrf.mxu0
        %v1409 = vpop.f32.mrf.mxu0
        %v1410 = vadd.f32 0.0, %v1409
        %v1411 = vpop.f32.mrf.mxu0
        %1412 = vdwg.mxu0
        %1413 = vmatprep.subr.bf16.mxu0 0
        %1414 = vmatpush1.bf16.msra.mxu0 %v1339
        %1415 = vmatprep.subr.bf16.mxu0 0
        %1416 = vmatpush1.bf16.msra.mxu0 %v1338
        %1417 = vmatprep.subr.bf16.mxu0 0
        %1418 = vmatpush1.bf16.msra.mxu0 %v1337
        %1419 = vmatprep.subr.bf16.mxu0 0
        %1420 = vmatpush1.bf16.msra.mxu0 %v1336
        %1421 = vmatprep.subr.bf16.mxu0 0
        %1422 = vmatpush1.bf16.msra.mxu0 %v1335
        %1423 = vmatprep.subr.bf16.mxu0 0
        %1424 = vmatpush1.bf16.msra.mxu0 %v1334
        %1425 = vmatprep.subr.bf16.mxu0 0
        %1426 = vmatpush1.bf16.msra.mxu0 %v1333
        %1427 = vmatprep.subr.bf16.mxu0 0
        %1428 = vmatpush1.bf16.msra.mxu0 %v1332
        %1429 = vmatprep.subr.bf16.mxu0 0
        %1430 = vmatpush2.bf16.msra.mxu0 0
        %1431 = vmatprep.subr.bf16.mxu0 0
        %1432 = vmatpush2.bf16.msra.mxu0 0
        %1433 = vmatprep.subr.bf16.mxu0 0
        %1434 = vmatpush2.bf16.msra.mxu0 0
        %1435 = vmatprep.subr.bf16.mxu0 0
        %1436 = vmatpush2.bf16.msra.mxu0 0
        %1437 = vmatprep.subr.bf16.mxu0 0
        %1438 = vmatpush2.bf16.msra.mxu0 0
        %1439 = vmatprep.subr.bf16.mxu0 0
        %1440 = vmatpush2.bf16.msra.mxu0 0
        %1441 = vmatprep.subr.bf16.mxu0 0
        %1442 = vmatpush2.bf16.msra.mxu0 0
        %1443 = vmatprep.subr.bf16.mxu0 0
        %1444 = vmatpush2.bf16.msra.mxu0 0
        %1445 = vmatprep.mubr.bf16.mxu0 0
        %1446 = vmatmul.mubr.bf16.gmra.mxu0 %v1210
        %v1447 = vpop.f32.mrf.mxu0
        %v1448 = vadd.f32 %v1399, %v1447
        %v1449 = vpop.f32.mrf.mxu0
        %v1450 = vpop.f32.mrf.mxu0
        %v1451 = vadd.f32 %v1402, %v1450
        %v1452 = vpop.f32.mrf.mxu0
        %1453 = vmatprep.mubr.bf16.mxu0 0
        %1454 = vmatmul.mubr.bf16.gmra.mxu0 %v1213
        %v1455 = vpop.f32.mrf.mxu0
        %v1456 = vadd.f32 %v1407, %v1455
        %v1457 = vpop.f32.mrf.mxu0
        %v1458 = vpop.f32.mrf.mxu0
        %v1459 = vadd.f32 %v1410, %v1458
        %v1460 = vpop.f32.mrf.mxu0
        %1461 = vdwg.mxu0
        %v1462 = vld [vmem:[#allocation3] sm:$0xff]
        %v1463 = vld [vmem:[#allocation3 + $0x8] sm:$0xff]
        %v1464 = vld [vmem:[#allocation3 + $0x10] sm:$0xff]
        %v1465 = vld [vmem:[#allocation3 + $0x18] sm:$0xff]
        %v1466 = vadd.f32 %v1462, %v1448
        %v1467 = vadd.f32 %v1463, %v1451
        %v1468 = vadd.f32 %v1464, %v1456
        %v1469 = vadd.f32 %v1465, %v1459
        %1470 = vst [vmem:[#allocation3] sm:$0xff] %v1466
        %1471 = vst [vmem:[#allocation3 + $0x8] sm:$0xff] %v1467
        %1472 = vst [vmem:[#allocation3 + $0x10] sm:$0xff] %v1468
        %1473 = vst [vmem:[#allocation3 + $0x18] sm:$0xff] %v1469
        %v1474 = vld [vmem:[#allocation3] sm:$0xff]
        %v1475 = vld [vmem:[#allocation3 + $0x8] sm:$0xff]
        %v1476 = vld [vmem:[#allocation3 + $0x10] sm:$0xff]
        %v1477 = vld [vmem:[#allocation3 + $0x18] sm:$0xff]
        %v1478 = vld [vmem:[%s2] sm:$0x1]
        %v1480 = vlaneseq
        %v1481 = vshrl.u32 %v1480, 7
        %v1482 = vsub.s32 0, %v1481
        %v1483 = vrot.slane %v1478, %v1482
        %v1485 = vadd.f32 %v1474, %v1483
        %v1486 = vadd.f32 %v1475, %v1483
        %v1487 = vadd.f32 %v1476, %v1483
        %v1488 = vadd.f32 %v1477, %v1483
        %v1489 = vpack.c.bf16 %v1486, %v1485
        %v1490 = vpack.c.bf16 %v1488, %v1487
        %v1491 = vld [vmem:[%s3] sm:$0xf]
        %v1492 = vld [vmem:[%s3 + $0x4] sm:$0xf]
        %v1493 = vld [vmem:[%s3 + $0x8] sm:$0xf]
        %v1494 = vld [vmem:[%s3 + $0xc] sm:$0xf]
        %v1495 = vld [vmem:[%s3 + $0x10] sm:$0xf]
        %v1496 = vld [vmem:[%s3 + $0x14] sm:$0xf]
        %v1497 = vld [vmem:[%s3 + $0x18] sm:$0xf]
        %v1498 = vld [vmem:[%s3 + $0x1c] sm:$0xf]
        %v1499 = vld [vmem:[%s3 + $0x20] sm:$0xf]
        %v1500 = vld [vmem:[%s3 + $0x24] sm:$0xf]
        %v1501 = vld [vmem:[%s3 + $0x28] sm:$0xf]
        %v1502 = vld [vmem:[%s3 + $0x2c] sm:$0xf]
        %v1503 = vld [vmem:[%s3 + $0x30] sm:$0xf]
        %v1504 = vld [vmem:[%s3 + $0x34] sm:$0xf]
        %v1505 = vld [vmem:[%s3 + $0x38] sm:$0xf]
        %v1506 = vld [vmem:[%s3 + $0x3c] sm:$0xf]
        %v1507 = vld [vmem:[%s4] sm:$0x1]
        %v1509 = vlaneseq
        %v1510 = vshrl.u32 %v1509, 7
        %v1511 = vsub.s32 0, %v1510
        %v1512 = vrot.slane %v1507, %v1511
        %v1530 = vunpack.c.l.b16 %v1491
        %v1531 = vunpack.c.l.b16 %v1492
        %v1532 = vunpack.c.l.b16 %v1493
        %v1533 = vunpack.c.l.b16 %v1494
        %v1534 = vunpack.c.l.b16 %v1495
        %v1535 = vunpack.c.l.b16 %v1496
        %v1536 = vunpack.c.l.b16 %v1497
        %v1537 = vunpack.c.l.b16 %v1498
        %v1538 = vunpack.c.l.b16 %v1499
        %v1539 = vunpack.c.l.b16 %v1500
        %v1540 = vunpack.c.l.b16 %v1501
        %v1541 = vunpack.c.l.b16 %v1502
        %v1542 = vunpack.c.l.b16 %v1503
        %v1543 = vunpack.c.l.b16 %v1504
        %v1544 = vunpack.c.l.b16 %v1505
        %v1545 = vunpack.c.l.b16 %v1506
        %v1546 = vpack.c.b16 %v1531, %v1530
        %v1547 = vpack.c.b16 %v1533, %v1532
        %v1548 = vpack.c.b16 %v1535, %v1534
        %v1549 = vpack.c.b16 %v1537, %v1536
        %v1550 = vpack.c.b16 %v1539, %v1538
        %v1551 = vpack.c.b16 %v1541, %v1540
        %v1552 = vpack.c.b16 %v1543, %v1542
        %v1553 = vpack.c.b16 %v1545, %v1544
        %1562 = vmatprep.subr.bf16.mxu0 0
        %1563 = vmatpush1.bf16.msra.mxu0 %v1553
        %1564 = vmatprep.subr.bf16.mxu0 0
        %1565 = vmatpush1.bf16.msra.mxu0 %v1552
        %1566 = vmatprep.subr.bf16.mxu0 0
        %1567 = vmatpush1.bf16.msra.mxu0 %v1551
        %1568 = vmatprep.subr.bf16.mxu0 0
        %1569 = vmatpush1.bf16.msra.mxu0 %v1550
        %1570 = vmatprep.subr.bf16.mxu0 0
        %1571 = vmatpush1.bf16.msra.mxu0 %v1549
        %1572 = vmatprep.subr.bf16.mxu0 0
        %1573 = vmatpush1.bf16.msra.mxu0 %v1548
        %1574 = vmatprep.subr.bf16.mxu0 0
        %1575 = vmatpush1.bf16.msra.mxu0 %v1547
        %1576 = vmatprep.subr.bf16.mxu0 0
        %1577 = vmatpush1.bf16.msra.mxu0 %v1546
        %1578 = vmatprep.subr.bf16.mxu0 0
        %1579 = vmatpush2.bf16.msra.mxu0 0
        %1580 = vmatprep.subr.bf16.mxu0 0
        %1581 = vmatpush2.bf16.msra.mxu0 0
        %1582 = vmatprep.subr.bf16.mxu0 0
        %1583 = vmatpush2.bf16.msra.mxu0 0
        %1584 = vmatprep.subr.bf16.mxu0 0
        %1585 = vmatpush2.bf16.msra.mxu0 0
        %1586 = vmatprep.subr.bf16.mxu0 0
        %1587 = vmatpush2.bf16.msra.mxu0 0
        %1588 = vmatprep.subr.bf16.mxu0 0
        %1589 = vmatpush2.bf16.msra.mxu0 0
        %1590 = vmatprep.subr.bf16.mxu0 0
        %1591 = vmatpush2.bf16.msra.mxu0 0
        %1592 = vmatprep.subr.bf16.mxu0 0
        %1593 = vmatpush2.bf16.msra.mxu0 0
        %1594 = vmatprep.mubr.bf16.mxu0 0
        %1595 = vmatmul.mubr.bf16.gmra.mxu0 %v1489
        %v1596 = vpop.f32.mrf.mxu0
        %v1597 = vadd.f32 %v1512, %v1596
        %v1598 = vpop.f32.mrf.mxu0
        %v1599 = vpop.f32.mrf.mxu0
        %v1600 = vadd.f32 %v1512, %v1599
        %v1601 = vpop.f32.mrf.mxu0
        %1602 = vmatprep.mubr.bf16.mxu0 0
        %1603 = vmatmul.mubr.bf16.gmra.mxu0 %v1490
        %v1604 = vpop.f32.mrf.mxu0
        %v1605 = vadd.f32 %v1512, %v1604
        %v1606 = vpop.f32.mrf.mxu0
        %v1607 = vpop.f32.mrf.mxu0
        %v1608 = vadd.f32 %v1512, %v1607
        %v1609 = vpop.f32.mrf.mxu0
        %1610 = vdwg.mxu0
        %v1611 = vlaneseq
        %v1612 = vand.u32 %v1611, 127
        %vm1613 = vcmp.lt.s32.totalorder %v1612, 0
        %v1614 = vsub.s32 0, %v1612
        %v1615 = vsel %vm1613, %v1614, %v1612
        %v1616 = vshrl.u32 %v1615, 1
        %v1617 = vand.u32 %v1615, 1
        %v1618 = vsub.s32 0, %v1617
        %v1619 = vsel %vm1613, %v1618, %v1617
        %vm1620 = vcmp.ne.s32.totalorder %v1619, 0
        %vm1621 = vcmp.lt.s32.totalorder %v1619, 0
        %vm1622 = vmand %vm1621, %vm1620
        %v1623 = vadd.s32 %v1619, 2
        %v1624 = vsel %vm1622, %v1623, %v1619
        %vm1625 = vcmp.eq.s32.totalorder %v1624, 0
        %1626 = vrot.lane.b32.xlu0 %v1597, 127
        %v1627 = vpop.permute.xlu0 %1626
        %1628 = vrot.lane.b32.xlu0 %v1600, 127
        %v1629 = vpop.permute.xlu0 %1628
        %1630 = vrot.lane.b32.xlu0 %v1605, 127
        %v1631 = vpop.permute.xlu0 %1630
        %1632 = vrot.lane.b32.xlu0 %v1608, 127
        %v1633 = vpop.permute.xlu0 %1632
        %1634 = vrot.lane.b32.xlu0 %v1597, 1
        %v1635 = vpop.permute.xlu0 %1634
        %1636 = vrot.lane.b32.xlu0 %v1600, 1
        %v1637 = vpop.permute.xlu0 %1636
        %1638 = vrot.lane.b32.xlu0 %v1605, 1
        %v1639 = vpop.permute.xlu0 %1638
        %1640 = vrot.lane.b32.xlu0 %v1608, 1
        %v1641 = vpop.permute.xlu0 %1640
        %v1642 = vsel %vm1625, %v1627, %v1635
        %v1643 = vsel %vm1625, %v1629, %v1637
        %v1644 = vsel %vm1625, %v1631, %v1639
        %v1645 = vsel %vm1625, %v1633, %v1641
        %v1646 = vsub.f32 %v1642, %v1597
        %v1647 = vsub.f32 %v1643, %v1600
        %v1648 = vsub.f32 %v1644, %v1605
        %v1649 = vsub.f32 %v1645, %v1608
        %v1650 = vmul.f32 %v1646, 1.442695
        %v1651 = vpow.pop %v1650
        %v1652 = vmul.f32 %v1647, 1.442695
        %v1653 = vpow.pop %v1652
        %v1654 = vmul.f32 %v1648, 1.442695
        %v1655 = vpow.pop %v1654
        %v1656 = vmul.f32 %v1649, 1.442695
        %v1657 = vpow.pop %v1656
        %v1658 = vadd.f32 %v1651, 1.0
        %v1659 = vadd.f32 %v1653, 1.0
        %v1660 = vadd.f32 %v1655, 1.0
        %v1661 = vadd.f32 %v1657, 1.0
        %v1662 = vrcp.pop %v1658
        %v1663 = vrcp.pop %v1659
        %v1664 = vrcp.pop %v1660
        %v1665 = vrcp.pop %v1661
        %vm1666 = vcmp.lt.s32.totalorder %v1612, 18
        %v1667 = vsel %vm1666, %v1662, %v1597
        %v1668 = vsel %vm1666, %v1663, %v1600
        %v1669 = vsel %vm1666, %v1664, %v1605
        %v1670 = vsel %vm1666, %v1665, %v1608
        %1671 = vst [vmem:[%s256] sm:$0xff] %v1667
        %1672 = vst [vmem:[%s256 + $0x8] sm:$0xff] %v1668
        %1673 = vst [vmem:[%s256 + $0x10] sm:$0xff] %v1669
        %1674 = vst [vmem:[%s256 + $0x18] sm:$0xff] %v1670
        %s1675 = sand.u32 %s156, 1
        %s1676 = scalar_lea.sflag [#allocation6], %s1675
        %s1677 = sand.u32 %s156, 1
        %s1678 = smul.addr %s1677, 32
        %s1679 = scalar_lea.vmem [#allocation7], %s1678
        // Predicated region
        $region45: #{tpu_custom_call.1} parent=39 // pred_check
          %p1680 = pneg %p166
        $region46: #{tpu_custom_call.1} parent=39 // pred_check_branch
          %1682 = sbr.rel (%p1680) target = $region48
        $region47: #{tpu_custom_call.1} parent=39 // pred_region
          %s1683 = smul.u32 4, %s25
          %s1685 = ssub.s32 512, 512
          %1686 = vsyncadd %s1676, %s1685
          %s1687 = smul.addr %s24, 8
          %s1688 = sadd.s32 %s1683, %s1687
          %s1689 = smul.addr %s1688, 128
          %s1690 = scalar_lea.hbm %s5, %s1689
          %s1691 = sshll.u32 %s1679, 4
          %s1692 = int_to_ptr.vmem [resolvable:$true] %s1691
          %1697 = dma.vmem_to_hbm [thread:$0]  %s1692, 512, %s1690, %s1676, 128, 128, 8
        $region48: #{tpu_custom_call.1} parent=39 // pred_fallthru
          _
      $region40: #{tpu_custom_call.1} parent=5 // pred_fallthru
        _
      %p1698 = scmp.le.s32.totalorder 2, %s15
      // Predicated region
      $region49: #{tpu_custom_call.1} parent=5 // pred_check
        %p1699 = pneg %p1698
      $region50: #{tpu_custom_call.1} parent=5 // pred_check_branch
        %1701 = sbr.rel (%p1699) target = $region52
      $region51: #{tpu_custom_call.1} parent=5 // pred_region
        %s1702 = ssub.s32 %s15, 2
        // Predicated region
        $region53: #{tpu_custom_call.1} parent=51 // pred_check
          %p1703 = pneg %p172
        $region54: #{tpu_custom_call.1} parent=51 // pred_check_branch
          %1705 = sbr.rel (%p1703) target = $region56
        $region55: #{tpu_custom_call.1} parent=51 // pred_region
          %s1706 = sand.u32 %s157, 1
          %s1707 = scalar_lea.sflag [#allocation6], %s1706
          %s1708 = sand.u32 %s157, 1
          %s1709 = smul.addr %s1708, 32
          %s1710 = scalar_lea.vmem [#allocation7], %s1709
          %1711 = dma.done %s1707, 512
        $region56: #{tpu_custom_call.1} parent=51 // pred_fallthru
          _
      $region52: #{tpu_custom_call.1} parent=5 // pred_fallthru
        _
    $region6: #{tpu_custom_call.1} parent=1 // loop_footer
      %s19 = sadd.s32 1, %s15
    $region7: #{tpu_custom_call.1} parent=1 // loop_footer_branch
      %14 = sbr.rel target = $region3
    $region8: #{tpu_custom_call.1} parent=1 // loop_exit
      _
    %1712 = vsyncpa [#allocation5], 1
    %s1713 = scalar_lea.sflag [#allocation5], 1
    %1714 = vsyncpa %s1713, 1
    %1715 = vsyncpa [#allocation6], 1
    %s1716 = scalar_lea.sflag [#allocation6], 1
    %1717 = vsyncpa %s1716, 1

</llo_original>
